<compile_context>
chip_gen: v7x
topology: tpu7x:2x2x1
jax: 0.10.0
libtpu: 0.0.40
codegen_flags: <defaults>
</compile_context>

<pallas_src>
import functools
import math

import jax
import jax.numpy as jnp
from jax import lax
from jax.experimental import pallas as pl
from jax.experimental.pallas import tpu as pltpu


PARAM_ORDER = (
    "wqkv", "bqkv", "wo", "bo",
    "wm1", "bm1", "wm2", "bm2",
    "g1", "be1", "g2", "be2",
)


def _layernorm(x, gamma, beta, eps=1e-5):
    mean = jnp.mean(x, axis=-1, keepdims=True)
    var = jnp.mean(jnp.square(x - mean), axis=-1, keepdims=True)
    return (x - mean) * lax.rsqrt(var + eps) * gamma + beta


def _fused_layers_kernel(
    x_ref,
    wqkv, bqkv, wo, bo,
    wm1, bm1, wm2, bm2,
    g1, be1, g2, be2,
    out_ref,
    *, num_layers: int, causal: bool, scale: float,
):
    """All `num_layers` (shared-weight) layers for one batch block, fused."""
    bb, t, e = x_ref.shape
    mxu_dtype = wqkv.dtype  # bf16 via prepare_params -> rated MXU path

    # (B*T, E) slab: batches M for the projection / MLP matmuls. Residuals,
    # softmax stats and LayerNorm stats stay f32.
    x = x_ref[...].astype(jnp.float32).reshape(bb * t, e)

    if causal:
        row = lax.broadcasted_iota(jnp.int32, (t, t), 0)
        col = lax.broadcasted_iota(jnp.int32, (t, t), 1)
        keep = (col <= row)[None, :, :]   # (1, T, T); hoisted out of layer loop

    def linear(h, w_ref, b_ref):
        # Weights loaded at point of use (bounded live ranges for large E/H);
        # bf16 operands into the MXU, f32 accumulation, f32 bias add.
        return (jnp.dot(h.astype(w_ref.dtype), w_ref[...],
                        preferred_element_type=jnp.float32) + b_ref[...])

    def layer(h):
        # ---- self-attention: attention(h, h, h) ----
        qkv = linear(h, wqkv, bqkv)                       # (bb*t, 3e), fused QKV
        q = (qkv[:, :e] * scale).reshape(bb, t, e).astype(mxu_dtype)
        k = qkv[:, e:2 * e].reshape(bb, t, e).astype(mxu_dtype)
        v = qkv[:, 2 * e:].reshape(bb, t, e).astype(mxu_dtype)

        s = jnp.einsum("btd,bsd->bts", q, k,
                       preferred_element_type=jnp.float32)
        if causal:
            s = jnp.where(keep, s, -1e30)
        m = jnp.max(s, axis=-1, keepdims=True)
        p = jnp.exp(s - m)
        p = p / jnp.sum(p, axis=-1, keepdims=True)        # exact softmax divide
        ctx = jnp.einsum("bts,bsd->btd", p.astype(mxu_dtype), v,
                         preferred_element_type=jnp.float32).reshape(bb * t, e)
        attn_out = linear(ctx, wo, bo)

        h = _layernorm(h + attn_out, g1[...], be1[...])   # residual + LN
        # drop_out_after_self_attention -> identity (eval-mode forward)

        # ---- MLP (Linear -> ReLU -> Linear) ----
        mlp = linear(jnp.maximum(linear(h, wm1, bm1), 0.0), wm2, bm2)
        h = _layernorm(h + mlp, g2[...], be2[...])        # residual + LN
        # drop_out_after_mlp -> identity (eval-mode forward)
        return h

    # The PyTorch block is `[layer] * num_of_layers` (same layer object applied
    # repeatedly). Small fixed counts: static unroll (scheduler visibility).
    # Large counts: fori_loop carry bounds live ranges / code size.
    if num_layers <= 4:
        for _ in range(num_layers):
            x = layer(x)
    else:
        x = lax.fori_loop(0, num_layers, lambda _, h: layer(h), x)

    out_ref[...] = x.reshape(bb, t, e).astype(out_ref.dtype)


def prepare_params(params, matmul_dtype=jnp.bfloat16):
    """One-time (init-time) prep: fuse Q|K|V weights/biases, cast matmul
    weights to bf16. Biases / LayerNorm params stay f32 (added post-MXU)."""
    f32 = jnp.float32
    return {
        "wqkv": jnp.concatenate(
            [params["wq"], params["wk"], params["wv"]], axis=1).astype(matmul_dtype),
        "bqkv": jnp.concatenate(
            [params["bq"], params["bk"], params["bv"]], axis=1).astype(f32),
        "wo": params["wo"].astype(matmul_dtype), "bo": params["bo"].astype(f32),
        "wm1": params["wm1"].astype(matmul_dtype), "bm1": params["bm1"].astype(f32),
        "wm2": params["wm2"].astype(matmul_dtype), "bm2": params["bm2"].astype(f32),
        "g1": params["g1"].astype(f32), "be1": params["be1"].astype(f32),
        "g2": params["g2"].astype(f32), "be2": params["be2"].astype(f32),
    }


def _vmem_bytes_estimate(batch_block, t, e, h):
    """Rough per-core VMEM need: double-buffered activation blocks, resident
    weights (assume double-buffered for headroom), and the largest transient
    intermediates of one layer."""
    f32, bf16 = 4, 2
    act_block = batch_block * t * e * f32
    io = 2 * (2 * act_block)                                  # in + out blocks
    weights = ((3 * e * e + e * e + e * h + h * e) * bf16
               + (3 * e + e + h + e + 4 * e) * f32)
    transients = (batch_block * t * 3 * e * f32               # fused qkv slab
                  + 2 * batch_block * t * t * f32             # scores + probs
                  + batch_block * t * h * f32                 # mlp hidden
                  + 3 * act_block)                            # q/k/v copies
    return io + 2 * weights + transients


def encoder_or_decoder_layers(inputs, prepared, num_layers, *, causal=True,
                              batch_block=None):
    """EncoderOrDecoderLayers.forward, all layers fused into one pallas_call."""
    b, t, e = inputs.shape
    h = prepared["wm1"].shape[1]

    if batch_block is None:
        # >= 2 grid steps on the "parallel" batch axis feeds both v7x TCs;
        # harmless on v5e/v6e (1 TC). Trade off against per-step M = bb*T.
        batch_block = b if b == 1 else b // 2
        while b % batch_block:
            batch_block -= 1
    assert b % batch_block == 0

    scale = 1.0 / math.sqrt(e)           # applied in-kernel (VPU mul on q)
    param_list = [prepared[name] for name in PARAM_ORDER]

    kernel = functools.partial(_fused_layers_kernel, num_layers=num_layers,
                               causal=causal, scale=scale)

    est = _vmem_bytes_estimate(batch_block, t, e, h)
    vmem_limit = int(min(max(32 * 1024 * 1024, 2 * est), 64 * 1024 * 1024))

    def call(single_buffer_weights):
        if single_buffer_weights:
            # Constant index_map -> weights never change across grid steps;
            # single-buffer them so they aren't held twice in VMEM.
            w_spec = lambda w: pl.BlockSpec(w.shape, lambda i: (0, 0),
                                            pipeline_mode=pl.Buffered(1))
        else:
            w_spec = lambda w: pl.BlockSpec(w.shape, lambda i: (0, 0))
        return pl.pallas_call(
            kernel,
            out_shape=jax.ShapeDtypeStruct((b, t, e), inputs.dtype),
            grid_spec=pltpu.PrefetchScalarGridSpec(
                num_scalar_prefetch=0,
                grid=(b // batch_block,),
                in_specs=(
                    [pl.BlockSpec((batch_block, t, e), lambda i: (i, 0, 0))]
                    + [w_spec(w) for w in param_list]
                ),
                out_specs=pl.BlockSpec((batch_block, t, e), lambda i: (i, 0, 0)),
            ),
            compiler_params=pltpu.CompilerParams(
                dimension_semantics=("parallel",),
                vmem_limit_bytes=vmem_limit,
            ),
        )(inputs, *param_list)

    try:
        return call(True)
    except Exception:
        # pipeline_mode=pl.Buffered(1) not accepted by this jax build; the
        # default double-buffered weight path is semantically identical.
        return call(False)


def make_params(key, embed, hidden):
    ks = jax.random.split(key, 12)
    w = lambda k, shape: jax.random.normal(k, shape, jnp.float32) * 0.05
    return {
        "wq": w(ks[0], (embed, embed)), "bq": w(ks[1], (1, embed)),
        "wk": w(ks[2], (embed, embed)), "bk": w(ks[3], (1, embed)),
        "wv": w(ks[4], (embed, embed)), "bv": w(ks[5], (1, embed)),
        "wo": w(ks[6], (embed, embed)), "bo": w(ks[7], (1, embed)),
        "wm1": w(ks[8], (embed, hidden)), "bm1": w(ks[9], (1, hidden)),
        "wm2": w(ks[10], (hidden, embed)), "bm2": w(ks[11], (1, embed)),
        "g1": jnp.ones((1, embed), jnp.float32),
        "be1": jnp.zeros((1, embed), jnp.float32),
        "g2": jnp.ones((1, embed), jnp.float32),
        "be2": jnp.zeros((1, embed), jnp.float32),
    }


def reference_forward(inputs, p, num_layers, *, causal=True):
    """Pure-JAX f32 reference of the same forward pass (correctness check)."""
    _, t, e = inputs.shape
    scale = 1.0 / math.sqrt(e)
    mask = jnp.tril(jnp.ones((t, t), bool))

    def ln(x, g, bta):
        m = x.mean(-1, keepdims=True)
        v = ((x - m) ** 2).mean(-1, keepdims=True)
        return (x - m) * lax.rsqrt(v + 1e-5) * g + bta

    x = inputs
    for _ in range(num_layers):
        q = x @ p["wq"] + p["bq"]
        k = x @ p["wk"] + p["bk"]
        v = x @ p["wv"] + p["bv"]
        s = jnp.einsum("btd,bsd->bts", q, k) * scale
        if causal:
            s = jnp.where(mask, s, -1e30)
        attn = jax.nn.softmax(s, axis=-1)
        sa = jnp.einsum("bts,bsd->btd", attn, v) @ p["wo"] + p["bo"]
        h = ln(x + sa, p["g1"], p["be1"])
        mlp = jax.nn.relu(h @ p["wm1"] + p["bm1"]) @ p["wm2"] + p["bm2"]
        h = ln(h + mlp, p["g2"], p["be2"])
        x = h
    return x


if __name__ == "__main__":
    # EncoderOrDecoderConfig analog. E = 128 -> lane-dense stores; T = 16 is a
    # multiple of 8 (production T should be >= 128 for lane-dense softmax).
    batch = 2
    target_seq_length = 16
    embedding_size = 128
    mlp_hidden = 256
    num_of_layers = 2

    key = jax.random.PRNGKey(0)
    k_in, k_param = jax.random.split(key)
    inputs = jax.random.normal(
        k_in, (batch, target_seq_length, embedding_size), jnp.float32)
    params = make_params(k_param, embedding_size, mlp_hidden)
    prepared = prepare_params(params)   # one-time: QKV fusion + bf16 cast

    # DECODER (causal) and ENCODER (non-causal) variants of the same block.
    out_dec = jax.block_until_ready(
        encoder_or_decoder_layers(inputs, prepared, num_of_layers, causal=True))
    out_enc = jax.block_until_ready(
        encoder_or_decoder_layers(inputs, prepared, num_of_layers, causal=False))

    ref_dec = reference_forward(inputs, params, num_of_layers, causal=True)
    ref_enc = reference_forward(inputs, params, num_of_layers, causal=False)

    assert out_dec.shape == (batch, target_seq_length, embedding_size)
    err_dec = float(jnp.max(jnp.abs(out_dec - ref_dec)))
    err_enc = float(jnp.max(jnp.abs(out_enc - ref_enc)))
    # Tolerance covers bf16 MXU operands (softmax / LayerNorm stats are f32).
    assert jnp.allclose(out_dec, ref_dec, rtol=5e-2, atol=5e-2), (
        f"decoder max abs err {err_dec}")
    assert jnp.allclose(out_enc, ref_enc, rtol=5e-2, atol=5e-2), (
        f"encoder max abs err {err_enc}")

    print("KERNEL_OK")
</pallas_src>

<mosaic_0001>
module attributes {stable_mosaic.version = 11 : i64} {
  func.func @_fused_layers_kernel(%arg0: i32, %arg1: memref<1x16x128xf32, #tpu.memory_space<vmem>>, %arg2: memref<128x384xbf16, #tpu.memory_space<vmem>>, %arg3: memref<1x384xf32, #tpu.memory_space<vmem>>, %arg4: memref<128x128xbf16, #tpu.memory_space<vmem>>, %arg5: memref<1x128xf32, #tpu.memory_space<vmem>>, %arg6: memref<128x256xbf16, #tpu.memory_space<vmem>>, %arg7: memref<1x256xf32, #tpu.memory_space<vmem>>, %arg8: memref<256x128xbf16, #tpu.memory_space<vmem>>, %arg9: memref<1x128xf32, #tpu.memory_space<vmem>>, %arg10: memref<1x128xf32, #tpu.memory_space<vmem>>, %arg11: memref<1x128xf32, #tpu.memory_space<vmem>>, %arg12: memref<1x128xf32, #tpu.memory_space<vmem>>, %arg13: memref<1x128xf32, #tpu.memory_space<vmem>>, %arg14: memref<1x16x128xf32, #tpu.memory_space<vmem>>) attributes {dimension_semantics = [#tpu.dimension_semantics<parallel>], iteration_bounds = array<i64: 2>, scalar_prefetch = 0 : i64, scratch_operands = 0 : i64, tpu.core_type = #tpu.core_type<tc>, window_params = [{transform_indices = @transform_0, window_bounds = array<i64: 1, 16, 128>}, {pipeline_mode = #tpu.pipeline_mode<synchronous>, transform_indices = @transform_1, window_bounds = array<i64: 128, 384>}, {pipeline_mode = #tpu.pipeline_mode<synchronous>, transform_indices = @transform_2, window_bounds = array<i64: 1, 384>}, {pipeline_mode = #tpu.pipeline_mode<synchronous>, transform_indices = @transform_3, window_bounds = array<i64: 128, 128>}, {pipeline_mode = #tpu.pipeline_mode<synchronous>, transform_indices = @transform_4, window_bounds = array<i64: 1, 128>}, {pipeline_mode = #tpu.pipeline_mode<synchronous>, transform_indices = @transform_5, window_bounds = array<i64: 128, 256>}, {pipeline_mode = #tpu.pipeline_mode<synchronous>, transform_indices = @transform_6, window_bounds = array<i64: 1, 256>}, {pipeline_mode = #tpu.pipeline_mode<synchronous>, transform_indices = @transform_7, window_bounds = array<i64: 256, 128>}, {pipeline_mode = #tpu.pipeline_mode<synchronous>, transform_indices = @transform_8, window_bounds = array<i64: 1, 128>}, {pipeline_mode = #tpu.pipeline_mode<synchronous>, transform_indices = @transform_9, window_bounds = array<i64: 1, 128>}, {pipeline_mode = #tpu.pipeline_mode<synchronous>, transform_indices = @transform_10, window_bounds = array<i64: 1, 128>}, {pipeline_mode = #tpu.pipeline_mode<synchronous>, transform_indices = @transform_11, window_bounds = array<i64: 1, 128>}, {pipeline_mode = #tpu.pipeline_mode<synchronous>, transform_indices = @transform_12, window_bounds = array<i64: 1, 128>}, {transform_indices = @transform_13, window_bounds = array<i64: 1, 16, 128>}]} {
    %c0 = arith.constant 0 : index
    %c0_0 = arith.constant 0 : index
    %c0_1 = arith.constant 0 : index
    %0 = vector.load %arg1[%c0, %c0_0, %c0_1] : memref<1x16x128xf32, #tpu.memory_space<vmem>>, vector<1x16x128xf32>
    %1 = vector.shape_cast %0 : vector<1x16x128xf32> to vector<16x128xf32>
    %2 = tpu.iota {dimensions = array<i32: 0>} : vector<16x16xi32>
    %3 = tpu.iota {dimensions = array<i32: 1>} : vector<16x16xi32>
    %4 = arith.cmpi sle, %3, %2 : vector<16x16xi32>
    %5 = vector.shape_cast %4 : vector<16x16xi1> to vector<1x16x16xi1>
    %6 = arith.truncf %1 : vector<16x128xf32> to vector<16x128xbf16>
    %c0_2 = arith.constant 0 : index
    %c0_3 = arith.constant 0 : index
    %7 = vector.load %arg2[%c0_2, %c0_3] : memref<128x384xbf16, #tpu.memory_space<vmem>>, vector<128x384xbf16>
    %cst = arith.constant dense<0.000000e+00> : vector<16x384xf32>
    %8 = tpu.matmul %6, %7, %cst {dimension_numbers = #tpu.dot_dimension_numbers<[1], [0], [0], [1], [0, 0, 1, 1], [], []>} : vector<16x128xbf16>, vector<128x384xbf16>, vector<16x384xf32> -> vector<16x384xf32>
    %c0_4 = arith.constant 0 : index
    %c0_5 = arith.constant 0 : index
    %9 = vector.load %arg3[%c0_4, %c0_5] : memref<1x384xf32, #tpu.memory_space<vmem>>, vector<1x384xf32>
    %10 = vector.broadcast %9 : vector<1x384xf32> to vector<16x384xf32>
    %11 = arith.addf %8, %10 : vector<16x384xf32>
    %12 = vector.extract_strided_slice %11 {offsets = [0, 0], sizes = [16, 128], strides = [1, 1]} : vector<16x384xf32> to vector<16x128xf32>
    %cst_6 = arith.constant 0.0883883461 : f32
    %13 = vector.broadcast %cst_6 : f32 to vector<16x128xf32>
    %14 = arith.mulf %12, %13 : vector<16x128xf32>
    %15 = vector.shape_cast %14 : vector<16x128xf32> to vector<1x16x128xf32>
    %16 = arith.truncf %15 : vector<1x16x128xf32> to vector<1x16x128xbf16>
    %17 = vector.extract_strided_slice %11 {offsets = [0, 128], sizes = [16, 128], strides = [1, 1]} : vector<16x384xf32> to vector<16x128xf32>
    %18 = vector.shape_cast %17 : vector<16x128xf32> to vector<1x16x128xf32>
    %19 = arith.truncf %18 : vector<1x16x128xf32> to vector<1x16x128xbf16>
    %20 = vector.extract_strided_slice %11 {offsets = [0, 256], sizes = [16, 128], strides = [1, 1]} : vector<16x384xf32> to vector<16x128xf32>
    %21 = vector.shape_cast %20 : vector<16x128xf32> to vector<1x16x128xf32>
    %22 = arith.truncf %21 : vector<1x16x128xf32> to vector<1x16x128xbf16>
    "tpu.trace_start"() <{level = 10 : i32, message = "btd,bsd->bts"}> : () -> ()
    %cst_7 = arith.constant dense<0.000000e+00> : vector<1x16x16xf32>
    %23 = tpu.matmul %16, %19, %cst_7 {dimension_numbers = #tpu.dot_dimension_numbers<[2], [2], [1], [1], [0, 0, 0, 1, 1, 1], [0], [0]>} : vector<1x16x128xbf16>, vector<1x16x128xbf16>, vector<1x16x16xf32> -> vector<1x16x16xf32>
    %cst_8 = arith.constant -1.000000e+30 : f32
    "tpu.trace_stop"() : () -> ()
    %24 = vector.broadcast %cst_8 : f32 to vector<1x16x16xf32>
    %25 = arith.select %5, %23, %24 : vector<1x16x16xi1>, vector<1x16x16xf32>
    %cst_9 = arith.constant dense<0xFF800000> : vector<1x16xf32>
    %26 = vector.multi_reduction <maximumf>, %25, %cst_9 [2] : vector<1x16x16xf32> to vector<1x16xf32>
    %27 = vector.shape_cast %26 : vector<1x16xf32> to vector<1x16x1xf32>
    %28 = vector.broadcast %27 : vector<1x16x1xf32> to vector<1x16x16xf32>
    %29 = arith.subf %25, %28 : vector<1x16x16xf32>
    %30 = math.exp %29 : vector<1x16x16xf32>
    %cst_10 = arith.constant dense<0.000000e+00> : vector<1x16xf32>
    %31 = vector.multi_reduction <add>, %30, %cst_10 [2] : vector<1x16x16xf32> to vector<1x16xf32>
    %32 = vector.shape_cast %31 : vector<1x16xf32> to vector<1x16x1xf32>
    %33 = vector.broadcast %32 : vector<1x16x1xf32> to vector<1x16x16xf32>
    %34 = arith.divf %30, %33 : vector<1x16x16xf32>
    %35 = arith.truncf %34 : vector<1x16x16xf32> to vector<1x16x16xbf16>
    "tpu.trace_start"() <{level = 10 : i32, message = "bts,bsd->btd"}> : () -> ()
    %cst_11 = arith.constant dense<0.000000e+00> : vector<1x16x128xf32>
    %36 = tpu.matmul %35, %22, %cst_11 {dimension_numbers = #tpu.dot_dimension_numbers<[2], [1], [1], [2], [0, 0, 0, 1, 1, 2], [0], [0]>} : vector<1x16x16xbf16>, vector<1x16x128xbf16>, vector<1x16x128xf32> -> vector<1x16x128xf32>
    "tpu.trace_stop"() : () -> ()
    %37 = vector.shape_cast %36 : vector<1x16x128xf32> to vector<16x128xf32>
    %38 = arith.truncf %37 : vector<16x128xf32> to vector<16x128xbf16>
    %c0_12 = arith.constant 0 : index
    %c0_13 = arith.constant 0 : index
    %39 = vector.load %arg4[%c0_12, %c0_13] : memref<128x128xbf16, #tpu.memory_space<vmem>>, vector<128x128xbf16>
    %cst_14 = arith.constant dense<0.000000e+00> : vector<16x128xf32>
    %40 = tpu.matmul %38, %39, %cst_14 {dimension_numbers = #tpu.dot_dimension_numbers<[1], [0], [0], [1], [0, 0, 1, 1], [], []>} : vector<16x128xbf16>, vector<128x128xbf16>, vector<16x128xf32> -> vector<16x128xf32>
    %c0_15 = arith.constant 0 : index
    %c0_16 = arith.constant 0 : index
    %41 = vector.load %arg5[%c0_15, %c0_16] : memref<1x128xf32, #tpu.memory_space<vmem>>, vector<1x128xf32>
    %42 = vector.broadcast %41 : vector<1x128xf32> to vector<16x128xf32>
    %43 = arith.addf %40, %42 : vector<16x128xf32>
    %44 = arith.addf %1, %43 : vector<16x128xf32>
    %c0_17 = arith.constant 0 : index
    %c0_18 = arith.constant 0 : index
    %45 = vector.load %arg10[%c0_17, %c0_18] : memref<1x128xf32, #tpu.memory_space<vmem>>, vector<1x128xf32>
    %c0_19 = arith.constant 0 : index
    %c0_20 = arith.constant 0 : index
    %46 = vector.load %arg11[%c0_19, %c0_20] : memref<1x128xf32, #tpu.memory_space<vmem>>, vector<1x128xf32>
    %cst_21 = arith.constant dense<0.000000e+00> : vector<16xf32>
    %47 = vector.multi_reduction <add>, %44, %cst_21 [1] : vector<16x128xf32> to vector<16xf32>
    %48 = vector.shape_cast %47 : vector<16xf32> to vector<16x1xf32>
    %cst_22 = arith.constant 1.280000e+02 : f32
    %49 = vector.broadcast %cst_22 : f32 to vector<16x1xf32>
    %50 = arith.divf %48, %49 : vector<16x1xf32>
    %51 = vector.broadcast %50 : vector<16x1xf32> to vector<16x128xf32>
    %52 = arith.subf %44, %51 : vector<16x128xf32>
    %53 = arith.mulf %52, %52 : vector<16x128xf32>
    %cst_23 = arith.constant dense<0.000000e+00> : vector<16xf32>
    %54 = vector.multi_reduction <add>, %53, %cst_23 [1] : vector<16x128xf32> to vector<16xf32>
    %55 = vector.shape_cast %54 : vector<16xf32> to vector<16x1xf32>
    %cst_24 = arith.constant 1.280000e+02 : f32
    %56 = vector.broadcast %cst_24 : f32 to vector<16x1xf32>
    %57 = arith.divf %55, %56 : vector<16x1xf32>
    %58 = vector.broadcast %50 : vector<16x1xf32> to vector<16x128xf32>
    %59 = arith.subf %44, %58 : vector<16x128xf32>
    %cst_25 = arith.constant 9.99999974E-6 : f32
    %60 = vector.broadcast %cst_25 : f32 to vector<16x1xf32>
    %61 = arith.addf %57, %60 : vector<16x1xf32>
    %62 = math.rsqrt %61 : vector<16x1xf32>
    %63 = vector.broadcast %62 : vector<16x1xf32> to vector<16x128xf32>
    %64 = arith.mulf %59, %63 : vector<16x128xf32>
    %65 = vector.broadcast %45 : vector<1x128xf32> to vector<16x128xf32>
    %66 = arith.mulf %64, %65 : vector<16x128xf32>
    %67 = vector.broadcast %46 : vector<1x128xf32> to vector<16x128xf32>
    %68 = arith.addf %66, %67 : vector<16x128xf32>
    %69 = arith.truncf %68 : vector<16x128xf32> to vector<16x128xbf16>
    %c0_26 = arith.constant 0 : index
    %c0_27 = arith.constant 0 : index
    %70 = vector.load %arg6[%c0_26, %c0_27] : memref<128x256xbf16, #tpu.memory_space<vmem>>, vector<128x256xbf16>
    %cst_28 = arith.constant dense<0.000000e+00> : vector<16x256xf32>
    %71 = tpu.matmul %69, %70, %cst_28 {dimension_numbers = #tpu.dot_dimension_numbers<[1], [0], [0], [1], [0, 0, 1, 1], [], []>} : vector<16x128xbf16>, vector<128x256xbf16>, vector<16x256xf32> -> vector<16x256xf32>
    %c0_29 = arith.constant 0 : index
    %c0_30 = arith.constant 0 : index
    %72 = vector.load %arg7[%c0_29, %c0_30] : memref<1x256xf32, #tpu.memory_space<vmem>>, vector<1x256xf32>
    %73 = vector.broadcast %72 : vector<1x256xf32> to vector<16x256xf32>
    %74 = arith.addf %71, %73 : vector<16x256xf32>
    %cst_31 = arith.constant 0.000000e+00 : f32
    %75 = vector.broadcast %cst_31 : f32 to vector<16x256xf32>
    %76 = arith.maximumf %74, %75 : vector<16x256xf32>
    %77 = arith.truncf %76 : vector<16x256xf32> to vector<16x256xbf16>
    %c0_32 = arith.constant 0 : index
    %c0_33 = arith.constant 0 : index
    %78 = vector.load %arg8[%c0_32, %c0_33] : memref<256x128xbf16, #tpu.memory_space<vmem>>, vector<256x128xbf16>
    %cst_34 = arith.constant dense<0.000000e+00> : vector<16x128xf32>
    %79 = tpu.matmul %77, %78, %cst_34 {dimension_numbers = #tpu.dot_dimension_numbers<[1], [0], [0], [1], [0, 0, 1, 1], [], []>} : vector<16x256xbf16>, vector<256x128xbf16>, vector<16x128xf32> -> vector<16x128xf32>
    %c0_35 = arith.constant 0 : index
    %c0_36 = arith.constant 0 : index
    %80 = vector.load %arg9[%c0_35, %c0_36] : memref<1x128xf32, #tpu.memory_space<vmem>>, vector<1x128xf32>
    %81 = vector.broadcast %80 : vector<1x128xf32> to vector<16x128xf32>
    %82 = arith.addf %79, %81 : vector<16x128xf32>
    %83 = arith.addf %68, %82 : vector<16x128xf32>
    %c0_37 = arith.constant 0 : index
    %c0_38 = arith.constant 0 : index
    %84 = vector.load %arg12[%c0_37, %c0_38] : memref<1x128xf32, #tpu.memory_space<vmem>>, vector<1x128xf32>
    %c0_39 = arith.constant 0 : index
    %c0_40 = arith.constant 0 : index
    %85 = vector.load %arg13[%c0_39, %c0_40] : memref<1x128xf32, #tpu.memory_space<vmem>>, vector<1x128xf32>
    %cst_41 = arith.constant dense<0.000000e+00> : vector<16xf32>
    %86 = vector.multi_reduction <add>, %83, %cst_41 [1] : vector<16x128xf32> to vector<16xf32>
    %87 = vector.shape_cast %86 : vector<16xf32> to vector<16x1xf32>
    %cst_42 = arith.constant 1.280000e+02 : f32
    %88 = vector.broadcast %cst_42 : f32 to vector<16x1xf32>
    %89 = arith.divf %87, %88 : vector<16x1xf32>
    %90 = vector.broadcast %89 : vector<16x1xf32> to vector<16x128xf32>
    %91 = arith.subf %83, %90 : vector<16x128xf32>
    %92 = arith.mulf %91, %91 : vector<16x128xf32>
    %cst_43 = arith.constant dense<0.000000e+00> : vector<16xf32>
    %93 = vector.multi_reduction <add>, %92, %cst_43 [1] : vector<16x128xf32> to vector<16xf32>
    %94 = vector.shape_cast %93 : vector<16xf32> to vector<16x1xf32>
    %cst_44 = arith.constant 1.280000e+02 : f32
    %95 = vector.broadcast %cst_44 : f32 to vector<16x1xf32>
    %96 = arith.divf %94, %95 : vector<16x1xf32>
    %97 = vector.broadcast %89 : vector<16x1xf32> to vector<16x128xf32>
    %98 = arith.subf %83, %97 : vector<16x128xf32>
    %cst_45 = arith.constant 9.99999974E-6 : f32
    %99 = vector.broadcast %cst_45 : f32 to vector<16x1xf32>
    %100 = arith.addf %96, %99 : vector<16x1xf32>
    %101 = math.rsqrt %100 : vector<16x1xf32>
    %102 = vector.broadcast %101 : vector<16x1xf32> to vector<16x128xf32>
    %103 = arith.mulf %98, %102 : vector<16x128xf32>
    %104 = vector.broadcast %84 : vector<1x128xf32> to vector<16x128xf32>
    %105 = arith.mulf %103, %104 : vector<16x128xf32>
    %106 = vector.broadcast %85 : vector<1x128xf32> to vector<16x128xf32>
    %107 = arith.addf %105, %106 : vector<16x128xf32>
    %108 = arith.truncf %107 : vector<16x128xf32> to vector<16x128xbf16>
    %c0_46 = arith.constant 0 : index
    %c0_47 = arith.constant 0 : index
    %109 = vector.load %arg2[%c0_46, %c0_47] : memref<128x384xbf16, #tpu.memory_space<vmem>>, vector<128x384xbf16>
    %cst_48 = arith.constant dense<0.000000e+00> : vector<16x384xf32>
    %110 = tpu.matmul %108, %109, %cst_48 {dimension_numbers = #tpu.dot_dimension_numbers<[1], [0], [0], [1], [0, 0, 1, 1], [], []>} : vector<16x128xbf16>, vector<128x384xbf16>, vector<16x384xf32> -> vector<16x384xf32>
    %c0_49 = arith.constant 0 : index
    %c0_50 = arith.constant 0 : index
    %111 = vector.load %arg3[%c0_49, %c0_50] : memref<1x384xf32, #tpu.memory_space<vmem>>, vector<1x384xf32>
    %112 = vector.broadcast %111 : vector<1x384xf32> to vector<16x384xf32>
    %113 = arith.addf %110, %112 : vector<16x384xf32>
    %114 = vector.extract_strided_slice %113 {offsets = [0, 0], sizes = [16, 128], strides = [1, 1]} : vector<16x384xf32> to vector<16x128xf32>
    %cst_51 = arith.constant 0.0883883461 : f32
    %115 = vector.broadcast %cst_51 : f32 to vector<16x128xf32>
    %116 = arith.mulf %114, %115 : vector<16x128xf32>
    %117 = vector.shape_cast %116 : vector<16x128xf32> to vector<1x16x128xf32>
    %118 = arith.truncf %117 : vector<1x16x128xf32> to vector<1x16x128xbf16>
    %119 = vector.extract_strided_slice %113 {offsets = [0, 128], sizes = [16, 128], strides = [1, 1]} : vector<16x384xf32> to vector<16x128xf32>
    %120 = vector.shape_cast %119 : vector<16x128xf32> to vector<1x16x128xf32>
    %121 = arith.truncf %120 : vector<1x16x128xf32> to vector<1x16x128xbf16>
    %122 = vector.extract_strided_slice %113 {offsets = [0, 256], sizes = [16, 128], strides = [1, 1]} : vector<16x384xf32> to vector<16x128xf32>
    %123 = vector.shape_cast %122 : vector<16x128xf32> to vector<1x16x128xf32>
    %124 = arith.truncf %123 : vector<1x16x128xf32> to vector<1x16x128xbf16>
    "tpu.trace_start"() <{level = 10 : i32, message = "btd,bsd->bts"}> : () -> ()
    %cst_52 = arith.constant dense<0.000000e+00> : vector<1x16x16xf32>
    %125 = tpu.matmul %118, %121, %cst_52 {dimension_numbers = #tpu.dot_dimension_numbers<[2], [2], [1], [1], [0, 0, 0, 1, 1, 1], [0], [0]>} : vector<1x16x128xbf16>, vector<1x16x128xbf16>, vector<1x16x16xf32> -> vector<1x16x16xf32>
    %cst_53 = arith.constant -1.000000e+30 : f32
    "tpu.trace_stop"() : () -> ()
    %126 = vector.broadcast %cst_53 : f32 to vector<1x16x16xf32>
    %127 = arith.select %5, %125, %126 : vector<1x16x16xi1>, vector<1x16x16xf32>
    %cst_54 = arith.constant dense<0xFF800000> : vector<1x16xf32>
    %128 = vector.multi_reduction <maximumf>, %127, %cst_54 [2] : vector<1x16x16xf32> to vector<1x16xf32>
    %129 = vector.shape_cast %128 : vector<1x16xf32> to vector<1x16x1xf32>
    %130 = vector.broadcast %129 : vector<1x16x1xf32> to vector<1x16x16xf32>
    %131 = arith.subf %127, %130 : vector<1x16x16xf32>
    %132 = math.exp %131 : vector<1x16x16xf32>
    %cst_55 = arith.constant dense<0.000000e+00> : vector<1x16xf32>
    %133 = vector.multi_reduction <add>, %132, %cst_55 [2] : vector<1x16x16xf32> to vector<1x16xf32>
    %134 = vector.shape_cast %133 : vector<1x16xf32> to vector<1x16x1xf32>
    %135 = vector.broadcast %134 : vector<1x16x1xf32> to vector<1x16x16xf32>
    %136 = arith.divf %132, %135 : vector<1x16x16xf32>
    %137 = arith.truncf %136 : vector<1x16x16xf32> to vector<1x16x16xbf16>
    "tpu.trace_start"() <{level = 10 : i32, message = "bts,bsd->btd"}> : () -> ()
    %cst_56 = arith.constant dense<0.000000e+00> : vector<1x16x128xf32>
    %138 = tpu.matmul %137, %124, %cst_56 {dimension_numbers = #tpu.dot_dimension_numbers<[2], [1], [1], [2], [0, 0, 0, 1, 1, 2], [0], [0]>} : vector<1x16x16xbf16>, vector<1x16x128xbf16>, vector<1x16x128xf32> -> vector<1x16x128xf32>
    "tpu.trace_stop"() : () -> ()
    %139 = vector.shape_cast %138 : vector<1x16x128xf32> to vector<16x128xf32>
    %140 = arith.truncf %139 : vector<16x128xf32> to vector<16x128xbf16>
    %c0_57 = arith.constant 0 : index
    %c0_58 = arith.constant 0 : index
    %141 = vector.load %arg4[%c0_57, %c0_58] : memref<128x128xbf16, #tpu.memory_space<vmem>>, vector<128x128xbf16>
    %cst_59 = arith.constant dense<0.000000e+00> : vector<16x128xf32>
    %142 = tpu.matmul %140, %141, %cst_59 {dimension_numbers = #tpu.dot_dimension_numbers<[1], [0], [0], [1], [0, 0, 1, 1], [], []>} : vector<16x128xbf16>, vector<128x128xbf16>, vector<16x128xf32> -> vector<16x128xf32>
    %c0_60 = arith.constant 0 : index
    %c0_61 = arith.constant 0 : index
    %143 = vector.load %arg5[%c0_60, %c0_61] : memref<1x128xf32, #tpu.memory_space<vmem>>, vector<1x128xf32>
    %144 = vector.broadcast %143 : vector<1x128xf32> to vector<16x128xf32>
    %145 = arith.addf %142, %144 : vector<16x128xf32>
    %146 = arith.addf %107, %145 : vector<16x128xf32>
    %c0_62 = arith.constant 0 : index
    %c0_63 = arith.constant 0 : index
    %147 = vector.load %arg10[%c0_62, %c0_63] : memref<1x128xf32, #tpu.memory_space<vmem>>, vector<1x128xf32>
    %c0_64 = arith.constant 0 : index
    %c0_65 = arith.constant 0 : index
    %148 = vector.load %arg11[%c0_64, %c0_65] : memref<1x128xf32, #tpu.memory_space<vmem>>, vector<1x128xf32>
    %cst_66 = arith.constant dense<0.000000e+00> : vector<16xf32>
    %149 = vector.multi_reduction <add>, %146, %cst_66 [1] : vector<16x128xf32> to vector<16xf32>
    %150 = vector.shape_cast %149 : vector<16xf32> to vector<16x1xf32>
    %cst_67 = arith.constant 1.280000e+02 : f32
    %151 = vector.broadcast %cst_67 : f32 to vector<16x1xf32>
    %152 = arith.divf %150, %151 : vector<16x1xf32>
    %153 = vector.broadcast %152 : vector<16x1xf32> to vector<16x128xf32>
    %154 = arith.subf %146, %153 : vector<16x128xf32>
    %155 = arith.mulf %154, %154 : vector<16x128xf32>
    %cst_68 = arith.constant dense<0.000000e+00> : vector<16xf32>
    %156 = vector.multi_reduction <add>, %155, %cst_68 [1] : vector<16x128xf32> to vector<16xf32>
    %157 = vector.shape_cast %156 : vector<16xf32> to vector<16x1xf32>
    %cst_69 = arith.constant 1.280000e+02 : f32
    %158 = vector.broadcast %cst_69 : f32 to vector<16x1xf32>
    %159 = arith.divf %157, %158 : vector<16x1xf32>
    %160 = vector.broadcast %152 : vector<16x1xf32> to vector<16x128xf32>
    %161 = arith.subf %146, %160 : vector<16x128xf32>
    %cst_70 = arith.constant 9.99999974E-6 : f32
    %162 = vector.broadcast %cst_70 : f32 to vector<16x1xf32>
    %163 = arith.addf %159, %162 : vector<16x1xf32>
    %164 = math.rsqrt %163 : vector<16x1xf32>
    %165 = vector.broadcast %164 : vector<16x1xf32> to vector<16x128xf32>
    %166 = arith.mulf %161, %165 : vector<16x128xf32>
    %167 = vector.broadcast %147 : vector<1x128xf32> to vector<16x128xf32>
    %168 = arith.mulf %166, %167 : vector<16x128xf32>
    %169 = vector.broadcast %148 : vector<1x128xf32> to vector<16x128xf32>
    %170 = arith.addf %168, %169 : vector<16x128xf32>
    %171 = arith.truncf %170 : vector<16x128xf32> to vector<16x128xbf16>
    %c0_71 = arith.constant 0 : index
    %c0_72 = arith.constant 0 : index
    %172 = vector.load %arg6[%c0_71, %c0_72] : memref<128x256xbf16, #tpu.memory_space<vmem>>, vector<128x256xbf16>
    %cst_73 = arith.constant dense<0.000000e+00> : vector<16x256xf32>
    %173 = tpu.matmul %171, %172, %cst_73 {dimension_numbers = #tpu.dot_dimension_numbers<[1], [0], [0], [1], [0, 0, 1, 1], [], []>} : vector<16x128xbf16>, vector<128x256xbf16>, vector<16x256xf32> -> vector<16x256xf32>
    %c0_74 = arith.constant 0 : index
    %c0_75 = arith.constant 0 : index
    %174 = vector.load %arg7[%c0_74, %c0_75] : memref<1x256xf32, #tpu.memory_space<vmem>>, vector<1x256xf32>
    %175 = vector.broadcast %174 : vector<1x256xf32> to vector<16x256xf32>
    %176 = arith.addf %173, %175 : vector<16x256xf32>
    %cst_76 = arith.constant 0.000000e+00 : f32
    %177 = vector.broadcast %cst_76 : f32 to vector<16x256xf32>
    %178 = arith.maximumf %176, %177 : vector<16x256xf32>
    %179 = arith.truncf %178 : vector<16x256xf32> to vector<16x256xbf16>
    %c0_77 = arith.constant 0 : index
    %c0_78 = arith.constant 0 : index
    %180 = vector.load %arg8[%c0_77, %c0_78] : memref<256x128xbf16, #tpu.memory_space<vmem>>, vector<256x128xbf16>
    %cst_79 = arith.constant dense<0.000000e+00> : vector<16x128xf32>
    %181 = tpu.matmul %179, %180, %cst_79 {dimension_numbers = #tpu.dot_dimension_numbers<[1], [0], [0], [1], [0, 0, 1, 1], [], []>} : vector<16x256xbf16>, vector<256x128xbf16>, vector<16x128xf32> -> vector<16x128xf32>
    %c0_80 = arith.constant 0 : index
    %c0_81 = arith.constant 0 : index
    %182 = vector.load %arg9[%c0_80, %c0_81] : memref<1x128xf32, #tpu.memory_space<vmem>>, vector<1x128xf32>
    %183 = vector.broadcast %182 : vector<1x128xf32> to vector<16x128xf32>
    %184 = arith.addf %181, %183 : vector<16x128xf32>
    %185 = arith.addf %170, %184 : vector<16x128xf32>
    %c0_82 = arith.constant 0 : index
    %c0_83 = arith.constant 0 : index
    %186 = vector.load %arg12[%c0_82, %c0_83] : memref<1x128xf32, #tpu.memory_space<vmem>>, vector<1x128xf32>
    %c0_84 = arith.constant 0 : index
    %c0_85 = arith.constant 0 : index
    %187 = vector.load %arg13[%c0_84, %c0_85] : memref<1x128xf32, #tpu.memory_space<vmem>>, vector<1x128xf32>
    %cst_86 = arith.constant dense<0.000000e+00> : vector<16xf32>
    %188 = vector.multi_reduction <add>, %185, %cst_86 [1] : vector<16x128xf32> to vector<16xf32>
    %189 = vector.shape_cast %188 : vector<16xf32> to vector<16x1xf32>
    %cst_87 = arith.constant 1.280000e+02 : f32
    %190 = vector.broadcast %cst_87 : f32 to vector<16x1xf32>
    %191 = arith.divf %189, %190 : vector<16x1xf32>
    %192 = vector.broadcast %191 : vector<16x1xf32> to vector<16x128xf32>
    %193 = arith.subf %185, %192 : vector<16x128xf32>
    %194 = arith.mulf %193, %193 : vector<16x128xf32>
    %cst_88 = arith.constant dense<0.000000e+00> : vector<16xf32>
    %195 = vector.multi_reduction <add>, %194, %cst_88 [1] : vector<16x128xf32> to vector<16xf32>
    %196 = vector.shape_cast %195 : vector<16xf32> to vector<16x1xf32>
    %cst_89 = arith.constant 1.280000e+02 : f32
    %197 = vector.broadcast %cst_89 : f32 to vector<16x1xf32>
    %198 = arith.divf %196, %197 : vector<16x1xf32>
    %199 = vector.broadcast %191 : vector<16x1xf32> to vector<16x128xf32>
    %200 = arith.subf %185, %199 : vector<16x128xf32>
    %cst_90 = arith.constant 9.99999974E-6 : f32
    %201 = vector.broadcast %cst_90 : f32 to vector<16x1xf32>
    %202 = arith.addf %198, %201 : vector<16x1xf32>
    %203 = math.rsqrt %202 : vector<16x1xf32>
    %204 = vector.broadcast %203 : vector<16x1xf32> to vector<16x128xf32>
    %205 = arith.mulf %200, %204 : vector<16x128xf32>
    %206 = vector.broadcast %186 : vector<1x128xf32> to vector<16x128xf32>
    %207 = arith.mulf %205, %206 : vector<16x128xf32>
    %208 = vector.broadcast %187 : vector<1x128xf32> to vector<16x128xf32>
    %209 = arith.addf %207, %208 : vector<16x128xf32>
    %210 = vector.shape_cast %209 : vector<16x128xf32> to vector<1x16x128xf32>
    %c0_91 = arith.constant 0 : index
    %c0_92 = arith.constant 0 : index
    %c0_93 = arith.constant 0 : index
    %211 = vector.load %arg14[%c0_91, %c0_92, %c0_93] : memref<1x16x128xf32, #tpu.memory_space<vmem>>, vector<1x16x128xf32>
    tpu.vector_store %arg14[%c0_91, %c0_92, %c0_93], %210 {strides = array<i32>} : memref<1x16x128xf32, #tpu.memory_space<vmem>>, vector<1x16x128xf32>,
    return
  }
  func.func @transform_0(%arg0: i32) -> (i32, i32, i32) {
    %c0_i32 = arith.constant 0 : i32
    %c0_i32_0 = arith.constant 0 : i32
    %c0_i32_1 = arith.constant 0 : i32
    return %arg0, %c0_i32, %c0_i32_0 : i32, i32, i32
  }
  func.func @transform_1(%arg0: i32) -> (i32, i32) {
    %c0_i32 = arith.constant 0 : i32
    %c0_i32_0 = arith.constant 0 : i32
    %c0_i32_1 = arith.constant 0 : i32
    return %c0_i32, %c0_i32_0 : i32, i32
  }
  func.func @transform_2(%arg0: i32) -> (i32, i32) {
    %c0_i32 = arith.constant 0 : i32
    %c0_i32_0 = arith.constant 0 : i32
    %c0_i32_1 = arith.constant 0 : i32
    return %c0_i32, %c0_i32_0 : i32, i32
  }
  func.func @transform_3(%arg0: i32) -> (i32, i32) {
    %c0_i32 = arith.constant 0 : i32
    %c0_i32_0 = arith.constant 0 : i32
    %c0_i32_1 = arith.constant 0 : i32
    return %c0_i32, %c0_i32_0 : i32, i32
  }
  func.func @transform_4(%arg0: i32) -> (i32, i32) {
    %c0_i32 = arith.constant 0 : i32
    %c0_i32_0 = arith.constant 0 : i32
    %c0_i32_1 = arith.constant 0 : i32
    return %c0_i32, %c0_i32_0 : i32, i32
  }
  func.func @transform_5(%arg0: i32) -> (i32, i32) {
    %c0_i32 = arith.constant 0 : i32
    %c0_i32_0 = arith.constant 0 : i32
    %c0_i32_1 = arith.constant 0 : i32
    return %c0_i32, %c0_i32_0 : i32, i32
  }
  func.func @transform_6(%arg0: i32) -> (i32, i32) {
    %c0_i32 = arith.constant 0 : i32
    %c0_i32_0 = arith.constant 0 : i32
    %c0_i32_1 = arith.constant 0 : i32
    return %c0_i32, %c0_i32_0 : i32, i32
  }
  func.func @transform_7(%arg0: i32) -> (i32, i32) {
    %c0_i32 = arith.constant 0 : i32
    %c0_i32_0 = arith.constant 0 : i32
    %c0_i32_1 = arith.constant 0 : i32
    return %c0_i32, %c0_i32_0 : i32, i32
  }
  func.func @transform_8(%arg0: i32) -> (i32, i32) {
    %c0_i32 = arith.constant 0 : i32
    %c0_i32_0 = arith.constant 0 : i32
    %c0_i32_1 = arith.constant 0 : i32
    return %c0_i32, %c0_i32_0 : i32, i32
  }
  func.func @transform_9(%arg0: i32) -> (i32, i32) {
    %c0_i32 = arith.constant 0 : i32
    %c0_i32_0 = arith.constant 0 : i32
    %c0_i32_1 = arith.constant 0 : i32
    return %c0_i32, %c0_i32_0 : i32, i32
  }
  func.func @transform_10(%arg0: i32) -> (i32, i32) {
    %c0_i32 = arith.constant 0 : i32
    %c0_i32_0 = arith.constant 0 : i32
    %c0_i32_1 = arith.constant 0 : i32
    return %c0_i32, %c0_i32_0 : i32, i32
  }
  func.func @transform_11(%arg0: i32) -> (i32, i32) {
    %c0_i32 = arith.constant 0 : i32
    %c0_i32_0 = arith.constant 0 : i32
    %c0_i32_1 = arith.constant 0 : i32
    return %c0_i32, %c0_i32_0 : i32, i32
  }
  func.func @transform_12(%arg0: i32) -> (i32, i32) {
    %c0_i32 = arith.constant 0 : i32
    %c0_i32_0 = arith.constant 0 : i32
    %c0_i32_1 = arith.constant 0 : i32
    return %c0_i32, %c0_i32_0 : i32, i32
  }
  func.func @transform_13(%arg0: i32) -> (i32, i32, i32) {
    %c0_i32 = arith.constant 0 : i32
    %c0_i32_0 = arith.constant 0 : i32
    %c0_i32_1 = arith.constant 0 : i32
    return %arg0, %c0_i32, %c0_i32_0 : i32, i32, i32
  }
}

module attributes {stable_mosaic.version = 11 : i64} {
  func.func @_fused_layers_kernel(%arg0: i32, %arg1: memref<1x16x128xf32, #tpu.memory_space<vmem>>, %arg2: memref<128x384xbf16, #tpu.memory_space<vmem>>, %arg3: memref<1x384xf32, #tpu.memory_space<vmem>>, %arg4: memref<128x128xbf16, #tpu.memory_space<vmem>>, %arg5: memref<1x128xf32, #tpu.memory_space<vmem>>, %arg6: memref<128x256xbf16, #tpu.memory_space<vmem>>, %arg7: memref<1x256xf32, #tpu.memory_space<vmem>>, %arg8: memref<256x128xbf16, #tpu.memory_space<vmem>>, %arg9: memref<1x128xf32, #tpu.memory_space<vmem>>, %arg10: memref<1x128xf32, #tpu.memory_space<vmem>>, %arg11: memref<1x128xf32, #tpu.memory_space<vmem>>, %arg12: memref<1x128xf32, #tpu.memory_space<vmem>>, %arg13: memref<1x128xf32, #tpu.memory_space<vmem>>, %arg14: memref<1x16x128xf32, #tpu.memory_space<vmem>>) attributes {dimension_semantics = [#tpu.dimension_semantics<parallel>], iteration_bounds = array<i64: 2>, scalar_prefetch = 0 : i64, scratch_operands = 0 : i64, tpu.core_type = #tpu.core_type<tc>, window_params = [{transform_indices = @transform_0, window_bounds = array<i64: 1, 16, 128>}, {pipeline_mode = #tpu.pipeline_mode<synchronous>, transform_indices = @transform_1, window_bounds = array<i64: 128, 384>}, {pipeline_mode = #tpu.pipeline_mode<synchronous>, transform_indices = @transform_2, window_bounds = array<i64: 1, 384>}, {pipeline_mode = #tpu.pipeline_mode<synchronous>, transform_indices = @transform_3, window_bounds = array<i64: 128, 128>}, {pipeline_mode = #tpu.pipeline_mode<synchronous>, transform_indices = @transform_4, window_bounds = array<i64: 1, 128>}, {pipeline_mode = #tpu.pipeline_mode<synchronous>, transform_indices = @transform_5, window_bounds = array<i64: 128, 256>}, {pipeline_mode = #tpu.pipeline_mode<synchronous>, transform_indices = @transform_6, window_bounds = array<i64: 1, 256>}, {pipeline_mode = #tpu.pipeline_mode<synchronous>, transform_indices = @transform_7, window_bounds = array<i64: 256, 128>}, {pipeline_mode = #tpu.pipeline_mode<synchronous>, transform_indices = @transform_8, window_bounds = array<i64: 1, 128>}, {pipeline_mode = #tpu.pipeline_mode<synchronous>, transform_indices = @transform_9, window_bounds = array<i64: 1, 128>}, {pipeline_mode = #tpu.pipeline_mode<synchronous>, transform_indices = @transform_10, window_bounds = array<i64: 1, 128>}, {pipeline_mode = #tpu.pipeline_mode<synchronous>, transform_indices = @transform_11, window_bounds = array<i64: 1, 128>}, {pipeline_mode = #tpu.pipeline_mode<synchronous>, transform_indices = @transform_12, window_bounds = array<i64: 1, 128>}, {transform_indices = @transform_13, window_bounds = array<i64: 1, 16, 128>}]} {
    %c0 = arith.constant 0 : index
    %c0_0 = arith.constant 0 : index
    %c0_1 = arith.constant 0 : index
    %0 = vector.load %arg1[%c0, %c0_0, %c0_1] : memref<1x16x128xf32, #tpu.memory_space<vmem>>, vector<1x16x128xf32>
    %1 = vector.shape_cast %0 : vector<1x16x128xf32> to vector<16x128xf32>
    %2 = tpu.iota {dimensions = array<i32: 0>} : vector<16x16xi32>
    %3 = tpu.iota {dimensions = array<i32: 1>} : vector<16x16xi32>
    %4 = arith.cmpi sle, %3, %2 : vector<16x16xi32>
    %5 = vector.shape_cast %4 : vector<16x16xi1> to vector<1x16x16xi1>
    %6 = arith.truncf %1 : vector<16x128xf32> to vector<16x128xbf16>
    %c0_2 = arith.constant 0 : index
    %c0_3 = arith.constant 0 : index
    %7 = vector.load %arg2[%c0_2, %c0_3] : memref<128x384xbf16, #tpu.memory_space<vmem>>, vector<128x384xbf16>
    %cst = arith.constant dense<0.000000e+00> : vector<16x384xf32>
    %8 = tpu.matmul %6, %7, %cst {dimension_numbers = #tpu.dot_dimension_numbers<[1], [0], [0], [1], [0, 0, 1, 1], [], []>} : vector<16x128xbf16>, vector<128x384xbf16>, vector<16x384xf32> -> vector<16x384xf32>
    %c0_4 = arith.constant 0 : index
    %c0_5 = arith.constant 0 : index
    %9 = vector.load %arg3[%c0_4, %c0_5] : memref<1x384xf32, #tpu.memory_space<vmem>>, vector<1x384xf32>
    %10 = vector.broadcast %9 : vector<1x384xf32> to vector<16x384xf32>
    %11 = arith.addf %8, %10 : vector<16x384xf32>
    %12 = vector.extract_strided_slice %11 {offsets = [0, 0], sizes = [16, 128], strides = [1, 1]} : vector<16x384xf32> to vector<16x128xf32>
    %cst_6 = arith.constant 0.0883883461 : f32
    %13 = vector.broadcast %cst_6 : f32 to vector<16x128xf32>
    %14 = arith.mulf %12, %13 : vector<16x128xf32>
    %15 = vector.shape_cast %14 : vector<16x128xf32> to vector<1x16x128xf32>
    %16 = arith.truncf %15 : vector<1x16x128xf32> to vector<1x16x128xbf16>
    %17 = vector.extract_strided_slice %11 {offsets = [0, 128], sizes = [16, 128], strides = [1, 1]} : vector<16x384xf32> to vector<16x128xf32>
    %18 = vector.shape_cast %17 : vector<16x128xf32> to vector<1x16x128xf32>
    %19 = arith.truncf %18 : vector<1x16x128xf32> to vector<1x16x128xbf16>
    %20 = vector.extract_strided_slice %11 {offsets = [0, 256], sizes = [16, 128], strides = [1, 1]} : vector<16x384xf32> to vector<16x128xf32>
    %21 = vector.shape_cast %20 : vector<16x128xf32> to vector<1x16x128xf32>
    %22 = arith.truncf %21 : vector<1x16x128xf32> to vector<1x16x128xbf16>
    "tpu.trace_start"() <{level = 10 : i32, message = "btd,bsd->bts"}> : () -> ()
    %cst_7 = arith.constant dense<0.000000e+00> : vector<1x16x16xf32>
    %23 = tpu.matmul %16, %19, %cst_7 {dimension_numbers = #tpu.dot_dimension_numbers<[2], [2], [1], [1], [0, 0, 0, 1, 1, 1], [0], [0]>} : vector<1x16x128xbf16>, vector<1x16x128xbf16>, vector<1x16x16xf32> -> vector<1x16x16xf32>
    %cst_8 = arith.constant -1.000000e+30 : f32
    "tpu.trace_stop"() : () -> ()
    %24 = vector.broadcast %cst_8 : f32 to vector<1x16x16xf32>
    %25 = arith.select %5, %23, %24 : vector<1x16x16xi1>, vector<1x16x16xf32>
    %cst_9 = arith.constant dense<0xFF800000> : vector<1x16xf32>
    %26 = vector.multi_reduction <maximumf>, %25, %cst_9 [2] : vector<1x16x16xf32> to vector<1x16xf32>
    %27 = vector.shape_cast %26 : vector<1x16xf32> to vector<1x16x1xf32>
    %28 = vector.broadcast %27 : vector<1x16x1xf32> to vector<1x16x16xf32>
    %29 = arith.subf %25, %28 : vector<1x16x16xf32>
    %30 = math.exp %29 : vector<1x16x16xf32>
    %cst_10 = arith.constant dense<0.000000e+00> : vector<1x16xf32>
    %31 = vector.multi_reduction <add>, %30, %cst_10 [2] : vector<1x16x16xf32> to vector<1x16xf32>
    %32 = vector.shape_cast %31 : vector<1x16xf32> to vector<1x16x1xf32>
    %33 = vector.broadcast %32 : vector<1x16x1xf32> to vector<1x16x16xf32>
    %34 = arith.divf %30, %33 : vector<1x16x16xf32>
    %35 = arith.truncf %34 : vector<1x16x16xf32> to vector<1x16x16xbf16>
    "tpu.trace_start"() <{level = 10 : i32, message = "bts,bsd->btd"}> : () -> ()
    %cst_11 = arith.constant dense<0.000000e+00> : vector<1x16x128xf32>
    %36 = tpu.matmul %35, %22, %cst_11 {dimension_numbers = #tpu.dot_dimension_numbers<[2], [1], [1], [2], [0, 0, 0, 1, 1, 2], [0], [0]>} : vector<1x16x16xbf16>, vector<1x16x128xbf16>, vector<1x16x128xf32> -> vector<1x16x128xf32>
    "tpu.trace_stop"() : () -> ()
    %37 = vector.shape_cast %36 : vector<1x16x128xf32> to vector<16x128xf32>
    %38 = arith.truncf %37 : vector<16x128xf32> to vector<16x128xbf16>
    %c0_12 = arith.constant 0 : index
    %c0_13 = arith.constant 0 : index
    %39 = vector.load %arg4[%c0_12, %c0_13] : memref<128x128xbf16, #tpu.memory_space<vmem>>, vector<128x128xbf16>
    %cst_14 = arith.constant dense<0.000000e+00> : vector<16x128xf32>
    %40 = tpu.matmul %38, %39, %cst_14 {dimension_numbers = #tpu.dot_dimension_numbers<[1], [0], [0], [1], [0, 0, 1, 1], [], []>} : vector<16x128xbf16>, vector<128x128xbf16>, vector<16x128xf32> -> vector<16x128xf32>
    %c0_15 = arith.constant 0 : index
    %c0_16 = arith.constant 0 : index
    %41 = vector.load %arg5[%c0_15, %c0_16] : memref<1x128xf32, #tpu.memory_space<vmem>>, vector<1x128xf32>
    %42 = vector.broadcast %41 : vector<1x128xf32> to vector<16x128xf32>
    %43 = arith.addf %40, %42 : vector<16x128xf32>
    %44 = arith.addf %1, %43 : vector<16x128xf32>
    %c0_17 = arith.constant 0 : index
    %c0_18 = arith.constant 0 : index
    %45 = vector.load %arg10[%c0_17, %c0_18] : memref<1x128xf32, #tpu.memory_space<vmem>>, vector<1x128xf32>
    %c0_19 = arith.constant 0 : index
    %c0_20 = arith.constant 0 : index
    %46 = vector.load %arg11[%c0_19, %c0_20] : memref<1x128xf32, #tpu.memory_space<vmem>>, vector<1x128xf32>
    %cst_21 = arith.constant dense<0.000000e+00> : vector<16xf32>
    %47 = vector.multi_reduction <add>, %44, %cst_21 [1] : vector<16x128xf32> to vector<16xf32>
    %48 = vector.shape_cast %47 : vector<16xf32> to vector<16x1xf32>
    %cst_22 = arith.constant 1.280000e+02 : f32
    %49 = vector.broadcast %cst_22 : f32 to vector<16x1xf32>
    %50 = arith.divf %48, %49 : vector<16x1xf32>
    %51 = vector.broadcast %50 : vector<16x1xf32> to vector<16x128xf32>
    %52 = arith.subf %44, %51 : vector<16x128xf32>
    %53 = arith.mulf %52, %52 : vector<16x128xf32>
    %cst_23 = arith.constant dense<0.000000e+00> : vector<16xf32>
    %54 = vector.multi_reduction <add>, %53, %cst_23 [1] : vector<16x128xf32> to vector<16xf32>
    %55 = vector.shape_cast %54 : vector<16xf32> to vector<16x1xf32>
    %cst_24 = arith.constant 1.280000e+02 : f32
    %56 = vector.broadcast %cst_24 : f32 to vector<16x1xf32>
    %57 = arith.divf %55, %56 : vector<16x1xf32>
    %58 = vector.broadcast %50 : vector<16x1xf32> to vector<16x128xf32>
    %59 = arith.subf %44, %58 : vector<16x128xf32>
    %cst_25 = arith.constant 9.99999974E-6 : f32
    %60 = vector.broadcast %cst_25 : f32 to vector<16x1xf32>
    %61 = arith.addf %57, %60 : vector<16x1xf32>
    %62 = math.rsqrt %61 : vector<16x1xf32>
    %63 = vector.broadcast %62 : vector<16x1xf32> to vector<16x128xf32>
    %64 = arith.mulf %59, %63 : vector<16x128xf32>
    %65 = vector.broadcast %45 : vector<1x128xf32> to vector<16x128xf32>
    %66 = arith.mulf %64, %65 : vector<16x128xf32>
    %67 = vector.broadcast %46 : vector<1x128xf32> to vector<16x128xf32>
    %68 = arith.addf %66, %67 : vector<16x128xf32>
    %69 = arith.truncf %68 : vector<16x128xf32> to vector<16x128xbf16>
    %c0_26 = arith.constant 0 : index
    %c0_27 = arith.constant 0 : index
    %70 = vector.load %arg6[%c0_26, %c0_27] : memref<128x256xbf16, #tpu.memory_space<vmem>>, vector<128x256xbf16>
    %cst_28 = arith.constant dense<0.000000e+00> : vector<16x256xf32>
    %71 = tpu.matmul %69, %70, %cst_28 {dimension_numbers = #tpu.dot_dimension_numbers<[1], [0], [0], [1], [0, 0, 1, 1], [], []>} : vector<16x128xbf16>, vector<128x256xbf16>, vector<16x256xf32> -> vector<16x256xf32>
    %c0_29 = arith.constant 0 : index
    %c0_30 = arith.constant 0 : index
    %72 = vector.load %arg7[%c0_29, %c0_30] : memref<1x256xf32, #tpu.memory_space<vmem>>, vector<1x256xf32>
    %73 = vector.broadcast %72 : vector<1x256xf32> to vector<16x256xf32>
    %74 = arith.addf %71, %73 : vector<16x256xf32>
    %cst_31 = arith.constant 0.000000e+00 : f32
    %75 = vector.broadcast %cst_31 : f32 to vector<16x256xf32>
    %76 = arith.maximumf %74, %75 : vector<16x256xf32>
    %77 = arith.truncf %76 : vector<16x256xf32> to vector<16x256xbf16>
    %c0_32 = arith.constant 0 : index
    %c0_33 = arith.constant 0 : index
    %78 = vector.load %arg8[%c0_32, %c0_33] : memref<256x128xbf16, #tpu.memory_space<vmem>>, vector<256x128xbf16>
    %cst_34 = arith.constant dense<0.000000e+00> : vector<16x128xf32>
    %79 = tpu.matmul %77, %78, %cst_34 {dimension_numbers = #tpu.dot_dimension_numbers<[1], [0], [0], [1], [0, 0, 1, 1], [], []>} : vector<16x256xbf16>, vector<256x128xbf16>, vector<16x128xf32> -> vector<16x128xf32>
    %c0_35 = arith.constant 0 : index
    %c0_36 = arith.constant 0 : index
    %80 = vector.load %arg9[%c0_35, %c0_36] : memref<1x128xf32, #tpu.memory_space<vmem>>, vector<1x128xf32>
    %81 = vector.broadcast %80 : vector<1x128xf32> to vector<16x128xf32>
    %82 = arith.addf %79, %81 : vector<16x128xf32>
    %83 = arith.addf %68, %82 : vector<16x128xf32>
    %c0_37 = arith.constant 0 : index
    %c0_38 = arith.constant 0 : index
    %84 = vector.load %arg12[%c0_37, %c0_38] : memref<1x128xf32, #tpu.memory_space<vmem>>, vector<1x128xf32>
    %c0_39 = arith.constant 0 : index
    %c0_40 = arith.constant 0 : index
    %85 = vector.load %arg13[%c0_39, %c0_40] : memref<1x128xf32, #tpu.memory_space<vmem>>, vector<1x128xf32>
    %cst_41 = arith.constant dense<0.000000e+00> : vector<16xf32>
    %86 = vector.multi_reduction <add>, %83, %cst_41 [1] : vector<16x128xf32> to vector<16xf32>
    %87 = vector.shape_cast %86 : vector<16xf32> to vector<16x1xf32>
    %cst_42 = arith.constant 1.280000e+02 : f32
    %88 = vector.broadcast %cst_42 : f32 to vector<16x1xf32>
    %89 = arith.divf %87, %88 : vector<16x1xf32>
    %90 = vector.broadcast %89 : vector<16x1xf32> to vector<16x128xf32>
    %91 = arith.subf %83, %90 : vector<16x128xf32>
    %92 = arith.mulf %91, %91 : vector<16x128xf32>
    %cst_43 = arith.constant dense<0.000000e+00> : vector<16xf32>
    %93 = vector.multi_reduction <add>, %92, %cst_43 [1] : vector<16x128xf32> to vector<16xf32>
    %94 = vector.shape_cast %93 : vector<16xf32> to vector<16x1xf32>
    %cst_44 = arith.constant 1.280000e+02 : f32
    %95 = vector.broadcast %cst_44 : f32 to vector<16x1xf32>
    %96 = arith.divf %94, %95 : vector<16x1xf32>
    %97 = vector.broadcast %89 : vector<16x1xf32> to vector<16x128xf32>
    %98 = arith.subf %83, %97 : vector<16x128xf32>
    %cst_45 = arith.constant 9.99999974E-6 : f32
    %99 = vector.broadcast %cst_45 : f32 to vector<16x1xf32>
    %100 = arith.addf %96, %99 : vector<16x1xf32>
    %101 = math.rsqrt %100 : vector<16x1xf32>
    %102 = vector.broadcast %101 : vector<16x1xf32> to vector<16x128xf32>
    %103 = arith.mulf %98, %102 : vector<16x128xf32>
    %104 = vector.broadcast %84 : vector<1x128xf32> to vector<16x128xf32>
    %105 = arith.mulf %103, %104 : vector<16x128xf32>
    %106 = vector.broadcast %85 : vector<1x128xf32> to vector<16x128xf32>
    %107 = arith.addf %105, %106 : vector<16x128xf32>
    %108 = arith.truncf %107 : vector<16x128xf32> to vector<16x128xbf16>
    %c0_46 = arith.constant 0 : index
    %c0_47 = arith.constant 0 : index
    %109 = vector.load %arg2[%c0_46, %c0_47] : memref<128x384xbf16, #tpu.memory_space<vmem>>, vector<128x384xbf16>
    %cst_48 = arith.constant dense<0.000000e+00> : vector<16x384xf32>
    %110 = tpu.matmul %108, %109, %cst_48 {dimension_numbers = #tpu.dot_dimension_numbers<[1], [0], [0], [1], [0, 0, 1, 1], [], []>} : vector<16x128xbf16>, vector<128x384xbf16>, vector<16x384xf32> -> vector<16x384xf32>
    %c0_49 = arith.constant 0 : index
    %c0_50 = arith.constant 0 : index
    %111 = vector.load %arg3[%c0_49, %c0_50] : memref<1x384xf32, #tpu.memory_space<vmem>>, vector<1x384xf32>
    %112 = vector.broadcast %111 : vector<1x384xf32> to vector<16x384xf32>
    %113 = arith.addf %110, %112 : vector<16x384xf32>
    %114 = vector.extract_strided_slice %113 {offsets = [0, 0], sizes = [16, 128], strides = [1, 1]} : vector<16x384xf32> to vector<16x128xf32>
    %cst_51 = arith.constant 0.0883883461 : f32
    %115 = vector.broadcast %cst_51 : f32 to vector<16x128xf32>
    %116 = arith.mulf %114, %115 : vector<16x128xf32>
    %117 = vector.shape_cast %116 : vector<16x128xf32> to vector<1x16x128xf32>
    %118 = arith.truncf %117 : vector<1x16x128xf32> to vector<1x16x128xbf16>
    %119 = vector.extract_strided_slice %113 {offsets = [0, 128], sizes = [16, 128], strides = [1, 1]} : vector<16x384xf32> to vector<16x128xf32>
    %120 = vector.shape_cast %119 : vector<16x128xf32> to vector<1x16x128xf32>
    %121 = arith.truncf %120 : vector<1x16x128xf32> to vector<1x16x128xbf16>
    %122 = vector.extract_strided_slice %113 {offsets = [0, 256], sizes = [16, 128], strides = [1, 1]} : vector<16x384xf32> to vector<16x128xf32>
    %123 = vector.shape_cast %122 : vector<16x128xf32> to vector<1x16x128xf32>
    %124 = arith.truncf %123 : vector<1x16x128xf32> to vector<1x16x128xbf16>
    "tpu.trace_start"() <{level = 10 : i32, message = "btd,bsd->bts"}> : () -> ()
    %cst_52 = arith.constant dense<0.000000e+00> : vector<1x16x16xf32>
    %125 = tpu.matmul %118, %121, %cst_52 {dimension_numbers = #tpu.dot_dimension_numbers<[2], [2], [1], [1], [0, 0, 0, 1, 1, 1], [0], [0]>} : vector<1x16x128xbf16>, vector<1x16x128xbf16>, vector<1x16x16xf32> -> vector<1x16x16xf32>
    %cst_53 = arith.constant -1.000000e+30 : f32
    "tpu.trace_stop"() : () -> ()
    %126 = vector.broadcast %cst_53 : f32 to vector<1x16x16xf32>
    %127 = arith.select %5, %125, %126 : vector<1x16x16xi1>, vector<1x16x16xf32>
    %cst_54 = arith.constant dense<0xFF800000> : vector<1x16xf32>
    %128 = vector.multi_reduction <maximumf>, %127, %cst_54 [2] : vector<1x16x16xf32> to vector<1x16xf32>
    %129 = vector.shape_cast %128 : vector<1x16xf32> to vector<1x16x1xf32>
    %130 = vector.broadcast %129 : vector<1x16x1xf32> to vector<1x16x16xf32>
    %131 = arith.subf %127, %130 : vector<1x16x16xf32>
    %132 = math.exp %131 : vector<1x16x16xf32>
    %cst_55 = arith.constant dense<0.000000e+00> : vector<1x16xf32>
    %133 = vector.multi_reduction <add>, %132, %cst_55 [2] : vector<1x16x16xf32> to vector<1x16xf32>
    %134 = vector.shape_cast %133 : vector<1x16xf32> to vector<1x16x1xf32>
    %135 = vector.broadcast %134 : vector<1x16x1xf32> to vector<1x16x16xf32>
    %136 = arith.divf %132, %135 : vector<1x16x16xf32>
    %137 = arith.truncf %136 : vector<1x16x16xf32> to vector<1x16x16xbf16>
    "tpu.trace_start"() <{level = 10 : i32, message = "bts,bsd->btd"}> : () -> ()
    %cst_56 = arith.constant dense<0.000000e+00> : vector<1x16x128xf32>
    %138 = tpu.matmul %137, %124, %cst_56 {dimension_numbers = #tpu.dot_dimension_numbers<[2], [1], [1], [2], [0, 0, 0, 1, 1, 2], [0], [0]>} : vector<1x16x16xbf16>, vector<1x16x128xbf16>, vector<1x16x128xf32> -> vector<1x16x128xf32>
    "tpu.trace_stop"() : () -> ()
    %139 = vector.shape_cast %138 : vector<1x16x128xf32> to vector<16x128xf32>
    %140 = arith.truncf %139 : vector<16x128xf32> to vector<16x128xbf16>
    %c0_57 = arith.constant 0 : index
    %c0_58 = arith.constant 0 : index
    %141 = vector.load %arg4[%c0_57, %c0_58] : memref<128x128xbf16, #tpu.memory_space<vmem>>, vector<128x128xbf16>
    %cst_59 = arith.constant dense<0.000000e+00> : vector<16x128xf32>
    %142 = tpu.matmul %140, %141, %cst_59 {dimension_numbers = #tpu.dot_dimension_numbers<[1], [0], [0], [1], [0, 0, 1, 1], [], []>} : vector<16x128xbf16>, vector<128x128xbf16>, vector<16x128xf32> -> vector<16x128xf32>
    %c0_60 = arith.constant 0 : index
    %c0_61 = arith.constant 0 : index
    %143 = vector.load %arg5[%c0_60, %c0_61] : memref<1x128xf32, #tpu.memory_space<vmem>>, vector<1x128xf32>
    %144 = vector.broadcast %143 : vector<1x128xf32> to vector<16x128xf32>
    %145 = arith.addf %142, %144 : vector<16x128xf32>
    %146 = arith.addf %107, %145 : vector<16x128xf32>
    %c0_62 = arith.constant 0 : index
    %c0_63 = arith.constant 0 : index
    %147 = vector.load %arg10[%c0_62, %c0_63] : memref<1x128xf32, #tpu.memory_space<vmem>>, vector<1x128xf32>
    %c0_64 = arith.constant 0 : index
    %c0_65 = arith.constant 0 : index
    %148 = vector.load %arg11[%c0_64, %c0_65] : memref<1x128xf32, #tpu.memory_space<vmem>>, vector<1x128xf32>
    %cst_66 = arith.constant dense<0.000000e+00> : vector<16xf32>
    %149 = vector.multi_reduction <add>, %146, %cst_66 [1] : vector<16x128xf32> to vector<16xf32>
    %150 = vector.shape_cast %149 : vector<16xf32> to vector<16x1xf32>
    %cst_67 = arith.constant 1.280000e+02 : f32
    %151 = vector.broadcast %cst_67 : f32 to vector<16x1xf32>
    %152 = arith.divf %150, %151 : vector<16x1xf32>
    %153 = vector.broadcast %152 : vector<16x1xf32> to vector<16x128xf32>
    %154 = arith.subf %146, %153 : vector<16x128xf32>
    %155 = arith.mulf %154, %154 : vector<16x128xf32>
    %cst_68 = arith.constant dense<0.000000e+00> : vector<16xf32>
    %156 = vector.multi_reduction <add>, %155, %cst_68 [1] : vector<16x128xf32> to vector<16xf32>
    %157 = vector.shape_cast %156 : vector<16xf32> to vector<16x1xf32>
    %cst_69 = arith.constant 1.280000e+02 : f32
    %158 = vector.broadcast %cst_69 : f32 to vector<16x1xf32>
    %159 = arith.divf %157, %158 : vector<16x1xf32>
    %160 = vector.broadcast %152 : vector<16x1xf32> to vector<16x128xf32>
    %161 = arith.subf %146, %160 : vector<16x128xf32>
    %cst_70 = arith.constant 9.99999974E-6 : f32
    %162 = vector.broadcast %cst_70 : f32 to vector<16x1xf32>
    %163 = arith.addf %159, %162 : vector<16x1xf32>
    %164 = math.rsqrt %163 : vector<16x1xf32>
    %165 = vector.broadcast %164 : vector<16x1xf32> to vector<16x128xf32>
    %166 = arith.mulf %161, %165 : vector<16x128xf32>
    %167 = vector.broadcast %147 : vector<1x128xf32> to vector<16x128xf32>
    %168 = arith.mulf %166, %167 : vector<16x128xf32>
    %169 = vector.broadcast %148 : vector<1x128xf32> to vector<16x128xf32>
    %170 = arith.addf %168, %169 : vector<16x128xf32>
    %171 = arith.truncf %170 : vector<16x128xf32> to vector<16x128xbf16>
    %c0_71 = arith.constant 0 : index
    %c0_72 = arith.constant 0 : index
    %172 = vector.load %arg6[%c0_71, %c0_72] : memref<128x256xbf16, #tpu.memory_space<vmem>>, vector<128x256xbf16>
    %cst_73 = arith.constant dense<0.000000e+00> : vector<16x256xf32>
    %173 = tpu.matmul %171, %172, %cst_73 {dimension_numbers = #tpu.dot_dimension_numbers<[1], [0], [0], [1], [0, 0, 1, 1], [], []>} : vector<16x128xbf16>, vector<128x256xbf16>, vector<16x256xf32> -> vector<16x256xf32>
    %c0_74 = arith.constant 0 : index
    %c0_75 = arith.constant 0 : index
    %174 = vector.load %arg7[%c0_74, %c0_75] : memref<1x256xf32, #tpu.memory_space<vmem>>, vector<1x256xf32>
    %175 = vector.broadcast %174 : vector<1x256xf32> to vector<16x256xf32>
    %176 = arith.addf %173, %175 : vector<16x256xf32>
    %cst_76 = arith.constant 0.000000e+00 : f32
    %177 = vector.broadcast %cst_76 : f32 to vector<16x256xf32>
    %178 = arith.maximumf %176, %177 : vector<16x256xf32>
    %179 = arith.truncf %178 : vector<16x256xf32> to vector<16x256xbf16>
    %c0_77 = arith.constant 0 : index
    %c0_78 = arith.constant 0 : index
    %180 = vector.load %arg8[%c0_77, %c0_78] : memref<256x128xbf16, #tpu.memory_space<vmem>>, vector<256x128xbf16>
    %cst_79 = arith.constant dense<0.000000e+00> : vector<16x128xf32>
    %181 = tpu.matmul %179, %180, %cst_79 {dimension_numbers = #tpu.dot_dimension_numbers<[1], [0], [0], [1], [0, 0, 1, 1], [], []>} : vector<16x256xbf16>, vector<256x128xbf16>, vector<16x128xf32> -> vector<16x128xf32>
    %c0_80 = arith.constant 0 : index
    %c0_81 = arith.constant 0 : index
    %182 = vector.load %arg9[%c0_80, %c0_81] : memref<1x128xf32, #tpu.memory_space<vmem>>, vector<1x128xf32>
    %183 = vector.broadcast %182 : vector<1x128xf32> to vector<16x128xf32>
    %184 = arith.addf %181, %183 : vector<16x128xf32>
    %185 = arith.addf %170, %184 : vector<16x128xf32>
    %c0_82 = arith.constant 0 : index
    %c0_83 = arith.constant 0 : index
    %186 = vector.load %arg12[%c0_82, %c0_83] : memref<1x128xf32, #tpu.memory_space<vmem>>, vector<1x128xf32>
    %c0_84 = arith.constant 0 : index
    %c0_85 = arith.constant 0 : index
    %187 = vector.load %arg13[%c0_84, %c0_85] : memref<1x128xf32, #tpu.memory_space<vmem>>, vector<1x128xf32>
    %cst_86 = arith.constant dense<0.000000e+00> : vector<16xf32>
    %188 = vector.multi_reduction <add>, %185, %cst_86 [1] : vector<16x128xf32> to vector<16xf32>
    %189 = vector.shape_cast %188 : vector<16xf32> to vector<16x1xf32>
    %cst_87 = arith.constant 1.280000e+02 : f32
    %190 = vector.broadcast %cst_87 : f32 to vector<16x1xf32>
    %191 = arith.divf %189, %190 : vector<16x1xf32>
    %192 = vector.broadcast %191 : vector<16x1xf32> to vector<16x128xf32>
    %193 = arith.subf %185, %192 : vector<16x128xf32>
    %194 = arith.mulf %193, %193 : vector<16x128xf32>
    %cst_88 = arith.constant dense<0.000000e+00> : vector<16xf32>
    %195 = vector.multi_reduction <add>, %194, %cst_88 [1] : vector<16x128xf32> to vector<16xf32>
    %196 = vector.shape_cast %195 : vector<16xf32> to vector<16x1xf32>
    %cst_89 = arith.constant 1.280000e+02 : f32
    %197 = vector.broadcast %cst_89 : f32 to vector<16x1xf32>
    %198 = arith.divf %196, %197 : vector<16x1xf32>
    %199 = vector.broadcast %191 : vector<16x1xf32> to vector<16x128xf32>
    %200 = arith.subf %185, %199 : vector<16x128xf32>
    %cst_90 = arith.constant 9.99999974E-6 : f32
    %201 = vector.broadcast %cst_90 : f32 to vector<16x1xf32>
    %202 = arith.addf %198, %201 : vector<16x1xf32>
    %203 = math.rsqrt %202 : vector<16x1xf32>
    %204 = vector.broadcast %203 : vector<16x1xf32> to vector<16x128xf32>
    %205 = arith.mulf %200, %204 : vector<16x128xf32>
    %206 = vector.broadcast %186 : vector<1x128xf32> to vector<16x128xf32>
    %207 = arith.mulf %205, %206 : vector<16x128xf32>
    %208 = vector.broadcast %187 : vector<1x128xf32> to vector<16x128xf32>
    %209 = arith.addf %207, %208 : vector<16x128xf32>
    %210 = vector.shape_cast %209 : vector<16x128xf32> to vector<1x16x128xf32>
    %c0_91 = arith.constant 0 : index
    %c0_92 = arith.constant 0 : index
    %c0_93 = arith.constant 0 : index
    %211 = vector.load %arg14[%c0_91, %c0_92, %c0_93] : memref<1x16x128xf32, #tpu.memory_space<vmem>>, vector<1x16x128xf32>
    tpu.vector_store %arg14[%c0_91, %c0_92, %c0_93], %210 {strides = array<i32>} : memref<1x16x128xf32, #tpu.memory_space<vmem>>, vector<1x16x128xf32>,
    return
  }
  func.func @transform_0(%arg0: i32) -> (i32, i32, i32) {
    %c0_i32 = arith.constant 0 : i32
    %c0_i32_0 = arith.constant 0 : i32
    %c0_i32_1 = arith.constant 0 : i32
    return %arg0, %c0_i32, %c0_i32_0 : i32, i32, i32
  }
  func.func @transform_1(%arg0: i32) -> (i32, i32) {
    %c0_i32 = arith.constant 0 : i32
    %c0_i32_0 = arith.constant 0 : i32
    %c0_i32_1 = arith.constant 0 : i32
    return %c0_i32, %c0_i32_0 : i32, i32
  }
  func.func @transform_2(%arg0: i32) -> (i32, i32) {
    %c0_i32 = arith.constant 0 : i32
    %c0_i32_0 = arith.constant 0 : i32
    %c0_i32_1 = arith.constant 0 : i32
    return %c0_i32, %c0_i32_0 : i32, i32
  }
  func.func @transform_3(%arg0: i32) -> (i32, i32) {
    %c0_i32 = arith.constant 0 : i32
    %c0_i32_0 = arith.constant 0 : i32
    %c0_i32_1 = arith.constant 0 : i32
    return %c0_i32, %c0_i32_0 : i32, i32
  }
  func.func @transform_4(%arg0: i32) -> (i32, i32) {
    %c0_i32 = arith.constant 0 : i32
    %c0_i32_0 = arith.constant 0 : i32
    %c0_i32_1 = arith.constant 0 : i32
    return %c0_i32, %c0_i32_0 : i32, i32
  }
  func.func @transform_5(%arg0: i32) -> (i32, i32) {
    %c0_i32 = arith.constant 0 : i32
    %c0_i32_0 = arith.constant 0 : i32
    %c0_i32_1 = arith.constant 0 : i32
    return %c0_i32, %c0_i32_0 : i32, i32
  }
  func.func @transform_6(%arg0: i32) -> (i32, i32) {
    %c0_i32 = arith.constant 0 : i32
    %c0_i32_0 = arith.constant 0 : i32
    %c0_i32_1 = arith.constant 0 : i32
    return %c0_i32, %c0_i32_0 : i32, i32
  }
  func.func @transform_7(%arg0: i32) -> (i32, i32) {
    %c0_i32 = arith.constant 0 : i32
    %c0_i32_0 = arith.constant 0 : i32
    %c0_i32_1 = arith.constant 0 : i32
    return %c0_i32, %c0_i32_0 : i32, i32
  }
  func.func @transform_8(%arg0: i32) -> (i32, i32) {
    %c0_i32 = arith.constant 0 : i32
    %c0_i32_0 = arith.constant 0 : i32
    %c0_i32_1 = arith.constant 0 : i32
    return %c0_i32, %c0_i32_0 : i32, i32
  }
  func.func @transform_9(%arg0: i32) -> (i32, i32) {
    %c0_i32 = arith.constant 0 : i32
    %c0_i32_0 = arith.constant 0 : i32
    %c0_i32_1 = arith.constant 0 : i32
    return %c0_i32, %c0_i32_0 : i32, i32
  }
  func.func @transform_10(%arg0: i32) -> (i32, i32) {
    %c0_i32 = arith.constant 0 : i32
    %c0_i32_0 = arith.constant 0 : i32
    %c0_i32_1 = arith.constant 0 : i32
    return %c0_i32, %c0_i32_0 : i32, i32
  }
  func.func @transform_11(%arg0: i32) -> (i32, i32) {
    %c0_i32 = arith.constant 0 : i32
    %c0_i32_0 = arith.constant 0 : i32
    %c0_i32_1 = arith.constant 0 : i32
    return %c0_i32, %c0_i32_0 : i32, i32
  }
  func.func @transform_12(%arg0: i32) -> (i32, i32) {
    %c0_i32 = arith.constant 0 : i32
    %c0_i32_0 = arith.constant 0 : i32
    %c0_i32_1 = arith.constant 0 : i32
    return %c0_i32, %c0_i32_0 : i32, i32
  }
  func.func @transform_13(%arg0: i32) -> (i32, i32, i32) {
    %c0_i32 = arith.constant 0 : i32
    %c0_i32_0 = arith.constant 0 : i32
    %c0_i32_1 = arith.constant 0 : i32
    return %arg0, %c0_i32, %c0_i32_0 : i32, i32, i32
  }
}

</mosaic_0001>

<llo_original>
// kernel: tpu_custom_call.1
$region0: #{tpu_custom_call.1}
  #allocation0 [shape = 'u32[]', space=smem, size = 0x4, offset = 0x4, fixed_abs, tag = 'smem constant byte address 0x4 - core index']
  #allocation1 [shape = 'u32[144,128]{1,0:T(1,128)}', space=vmem, size = 0x12000, scoped, tag = 'internal scratch']
  %s0 = inlined_call_operand.hbm [shape: f32[2,16,128], index: 0, kind: input, shape index: {}]
  %s1 = inlined_call_operand.hbm [shape: bf16[128,384], index: 1, kind: input, shape index: {}]
  %s2 = inlined_call_operand.vmem [shape: f32[1,384], index: 2, kind: input, shape index: {}]
  %s3 = inlined_call_operand.hbm [shape: bf16[128,128], index: 3, kind: input, shape index: {}]
  %s4 = inlined_call_operand.vmem [shape: f32[1,128], index: 4, kind: input, shape index: {}]
  %s5 = inlined_call_operand.hbm [shape: bf16[128,256], index: 5, kind: input, shape index: {}]
  %s6 = inlined_call_operand.vmem [shape: f32[1,256], index: 6, kind: input, shape index: {}]
  %s7 = inlined_call_operand.hbm [shape: bf16[256,128], index: 7, kind: input, shape index: {}]
  %s8 = inlined_call_operand.vmem [shape: f32[1,128], index: 8, kind: input, shape index: {}]
  %s9 = inlined_call_operand.vmem [shape: f32[1,128], index: 9, kind: input, shape index: {}]
  %s10 = inlined_call_operand.vmem [shape: f32[1,128], index: 10, kind: input, shape index: {}]
  %s11 = inlined_call_operand.vmem [shape: f32[1,128], index: 11, kind: input, shape index: {}]
  %s12 = inlined_call_operand.vmem [shape: f32[1,128], index: 12, kind: input, shape index: {}]
  %s13 = inlined_call_operand.hbm [shape: f32[2,16,128], index: 13, kind: output, shape index: {}]
  %s14 = sld [smem:[#allocation0]]
  $region105: #{tpu_custom_call.1} parent=0
    _
  %s16 = ssub.s32 1, %s14
  %s17 = scalar_select 0, %s16, %s14
  $region1: #{tpu_custom_call.1} parent=0
    #allocation2 [shape = 'u8[16384]{0}', space=vmem, size = 0x4000, scoped, tag = 'input window, operand 0']
    #allocation3 [shape = 's32[2]{0}', space=sflag, size = 0x8, scoped, tag = 'scoped memory for tpu_custom_call.1']
    #allocation4 [shape = 's32[2]{0}', space=sflag, size = 0x8, scoped, tag = 'scoped memory for tpu_custom_call.1']
    #allocation5 [shape = 'u8[98304]{0}', space=vmem, size = 0x18000, scoped, tag = 'input window, operand 1, single buffered']
    #allocation6 [shape = 's32[1]{0}', space=sflag, size = 0x4, scoped, tag = 'scoped memory for tpu_custom_call.1']
    #allocation7 [shape = 'u8[32768]{0}', space=vmem, size = 0x8000, scoped, tag = 'input window, operand 3, single buffered']
    #allocation8 [shape = 'u8[65536]{0}', space=vmem, size = 0x10000, scoped, tag = 'input window, operand 5, single buffered']
    #allocation9 [shape = 's32[1]{0}', space=sflag, size = 0x4, scoped, tag = 'scoped memory for tpu_custom_call.1']
    #allocation10 [shape = 'u8[65536]{0}', space=vmem, size = 0x10000, scoped, tag = 'input window, operand 7, single buffered']
    #allocation11 [shape = 'u8[16384]{0}', space=vmem, size = 0x4000, scoped, tag = 'output window, operand 0']
    %18 = vsyncpa [#allocation3], 0
    %s19 = scalar_lea.sflag [#allocation3], 1
    %20 = vsyncpa %s19, 0
    %21 = vsyncpa [#allocation6], 0
    %22 = vsyncpa [#allocation9], 0
    %23 = vsyncpa [#allocation4], 0
    %s24 = scalar_lea.sflag [#allocation4], 1
    %25 = vsyncpa %s24, 0
    loop: start=0, step=1, limit=4
    $region2: #{tpu_custom_call.1} parent=1 // loop_pre_header
      _
    $region3: #{tpu_custom_call.1} parent=1 // loop_header
      %s27 = sphi 0, %s31
      %p28 = scmp.ge.s32.totalorder %s27, 4
      %s37 = sphi 0, %s39
      %s40 = sphi 0, %s37
      %s41 = sphi 0, %s40
      %s57 = sphi 0, %s41
      %s61 = sphi 0, %s61
      %s63 = sphi 0, %s61
      %s64 = sphi 0, %s63
      %s78 = sphi 0, %s64
      %s82 = sphi 0, %s82
      %s84 = sphi 0, %s82
      %s85 = sphi 0, %s84
      %s99 = sphi 0, %s85
      %s103 = sphi 0, %s103
      %s105 = sphi 0, %s103
      %s106 = sphi 0, %s105
      %s120 = sphi 0, %s106
      %s124 = sphi 0, %s124
      %s126 = sphi 0, %s124
      %s127 = sphi 0, %s126
      %s141 = sphi 0, %s127
      %s145 = sphi 0, %s145
      %s147 = sphi 0, %s145
      %s148 = sphi 0, %s147
      %s162 = sphi 0, %s148
      %s166 = sphi 0, %s166
      %s168 = sphi 0, %s166
      %s169 = sphi 0, %s168
      %s183 = sphi 0, %s169
      %s187 = sphi 0, %s187
      %s189 = sphi 0, %s187
      %s190 = sphi 0, %s189
      %s204 = sphi 0, %s190
      %s208 = sphi 0, %s208
      %s210 = sphi 0, %s208
      %s211 = sphi 0, %s210
      %s225 = sphi 0, %s211
      %s229 = sphi 0, %s229
      %s231 = sphi 0, %s229
      %s232 = sphi 0, %s231
      %s246 = sphi 0, %s232
      %s250 = sphi 0, %s250
      %s252 = sphi 0, %s250
      %s253 = sphi 0, %s252
      %s267 = sphi 0, %s253
      %s271 = sphi 0, %s271
      %s273 = sphi 0, %s271
      %s274 = sphi 0, %s273
      %s288 = sphi 0, %s274
      %s292 = sphi 0, %s292
      %s294 = sphi 0, %s292
      %s295 = sphi 0, %s294
      %s309 = sphi 0, %s295
      %s315 = sphi 0, %s317
      %s318 = sphi 0, %s315
      %s319 = sphi 0, %s318
      %s335 = sphi 0, %s319
    $region4: #{tpu_custom_call.1} parent=1 // loop_header_branch
      %30 = sbr.rel (%p28) target = $region8
    $region5: #{tpu_custom_call.1} parent=1 // loop_body
      %s32 = ssub.s32 %s27, 1
      %s33 = ssub.s32 %s27, 2
      %s34 = sadd.s32 %s27, 1
      %s35 = ssub.s32 %s27, %s34
      %p36 = scmp.eq.s32.totalorder %s35, 0
      %s38 = sadd.s32 %s37, 1
      %s39 = scalar_select %p36, %s37, %s38
      %p42 = pneg %p36
      %p43 = scmp.eq.s32.totalorder %s27, 1
      %p44 = por %p42, %p43
      %p45 = scmp.ne.s32.totalorder %s37, %s40
      %p46 = scmp.eq.s32.totalorder %s27, 0
      %p47 = por %p45, %p46
      %p48 = scmp.ne.s32.totalorder %s37, %s40
      %p49 = scmp.eq.s32.totalorder %s32, 1
      %p50 = por %p48, %p49
      %p51 = scmp.ne.s32.totalorder %s40, %s41
      %p52 = scmp.eq.s32.totalorder %s32, 0
      %p53 = por %p51, %p52
      %p54 = scmp.ne.s32.totalorder %s40, %s41
      %p55 = scmp.eq.s32.totalorder %s33, 1
      %p56 = por %p54, %p55
      %p58 = scmp.ne.s32.totalorder %s41, %s57
      %p59 = scmp.eq.s32.totalorder %s33, 0
      %p60 = por %p58, %p59
      %s62 = sadd.s32 %s61, 1
      %p65 = scmp.eq.s32.totalorder %s27, 1
      %p66 = scmp.ne.s32.totalorder %s61, %s63
      %p67 = scmp.eq.s32.totalorder %s27, 0
      %p68 = por %p66, %p67
      %p69 = scmp.ne.s32.totalorder %s61, %s63
      %p70 = scmp.eq.s32.totalorder %s32, 1
      %p71 = por %p69, %p70
      %p72 = scmp.ne.s32.totalorder %s63, %s64
      %p73 = scmp.eq.s32.totalorder %s32, 0
      %p74 = por %p72, %p73
      %p75 = scmp.ne.s32.totalorder %s63, %s64
      %p76 = scmp.eq.s32.totalorder %s33, 1
      %p77 = por %p75, %p76
      %p79 = scmp.ne.s32.totalorder %s64, %s78
      %p80 = scmp.eq.s32.totalorder %s33, 0
      %p81 = por %p79, %p80
      %s83 = sadd.s32 %s82, 1
      %p86 = scmp.eq.s32.totalorder %s27, 1
      %p87 = scmp.ne.s32.totalorder %s82, %s84
      %p88 = scmp.eq.s32.totalorder %s27, 0
      %p89 = por %p87, %p88
      %p90 = scmp.ne.s32.totalorder %s82, %s84
      %p91 = scmp.eq.s32.totalorder %s32, 1
      %p92 = por %p90, %p91
      %p93 = scmp.ne.s32.totalorder %s84, %s85
      %p94 = scmp.eq.s32.totalorder %s32, 0
      %p95 = por %p93, %p94
      %p96 = scmp.ne.s32.totalorder %s84, %s85
      %p97 = scmp.eq.s32.totalorder %s33, 1
      %p98 = por %p96, %p97
      %p100 = scmp.ne.s32.totalorder %s85, %s99
      %p101 = scmp.eq.s32.totalorder %s33, 0
      %p102 = por %p100, %p101
      %s104 = sadd.s32 %s103, 1
      %p107 = scmp.eq.s32.totalorder %s27, 1
      %p108 = scmp.ne.s32.totalorder %s103, %s105
      %p109 = scmp.eq.s32.totalorder %s27, 0
      %p110 = por %p108, %p109
      %p111 = scmp.ne.s32.totalorder %s103, %s105
      %p112 = scmp.eq.s32.totalorder %s32, 1
      %p113 = por %p111, %p112
      %p114 = scmp.ne.s32.totalorder %s105, %s106
      %p115 = scmp.eq.s32.totalorder %s32, 0
      %p116 = por %p114, %p115
      %p117 = scmp.ne.s32.totalorder %s105, %s106
      %p118 = scmp.eq.s32.totalorder %s33, 1
      %p119 = por %p117, %p118
      %p121 = scmp.ne.s32.totalorder %s106, %s120
      %p122 = scmp.eq.s32.totalorder %s33, 0
      %p123 = por %p121, %p122
      %s125 = sadd.s32 %s124, 1
      %p128 = scmp.eq.s32.totalorder %s27, 1
      %p129 = scmp.ne.s32.totalorder %s124, %s126
      %p130 = scmp.eq.s32.totalorder %s27, 0
      %p131 = por %p129, %p130
      %p132 = scmp.ne.s32.totalorder %s124, %s126
      %p133 = scmp.eq.s32.totalorder %s32, 1
      %p134 = por %p132, %p133
      %p135 = scmp.ne.s32.totalorder %s126, %s127
      %p136 = scmp.eq.s32.totalorder %s32, 0
      %p137 = por %p135, %p136
      %p138 = scmp.ne.s32.totalorder %s126, %s127
      %p139 = scmp.eq.s32.totalorder %s33, 1
      %p140 = por %p138, %p139
      %p142 = scmp.ne.s32.totalorder %s127, %s141
      %p143 = scmp.eq.s32.totalorder %s33, 0
      %p144 = por %p142, %p143
      %s146 = sadd.s32 %s145, 1
      %p149 = scmp.eq.s32.totalorder %s27, 1
      %p150 = scmp.ne.s32.totalorder %s145, %s147
      %p151 = scmp.eq.s32.totalorder %s27, 0
      %p152 = por %p150, %p151
      %p153 = scmp.ne.s32.totalorder %s145, %s147
      %p154 = scmp.eq.s32.totalorder %s32, 1
      %p155 = por %p153, %p154
      %p156 = scmp.ne.s32.totalorder %s147, %s148
      %p157 = scmp.eq.s32.totalorder %s32, 0
      %p158 = por %p156, %p157
      %p159 = scmp.ne.s32.totalorder %s147, %s148
      %p160 = scmp.eq.s32.totalorder %s33, 1
      %p161 = por %p159, %p160
      %p163 = scmp.ne.s32.totalorder %s148, %s162
      %p164 = scmp.eq.s32.totalorder %s33, 0
      %p165 = por %p163, %p164
      %s167 = sadd.s32 %s166, 1
      %p170 = scmp.eq.s32.totalorder %s27, 1
      %p171 = scmp.ne.s32.totalorder %s166, %s168
      %p172 = scmp.eq.s32.totalorder %s27, 0
      %p173 = por %p171, %p172
      %p174 = scmp.ne.s32.totalorder %s166, %s168
      %p175 = scmp.eq.s32.totalorder %s32, 1
      %p176 = por %p174, %p175
      %p177 = scmp.ne.s32.totalorder %s168, %s169
      %p178 = scmp.eq.s32.totalorder %s32, 0
      %p179 = por %p177, %p178
      %p180 = scmp.ne.s32.totalorder %s168, %s169
      %p181 = scmp.eq.s32.totalorder %s33, 1
      %p182 = por %p180, %p181
      %p184 = scmp.ne.s32.totalorder %s169, %s183
      %p185 = scmp.eq.s32.totalorder %s33, 0
      %p186 = por %p184, %p185
      %s188 = sadd.s32 %s187, 1
      %p191 = scmp.eq.s32.totalorder %s27, 1
      %p192 = scmp.ne.s32.totalorder %s187, %s189
      %p193 = scmp.eq.s32.totalorder %s27, 0
      %p194 = por %p192, %p193
      %p195 = scmp.ne.s32.totalorder %s187, %s189
      %p196 = scmp.eq.s32.totalorder %s32, 1
      %p197 = por %p195, %p196
      %p198 = scmp.ne.s32.totalorder %s189, %s190
      %p199 = scmp.eq.s32.totalorder %s32, 0
      %p200 = por %p198, %p199
      %p201 = scmp.ne.s32.totalorder %s189, %s190
      %p202 = scmp.eq.s32.totalorder %s33, 1
      %p203 = por %p201, %p202
      %p205 = scmp.ne.s32.totalorder %s190, %s204
      %p206 = scmp.eq.s32.totalorder %s33, 0
      %p207 = por %p205, %p206
      %s209 = sadd.s32 %s208, 1
      %p212 = scmp.eq.s32.totalorder %s27, 1
      %p213 = scmp.ne.s32.totalorder %s208, %s210
      %p214 = scmp.eq.s32.totalorder %s27, 0
      %p215 = por %p213, %p214
      %p216 = scmp.ne.s32.totalorder %s208, %s210
      %p217 = scmp.eq.s32.totalorder %s32, 1
      %p218 = por %p216, %p217
      %p219 = scmp.ne.s32.totalorder %s210, %s211
      %p220 = scmp.eq.s32.totalorder %s32, 0
      %p221 = por %p219, %p220
      %p222 = scmp.ne.s32.totalorder %s210, %s211
      %p223 = scmp.eq.s32.totalorder %s33, 1
      %p224 = por %p222, %p223
      %p226 = scmp.ne.s32.totalorder %s211, %s225
      %p227 = scmp.eq.s32.totalorder %s33, 0
      %p228 = por %p226, %p227
      %s230 = sadd.s32 %s229, 1
      %p233 = scmp.eq.s32.totalorder %s27, 1
      %p234 = scmp.ne.s32.totalorder %s229, %s231
      %p235 = scmp.eq.s32.totalorder %s27, 0
      %p236 = por %p234, %p235
      %p237 = scmp.ne.s32.totalorder %s229, %s231
      %p238 = scmp.eq.s32.totalorder %s32, 1
      %p239 = por %p237, %p238
      %p240 = scmp.ne.s32.totalorder %s231, %s232
      %p241 = scmp.eq.s32.totalorder %s32, 0
      %p242 = por %p240, %p241
      %p243 = scmp.ne.s32.totalorder %s231, %s232
      %p244 = scmp.eq.s32.totalorder %s33, 1
      %p245 = por %p243, %p244
      %p247 = scmp.ne.s32.totalorder %s232, %s246
      %p248 = scmp.eq.s32.totalorder %s33, 0
      %p249 = por %p247, %p248
      %s251 = sadd.s32 %s250, 1
      %p254 = scmp.eq.s32.totalorder %s27, 1
      %p255 = scmp.ne.s32.totalorder %s250, %s252
      %p256 = scmp.eq.s32.totalorder %s27, 0
      %p257 = por %p255, %p256
      %p258 = scmp.ne.s32.totalorder %s250, %s252
      %p259 = scmp.eq.s32.totalorder %s32, 1
      %p260 = por %p258, %p259
      %p261 = scmp.ne.s32.totalorder %s252, %s253
      %p262 = scmp.eq.s32.totalorder %s32, 0
      %p263 = por %p261, %p262
      %p264 = scmp.ne.s32.totalorder %s252, %s253
      %p265 = scmp.eq.s32.totalorder %s33, 1
      %p266 = por %p264, %p265
      %p268 = scmp.ne.s32.totalorder %s253, %s267
      %p269 = scmp.eq.s32.totalorder %s33, 0
      %p270 = por %p268, %p269
      %s272 = sadd.s32 %s271, 1
      %p275 = scmp.eq.s32.totalorder %s27, 1
      %p276 = scmp.ne.s32.totalorder %s271, %s273
      %p277 = scmp.eq.s32.totalorder %s27, 0
      %p278 = por %p276, %p277
      %p279 = scmp.ne.s32.totalorder %s271, %s273
      %p280 = scmp.eq.s32.totalorder %s32, 1
      %p281 = por %p279, %p280
      %p282 = scmp.ne.s32.totalorder %s273, %s274
      %p283 = scmp.eq.s32.totalorder %s32, 0
      %p284 = por %p282, %p283
      %p285 = scmp.ne.s32.totalorder %s273, %s274
      %p286 = scmp.eq.s32.totalorder %s33, 1
      %p287 = por %p285, %p286
      %p289 = scmp.ne.s32.totalorder %s274, %s288
      %p290 = scmp.eq.s32.totalorder %s33, 0
      %p291 = por %p289, %p290
      %s293 = sadd.s32 %s292, 1
      %p296 = scmp.eq.s32.totalorder %s27, 1
      %p297 = scmp.ne.s32.totalorder %s292, %s294
      %p298 = scmp.eq.s32.totalorder %s27, 0
      %p299 = por %p297, %p298
      %p300 = scmp.ne.s32.totalorder %s292, %s294
      %p301 = scmp.eq.s32.totalorder %s32, 1
      %p302 = por %p300, %p301
      %p303 = scmp.ne.s32.totalorder %s294, %s295
      %p304 = scmp.eq.s32.totalorder %s32, 0
      %p305 = por %p303, %p304
      %p306 = scmp.ne.s32.totalorder %s294, %s295
      %p307 = scmp.eq.s32.totalorder %s33, 1
      %p308 = por %p306, %p307
      %p310 = scmp.ne.s32.totalorder %s295, %s309
      %p311 = scmp.eq.s32.totalorder %s33, 0
      %p312 = por %p310, %p311
      %s313 = ssub.s32 %s27, %s34
      %p314 = scmp.eq.s32.totalorder %s313, 0
      %s316 = sadd.s32 %s315, 1
      %s317 = scalar_select %p314, %s315, %s316
      %p320 = pneg %p314
      %p321 = scmp.eq.s32.totalorder %s27, 1
      %p322 = por %p320, %p321
      %p323 = scmp.ne.s32.totalorder %s315, %s318
      %p324 = scmp.eq.s32.totalorder %s27, 0
      %p325 = por %p323, %p324
      %p326 = scmp.ne.s32.totalorder %s315, %s318
      %p327 = scmp.eq.s32.totalorder %s32, 1
      %p328 = por %p326, %p327
      %p329 = scmp.ne.s32.totalorder %s318, %s319
      %p330 = scmp.eq.s32.totalorder %s32, 0
      %p331 = por %p329, %p330
      %p332 = scmp.ne.s32.totalorder %s318, %s319
      %p333 = scmp.eq.s32.totalorder %s33, 1
      %p334 = por %p332, %p333
      %p336 = scmp.ne.s32.totalorder %s319, %s335
      %p337 = scmp.eq.s32.totalorder %s33, 0
      %p338 = por %p336, %p337
      %p339 = scmp.le.s32.totalorder 1, %s27
      %p340 = scmp.lt.s32.totalorder %s27, 3
      %p341 = pnand %p339, %p340
      %p342 = pneg %p341
      // Predicated region
      $region9: #{tpu_custom_call.1} parent=5 // pred_check
        _
      $region10: #{tpu_custom_call.1} parent=5 // pred_check_branch
        %344 = sbr.rel (%p341) target = $region12
      $region11: #{tpu_custom_call.1} parent=5 // pred_region
        %s345 = ssub.s32 %s27, 1
        // Predicated region
        $region13: #{tpu_custom_call.1} parent=11 // pred_check
          %p346 = pneg %p74
        $region14: #{tpu_custom_call.1} parent=11 // pred_check_branch
          %348 = sbr.rel (%p346) target = $region16
        $region15: #{tpu_custom_call.1} parent=11 // pred_region
          %s350 = ssub.s32 3072, 3072
          %351 = vsyncadd [#allocation6], %s350
          %s352 = sshll.u32 [#allocation5], 4
          %s353 = int_to_ptr.vmem [resolvable:$true] %s352
          %358 = dma.hbm_to_vmem [thread:$0]  %s1, 3072, %s353, [#allocation6], 192, 192, 12
        $region16: #{tpu_custom_call.1} parent=11 // pred_fallthru
          _
        // Predicated region
        $region17: #{tpu_custom_call.1} parent=11 // pred_check
          %p359 = pneg %p95
        $region18: #{tpu_custom_call.1} parent=11 // pred_check_branch
          %361 = sbr.rel (%p359) target = $region20
        $region19: #{tpu_custom_call.1} parent=11 // pred_region
          _
        $region20: #{tpu_custom_call.1} parent=11 // pred_fallthru
          _
        // Predicated region
        $region21: #{tpu_custom_call.1} parent=11 // pred_check
          %p362 = pneg %p116
        $region22: #{tpu_custom_call.1} parent=11 // pred_check_branch
          %364 = sbr.rel (%p362) target = $region24
        $region23: #{tpu_custom_call.1} parent=11 // pred_region
          %s366 = ssub.s32 1024, 1024
          %367 = vsyncadd [#allocation6], %s366
          %s368 = sshll.u32 [#allocation7], 4
          %s369 = int_to_ptr.vmem [resolvable:$true] %s368
          %374 = dma.hbm_to_vmem [thread:$0]  %s3, 1024, %s369, [#allocation6], 64, 64, 4
        $region24: #{tpu_custom_call.1} parent=11 // pred_fallthru
          _
        // Predicated region
        $region25: #{tpu_custom_call.1} parent=11 // pred_check
          %p375 = pneg %p137
        $region26: #{tpu_custom_call.1} parent=11 // pred_check_branch
          %377 = sbr.rel (%p375) target = $region28
        $region27: #{tpu_custom_call.1} parent=11 // pred_region
          _
        $region28: #{tpu_custom_call.1} parent=11 // pred_fallthru
          _
        // Predicated region
        $region29: #{tpu_custom_call.1} parent=11 // pred_check
          %p378 = pneg %p158
        $region30: #{tpu_custom_call.1} parent=11 // pred_check_branch
          %380 = sbr.rel (%p378) target = $region32
        $region31: #{tpu_custom_call.1} parent=11 // pred_region
          %s382 = ssub.s32 2048, 2048
          %383 = vsyncadd [#allocation9], %s382
          %s384 = sshll.u32 [#allocation8], 4
          %s385 = int_to_ptr.vmem [resolvable:$true] %s384
          %390 = dma.hbm_to_vmem [thread:$0]  %s5, 2048, %s385, [#allocation9], 128, 128, 8
        $region32: #{tpu_custom_call.1} parent=11 // pred_fallthru
          _
        // Predicated region
        $region33: #{tpu_custom_call.1} parent=11 // pred_check
          %p391 = pneg %p179
        $region34: #{tpu_custom_call.1} parent=11 // pred_check_branch
          %393 = sbr.rel (%p391) target = $region36
        $region35: #{tpu_custom_call.1} parent=11 // pred_region
          _
        $region36: #{tpu_custom_call.1} parent=11 // pred_fallthru
          _
        // Predicated region
        $region37: #{tpu_custom_call.1} parent=11 // pred_check
          %p394 = pneg %p200
        $region38: #{tpu_custom_call.1} parent=11 // pred_check_branch
          %396 = sbr.rel (%p394) target = $region40
        $region39: #{tpu_custom_call.1} parent=11 // pred_region
          %s398 = ssub.s32 2048, 2048
          %399 = vsyncadd [#allocation9], %s398
          %s400 = sshll.u32 [#allocation10], 4
          %s401 = int_to_ptr.vmem [resolvable:$true] %s400
          %406 = dma.hbm_to_vmem [thread:$0]  %s7, 2048, %s401, [#allocation9], 64, 64, 4
        $region40: #{tpu_custom_call.1} parent=11 // pred_fallthru
          _
        // Predicated region
        $region41: #{tpu_custom_call.1} parent=11 // pred_check
          %p407 = pneg %p221
        $region42: #{tpu_custom_call.1} parent=11 // pred_check_branch
          %409 = sbr.rel (%p407) target = $region44
        $region43: #{tpu_custom_call.1} parent=11 // pred_region
          _
        $region44: #{tpu_custom_call.1} parent=11 // pred_fallthru
          _
        // Predicated region
        $region45: #{tpu_custom_call.1} parent=11 // pred_check
          %p410 = pneg %p242
        $region46: #{tpu_custom_call.1} parent=11 // pred_check_branch
          %412 = sbr.rel (%p410) target = $region48
        $region47: #{tpu_custom_call.1} parent=11 // pred_region
          _
        $region48: #{tpu_custom_call.1} parent=11 // pred_fallthru
          _
        // Predicated region
        $region49: #{tpu_custom_call.1} parent=11 // pred_check
          %p413 = pneg %p263
        $region50: #{tpu_custom_call.1} parent=11 // pred_check_branch
          %415 = sbr.rel (%p413) target = $region52
        $region51: #{tpu_custom_call.1} parent=11 // pred_region
          _
        $region52: #{tpu_custom_call.1} parent=11 // pred_fallthru
          _
        // Predicated region
        $region53: #{tpu_custom_call.1} parent=11 // pred_check
          %p416 = pneg %p284
        $region54: #{tpu_custom_call.1} parent=11 // pred_check_branch
          %418 = sbr.rel (%p416) target = $region56
        $region55: #{tpu_custom_call.1} parent=11 // pred_region
          _
        $region56: #{tpu_custom_call.1} parent=11 // pred_fallthru
          _
        // Predicated region
        $region57: #{tpu_custom_call.1} parent=11 // pred_check
          %p419 = pneg %p305
        $region58: #{tpu_custom_call.1} parent=11 // pred_check_branch
          %421 = sbr.rel (%p419) target = $region60
        $region59: #{tpu_custom_call.1} parent=11 // pred_region
          _
        $region60: #{tpu_custom_call.1} parent=11 // pred_fallthru
          _
      $region12: #{tpu_custom_call.1} parent=5 // pred_fallthru
        _
      %p422 = scmp.lt.s32.totalorder %s27, 2
      // Predicated region
      $region61: #{tpu_custom_call.1} parent=5 // pred_check
        %p423 = pneg %p422
      $region62: #{tpu_custom_call.1} parent=5 // pred_check_branch
        %425 = sbr.rel (%p423) target = $region64
      $region63: #{tpu_custom_call.1} parent=5 // pred_region
        // Predicated region
        $region65: #{tpu_custom_call.1} parent=63 // pred_check
          %p426 = pneg %p47
        $region66: #{tpu_custom_call.1} parent=63 // pred_check_branch
          %428 = sbr.rel (%p426) target = $region68
        $region67: #{tpu_custom_call.1} parent=63 // pred_region
          %s429 = sand.u32 %s37, 1
          %s430 = scalar_lea.sflag [#allocation3], %s429
          %s431 = sand.u32 %s37, 1
          %s432 = smul.addr %s431, 16
          %s433 = scalar_lea.vmem [#allocation2], %s432
          %s435 = ssub.s32 256, 256
          %436 = vsyncadd %s430, %s435
          %s437 = smul.addr %s27, 2
          %s438 = smul.addr %s437, 128
          %s439 = scalar_lea.hbm %s0, %s438
          %s440 = sshll.u32 %s433, 4
          %s441 = int_to_ptr.vmem [resolvable:$true] %s440
          %446 = dma.hbm_to_vmem [thread:$0]  %s439, 256, %s441, %s430, 128, 128, 8
        $region68: #{tpu_custom_call.1} parent=63 // pred_fallthru
          _
      $region64: #{tpu_custom_call.1} parent=5 // pred_fallthru
        _
      %p447 = scmp.le.s32.totalorder 1, %s27
      %p448 = scmp.lt.s32.totalorder %s27, 3
      %p449 = pnand %p447, %p448
      %p450 = pneg %p449
      // Predicated region
      $region69: #{tpu_custom_call.1} parent=5 // pred_check
        _
      $region70: #{tpu_custom_call.1} parent=5 // pred_check_branch
        %452 = sbr.rel (%p449) target = $region72
      $region71: #{tpu_custom_call.1} parent=5 // pred_region
        %s453 = ssub.s32 %s27, 1
        %s454 = sand.u32 %s40, 1
        %s455 = scalar_lea.sflag [#allocation3], %s454
        %s456 = sand.u32 %s40, 1
        %s457 = smul.addr %s456, 16
        %s458 = scalar_lea.vmem [#allocation2], %s457
        // Predicated region
        $region73: #{tpu_custom_call.1} parent=71 // pred_check
          %p459 = pneg %p53
        $region74: #{tpu_custom_call.1} parent=71 // pred_check_branch
          %461 = sbr.rel (%p459) target = $region76
        $region75: #{tpu_custom_call.1} parent=71 // pred_region
          %462 = dma.done %s455, 256
        $region76: #{tpu_custom_call.1} parent=71 // pred_fallthru
          _
        // Predicated region
        $region77: #{tpu_custom_call.1} parent=71 // pred_check
          %p463 = pneg %p74
        $region78: #{tpu_custom_call.1} parent=71 // pred_check_branch
          %465 = sbr.rel (%p463) target = $region80
        $region79: #{tpu_custom_call.1} parent=71 // pred_region
          %466 = dma.done [#allocation6], 3072
        $region80: #{tpu_custom_call.1} parent=71 // pred_fallthru
          _
        // Predicated region
        $region81: #{tpu_custom_call.1} parent=71 // pred_check
          %p467 = pneg %p116
        $region82: #{tpu_custom_call.1} parent=71 // pred_check_branch
          %469 = sbr.rel (%p467) target = $region84
        $region83: #{tpu_custom_call.1} parent=71 // pred_region
          %470 = dma.done [#allocation6], 1024
        $region84: #{tpu_custom_call.1} parent=71 // pred_fallthru
          _
        // Predicated region
        $region85: #{tpu_custom_call.1} parent=71 // pred_check
          %p471 = pneg %p158
        $region86: #{tpu_custom_call.1} parent=71 // pred_check_branch
          %473 = sbr.rel (%p471) target = $region88
        $region87: #{tpu_custom_call.1} parent=71 // pred_region
          %474 = dma.done [#allocation9], 2048
        $region88: #{tpu_custom_call.1} parent=71 // pred_fallthru
          _
        // Predicated region
        $region89: #{tpu_custom_call.1} parent=71 // pred_check
          %p475 = pneg %p200
        $region90: #{tpu_custom_call.1} parent=71 // pred_check_branch
          %477 = sbr.rel (%p475) target = $region92
        $region91: #{tpu_custom_call.1} parent=71 // pred_region
          %478 = dma.done [#allocation9], 2048
        $region92: #{tpu_custom_call.1} parent=71 // pred_fallthru
          _
        %s479 = sand.u32 %s40, 1
        %s480 = scalar_lea.sflag [#allocation3], %s479
        %s481 = sand.u32 %s40, 1
        %s482 = smul.addr %s481, 16
        %s483 = scalar_lea.vmem [#allocation2], %s482
        %p484 = pneg %p53
        %p485 = pneg %p50
        %p486 = pneg %p74
        %p487 = pneg %p71
        %p488 = pneg %p95
        %p489 = pneg %p92
        %p490 = pneg %p116
        %p491 = pneg %p113
        %p492 = pneg %p137
        %p493 = pneg %p134
        %p494 = pneg %p158
        %p495 = pneg %p155
        %p496 = pneg %p179
        %p497 = pneg %p176
        %p498 = pneg %p200
        %p499 = pneg %p197
        %p500 = pneg %p221
        %p501 = pneg %p218
        %p502 = pneg %p242
        %p503 = pneg %p239
        %p504 = pneg %p263
        %p505 = pneg %p260
        %p506 = pneg %p284
        %p507 = pneg %p281
        %p508 = pneg %p305
        %p509 = pneg %p302
        %p510 = pneg %p331
        %p511 = pneg %p328
        %s512 = sand.u32 %s318, 1
        %s513 = scalar_lea.sflag [#allocation4], %s512
        %s514 = sand.u32 %s318, 1
        %s515 = smul.addr %s514, 16
        %s516 = scalar_lea.vmem [#allocation11], %s515
        %v518 = vld [vmem:[%s458] sm:$0xff]
        %v519 = vld [vmem:[%s458 + $0x8] sm:$0xff]
        %v520 = vlaneseq
        %v521 = vshrl.u32 %v520, 7
        %v522 = vadd.s32 %v521, 8
        %v523 = vlaneseq
        %v524 = vand.u32 %v523, 127
        %vm525 = vcmp.le.s32.totalorder %v524, %v521
        %vm526 = vcmp.le.s32.totalorder %v524, %v522
        %v527 = vpack.c.bf16 %v519, %v518
        %v528 = vld [vmem:[#allocation5] sm:$0xff]
        %v529 = vld [vmem:[#allocation5 + $0x8] sm:$0xf]
        %v530 = vld [vmem:[#allocation5 + $0xc] sm:$0xff]
        %v531 = vld [vmem:[#allocation5 + $0x14] sm:$0xf]
        %v532 = vld [vmem:[#allocation5 + $0x18] sm:$0xff]
        %v533 = vld [vmem:[#allocation5 + $0x20] sm:$0xf]
        %v534 = vld [vmem:[#allocation5 + $0x24] sm:$0xff]
        %v535 = vld [vmem:[#allocation5 + $0x2c] sm:$0xf]
        %v536 = vld [vmem:[#allocation5 + $0x30] sm:$0xff]
        %v537 = vld [vmem:[#allocation5 + $0x38] sm:$0xf]
        %v538 = vld [vmem:[#allocation5 + $0x3c] sm:$0xff]
        %v539 = vld [vmem:[#allocation5 + $0x44] sm:$0xf]
        %v540 = vld [vmem:[#allocation5 + $0x48] sm:$0xff]
        %v541 = vld [vmem:[#allocation5 + $0x50] sm:$0xf]
        %v542 = vld [vmem:[#allocation5 + $0x54] sm:$0xff]
        %v543 = vld [vmem:[#allocation5 + $0x5c] sm:$0xf]
        %v544 = vld [vmem:[#allocation5 + $0x60] sm:$0xff]
        %v545 = vld [vmem:[#allocation5 + $0x68] sm:$0xf]
        %v546 = vld [vmem:[#allocation5 + $0x6c] sm:$0xff]
        %v547 = vld [vmem:[#allocation5 + $0x74] sm:$0xf]
        %v548 = vld [vmem:[#allocation5 + $0x78] sm:$0xff]
        %v549 = vld [vmem:[#allocation5 + $0x80] sm:$0xf]
        %v550 = vld [vmem:[#allocation5 + $0x84] sm:$0xff]
        %v551 = vld [vmem:[#allocation5 + $0x8c] sm:$0xf]
        %v552 = vld [vmem:[#allocation5 + $0x90] sm:$0xff]
        %v553 = vld [vmem:[#allocation5 + $0x98] sm:$0xf]
        %v554 = vld [vmem:[#allocation5 + $0x9c] sm:$0xff]
        %v555 = vld [vmem:[#allocation5 + $0xa4] sm:$0xf]
        %v556 = vld [vmem:[#allocation5 + $0xa8] sm:$0xff]
        %v557 = vld [vmem:[#allocation5 + $0xb0] sm:$0xf]
        %v558 = vld [vmem:[#allocation5 + $0xb4] sm:$0xff]
        %v559 = vld [vmem:[#allocation5 + $0xbc] sm:$0xf]
        %v560 = vld [vmem:[%s2] sm:$0x7]
        %v562 = vlaneseq
        %v563 = vshrl.u32 %v562, 7
        %v564 = vsub.s32 0, %v563
        %v565 = vrot.slane %v560, %v564
        %v566 = vlaneseq
        %v567 = vshrl.u32 %v566, 7
        %v568 = vsub.s32 1, %v567
        %v569 = vrot.slane %v560, %v568
        %v570 = vlaneseq
        %v571 = vshrl.u32 %v570, 7
        %v572 = vsub.s32 2, %v571
        %v573 = vrot.slane %v560, %v572
        %v609 = vunpack.c.l.b16 %v528
        %v610 = vunpack.c.h.b16 %v528
        %v611 = vunpack.c.l.b16 %v529
        %v612 = vunpack.c.l.b16 %v530
        %v613 = vunpack.c.h.b16 %v530
        %v614 = vunpack.c.l.b16 %v531
        %v615 = vunpack.c.l.b16 %v532
        %v616 = vunpack.c.h.b16 %v532
        %v617 = vunpack.c.l.b16 %v533
        %v618 = vunpack.c.l.b16 %v534
        %v619 = vunpack.c.h.b16 %v534
        %v620 = vunpack.c.l.b16 %v535
        %v621 = vunpack.c.l.b16 %v536
        %v622 = vunpack.c.h.b16 %v536
        %v623 = vunpack.c.l.b16 %v537
        %v624 = vunpack.c.l.b16 %v538
        %v625 = vunpack.c.h.b16 %v538
        %v626 = vunpack.c.l.b16 %v539
        %v627 = vunpack.c.l.b16 %v540
        %v628 = vunpack.c.h.b16 %v540
        %v629 = vunpack.c.l.b16 %v541
        %v630 = vunpack.c.l.b16 %v542
        %v631 = vunpack.c.h.b16 %v542
        %v632 = vunpack.c.l.b16 %v543
        %v633 = vunpack.c.l.b16 %v544
        %v634 = vunpack.c.h.b16 %v544
        %v635 = vunpack.c.l.b16 %v545
        %v636 = vunpack.c.l.b16 %v546
        %v637 = vunpack.c.h.b16 %v546
        %v638 = vunpack.c.l.b16 %v547
        %v639 = vunpack.c.l.b16 %v548
        %v640 = vunpack.c.h.b16 %v548
        %v641 = vunpack.c.l.b16 %v549
        %v642 = vunpack.c.l.b16 %v550
        %v643 = vunpack.c.h.b16 %v550
        %v644 = vunpack.c.l.b16 %v551
        %v645 = vunpack.c.l.b16 %v552
        %v646 = vunpack.c.h.b16 %v552
        %v647 = vunpack.c.l.b16 %v553
        %v648 = vunpack.c.l.b16 %v554
        %v649 = vunpack.c.h.b16 %v554
        %v650 = vunpack.c.l.b16 %v555
        %v651 = vunpack.c.l.b16 %v556
        %v652 = vunpack.c.h.b16 %v556
        %v653 = vunpack.c.l.b16 %v557
        %v654 = vunpack.c.l.b16 %v558
        %v655 = vunpack.c.h.b16 %v558
        %v656 = vunpack.c.l.b16 %v559
        %v657 = vpack.c.b16 %v612, %v609
        %v658 = vpack.c.b16 %v613, %v610
        %v659 = vpack.c.b16 %v614, %v611
        %v660 = vpack.c.b16 %v618, %v615
        %v661 = vpack.c.b16 %v619, %v616
        %v662 = vpack.c.b16 %v620, %v617
        %v663 = vpack.c.b16 %v624, %v621
        %v664 = vpack.c.b16 %v625, %v622
        %v665 = vpack.c.b16 %v626, %v623
        %v666 = vpack.c.b16 %v630, %v627
        %v667 = vpack.c.b16 %v631, %v628
        %v668 = vpack.c.b16 %v632, %v629
        %v669 = vpack.c.b16 %v636, %v633
        %v670 = vpack.c.b16 %v637, %v634
        %v671 = vpack.c.b16 %v638, %v635
        %v672 = vpack.c.b16 %v642, %v639
        %v673 = vpack.c.b16 %v643, %v640
        %v674 = vpack.c.b16 %v644, %v641
        %v675 = vpack.c.b16 %v648, %v645
        %v676 = vpack.c.b16 %v649, %v646
        %v677 = vpack.c.b16 %v650, %v647
        %v678 = vpack.c.b16 %v654, %v651
        %v679 = vpack.c.b16 %v655, %v652
        %v680 = vpack.c.b16 %v656, %v653
        %705 = vmatprep.subr.bf16.mxu0 %v658
        %706 = vmatpush1.bf16.msra.mxu0 %v657
        %707 = vmatprep.subr.bf16.mxu0 %v661
        %708 = vmatpush1.bf16.msra.mxu0 %v660
        %709 = vmatprep.subr.bf16.mxu0 %v664
        %710 = vmatpush1.bf16.msra.mxu0 %v663
        %711 = vmatprep.subr.bf16.mxu0 %v667
        %712 = vmatpush1.bf16.msra.mxu0 %v666
        %713 = vmatprep.subr.bf16.mxu0 %v670
        %714 = vmatpush1.bf16.msra.mxu0 %v669
        %715 = vmatprep.subr.bf16.mxu0 %v673
        %716 = vmatpush1.bf16.msra.mxu0 %v672
        %717 = vmatprep.subr.bf16.mxu0 %v676
        %718 = vmatpush1.bf16.msra.mxu0 %v675
        %719 = vmatprep.subr.bf16.mxu0 %v679
        %720 = vmatpush1.bf16.msra.mxu0 %v678
        %721 = vmatprep.subr.bf16.mxu0 0
        %722 = vmatpush1.bf16.msra.mxu0 0
        %723 = vmatprep.subr.bf16.mxu0 0
        %724 = vmatpush1.bf16.msra.mxu0 0
        %725 = vmatprep.subr.bf16.mxu0 0
        %726 = vmatpush1.bf16.msra.mxu0 0
        %727 = vmatprep.subr.bf16.mxu0 0
        %728 = vmatpush1.bf16.msra.mxu0 0
        %729 = vmatprep.subr.bf16.mxu0 0
        %730 = vmatpush1.bf16.msra.mxu0 0
        %731 = vmatprep.subr.bf16.mxu0 0
        %732 = vmatpush1.bf16.msra.mxu0 0
        %733 = vmatprep.subr.bf16.mxu0 0
        %734 = vmatpush1.bf16.msra.mxu0 0
        %735 = vmatprep.subr.bf16.mxu0 0
        %736 = vmatpush1.bf16.msra.mxu0 0
        %737 = vmatprep.mubr.bf16.mxu0 0
        %738 = vmatmul.mubr.bf16.gmra.mrb[0].mxu0 %v527
        %v739 = vpop.f32.mrb[0].mxu0
        %v740 = vadd.f32 %v565, %v739
        %v741 = vpop.f32.mrb[0].mxu0
        %v742 = vadd.f32 %v569, %v741
        %v743 = vpop.f32.mrb[0].mxu0
        %v744 = vadd.f32 %v565, %v743
        %v745 = vpop.f32.mrb[0].mxu0
        %v746 = vadd.f32 %v569, %v745
        %747 = vdwg.mxu0
        %748 = vmatprep.subr.bf16.mxu0 0
        %749 = vmatpush1.bf16.msra.mxu0 %v659
        %750 = vmatprep.subr.bf16.mxu0 0
        %751 = vmatpush1.bf16.msra.mxu0 %v662
        %752 = vmatprep.subr.bf16.mxu0 0
        %753 = vmatpush1.bf16.msra.mxu0 %v665
        %754 = vmatprep.subr.bf16.mxu0 0
        %755 = vmatpush1.bf16.msra.mxu0 %v668
        %756 = vmatprep.subr.bf16.mxu0 0
        %757 = vmatpush1.bf16.msra.mxu0 %v671
        %758 = vmatprep.subr.bf16.mxu0 0
        %759 = vmatpush1.bf16.msra.mxu0 %v674
        %760 = vmatprep.subr.bf16.mxu0 0
        %761 = vmatpush1.bf16.msra.mxu0 %v677
        %762 = vmatprep.subr.bf16.mxu0 0
        %763 = vmatpush1.bf16.msra.mxu0 %v680
        %764 = vmatprep.subr.bf16.mxu0 0
        %765 = vmatpush1.bf16.msra.mxu0 0
        %766 = vmatprep.subr.bf16.mxu0 0
        %767 = vmatpush1.bf16.msra.mxu0 0
        %768 = vmatprep.subr.bf16.mxu0 0
        %769 = vmatpush1.bf16.msra.mxu0 0
        %770 = vmatprep.subr.bf16.mxu0 0
        %771 = vmatpush1.bf16.msra.mxu0 0
        %772 = vmatprep.subr.bf16.mxu0 0
        %773 = vmatpush1.bf16.msra.mxu0 0
        %774 = vmatprep.subr.bf16.mxu0 0
        %775 = vmatpush1.bf16.msra.mxu0 0
        %776 = vmatprep.subr.bf16.mxu0 0
        %777 = vmatpush1.bf16.msra.mxu0 0
        %778 = vmatprep.subr.bf16.mxu0 0
        %779 = vmatpush1.bf16.msra.mxu0 0
        %780 = vmatprep.mubr.bf16.mxu0 0
        %781 = vmatmul.mubr.bf16.gmra.mrb[0].mxu0 %v527
        %v782 = vpop.f32.mrb[0].mxu0
        %v783 = vadd.f32 %v573, %v782
        %v784 = vpop.f32.mrb[0].mxu0
        %v785 = vpop.f32.mrb[0].mxu0
        %v786 = vadd.f32 %v573, %v785
        %v787 = vpop.f32.mrb[0].mxu0
        %788 = vdwg.mxu0
        %v789 = vmul.f32 %v740, 0.088388346
        %v790 = vmul.f32 %v744, 0.088388346
        %v791 = vpack.c.bf16 %v790, %v789
        %v792 = vpack.c.bf16 %v746, %v742
        %v793 = vpack.c.bf16 %v786, %v783
        %794 = vmatprep.subr.bf16.mxu0 0
        %795 = vmatpush1.bf16.xpose.msra.mxu0 %v792
        %796 = vmatprep.subr.bf16.mxu0 0
        %797 = vmatpush1.bf16.xpose.msra.mxu0 0
        %798 = vmatprep.subr.bf16.mxu0 0
        %799 = vmatpush1.bf16.xpose.msra.mxu0 0
        %800 = vmatprep.subr.bf16.mxu0 0
        %801 = vmatpush1.bf16.xpose.msra.mxu0 0
        %802 = vmatprep.subr.bf16.mxu0 0
        %803 = vmatpush1.bf16.xpose.msra.mxu0 0
        %804 = vmatprep.subr.bf16.mxu0 0
        %805 = vmatpush1.bf16.xpose.msra.mxu0 0
        %806 = vmatprep.subr.bf16.mxu0 0
        %807 = vmatpush1.bf16.xpose.msra.mxu0 0
        %808 = vmatprep.subr.bf16.mxu0 0
        %809 = vmatpush1.bf16.xpose.msra.mxu0 0
        %810 = vmatprep.subr.bf16.mxu0 0
        %811 = vmatpush1.bf16.xpose.msra.mxu0 0
        %812 = vmatprep.subr.bf16.mxu0 0
        %813 = vmatpush1.bf16.xpose.msra.mxu0 0
        %814 = vmatprep.subr.bf16.mxu0 0
        %815 = vmatpush1.bf16.xpose.msra.mxu0 0
        %816 = vmatprep.subr.bf16.mxu0 0
        %817 = vmatpush1.bf16.xpose.msra.mxu0 0
        %818 = vmatprep.subr.bf16.mxu0 0
        %819 = vmatpush1.bf16.xpose.msra.mxu0 0
        %820 = vmatprep.subr.bf16.mxu0 0
        %821 = vmatpush1.bf16.xpose.msra.mxu0 0
        %822 = vmatprep.subr.bf16.mxu0 0
        %823 = vmatpush1.bf16.xpose.msra.mxu0 0
        %824 = vmatprep.subr.bf16.mxu0 0
        %825 = vmatpush1.bf16.xpose.msra.mxu0 0
        %826 = vmatprep.mubr.bf16.mxu0 0
        %827 = vmatmul.mubr.bf16.gmra.mrb[0].mxu0 %v791
        %v828 = vpop.f32.mrb[0].mxu0
        %v829 = vadd.f32 0.0, %v828
        %v830 = vpop.f32.mrb[0].mxu0
        %v831 = vpop.f32.mrb[0].mxu0
        %v832 = vadd.f32 0.0, %v831
        %v833 = vpop.f32.mrb[0].mxu0
        %834 = vdwg.mxu0
        %v835 = vsel %vm525, %v829, -1e+30
        %v836 = vsel %vm526, %v832, -1e+30
        %vm837 = vcmask 130048
        %v838 = vsel %vm837, %v835, -inf
        %839 = vmax.xlane.f32.xlu0 %v838
        %v840 = vpop.xlane.xlu0 %839
        %v841 = vsel %vm837, %v836, -inf
        %842 = vmax.xlane.f32.xlu0 %v841
        %v843 = vpop.xlane.xlu0 %842
        %v844 = vsub.f32 %v835, %v840
        %v845 = vsub.f32 %v836, %v843
        %v846 = vmul.f32 %v844, 1.442695
        %v847 = vpow.pop %v846
        %v848 = vmul.f32 %v845, 1.442695
        %v849 = vpow.pop %v848
        %v850 = vsel %vm837, %v847, 0.0
        %851 = vadd.xlane.f32.xlu0 %v850
        %v852 = vpop.xlane.xlu0 %851
        %v853 = vsel %vm837, %v849, 0.0
        %854 = vadd.xlane.f32.xlu0 %v853
        %v855 = vpop.xlane.xlu0 %854
        %v856 = vrcp.pop %v852
        %v857 = vmul.f32 %v847, %v856
        %v858 = vrcp.pop %v855
        %v859 = vmul.f32 %v849, %v858
        %v860 = vpack.c.bf16 %v859, %v857
        %v862 = vsel %vm837, %v860, 0
        %864 = vmatprep.subr.bf16.mxu0 0
        %865 = vmatpush1.bf16.msra.mxu0 %v793
        %866 = vmatprep.subr.bf16.mxu0 0
        %867 = vmatpush1.bf16.msra.mxu0 0
        %868 = vmatprep.subr.bf16.mxu0 0
        %869 = vmatpush1.bf16.msra.mxu0 0
        %870 = vmatprep.subr.bf16.mxu0 0
        %871 = vmatpush1.bf16.msra.mxu0 0
        %872 = vmatprep.subr.bf16.mxu0 0
        %873 = vmatpush1.bf16.msra.mxu0 0
        %874 = vmatprep.subr.bf16.mxu0 0
        %875 = vmatpush1.bf16.msra.mxu0 0
        %876 = vmatprep.subr.bf16.mxu0 0
        %877 = vmatpush1.bf16.msra.mxu0 0
        %878 = vmatprep.subr.bf16.mxu0 0
        %879 = vmatpush1.bf16.msra.mxu0 0
        %880 = vmatprep.subr.bf16.mxu0 0
        %881 = vmatpush1.bf16.msra.mxu0 0
        %882 = vmatprep.subr.bf16.mxu0 0
        %883 = vmatpush1.bf16.msra.mxu0 0
        %884 = vmatprep.subr.bf16.mxu0 0
        %885 = vmatpush1.bf16.msra.mxu0 0
        %886 = vmatprep.subr.bf16.mxu0 0
        %887 = vmatpush1.bf16.msra.mxu0 0
        %888 = vmatprep.subr.bf16.mxu0 0
        %889 = vmatpush1.bf16.msra.mxu0 0
        %890 = vmatprep.subr.bf16.mxu0 0
        %891 = vmatpush1.bf16.msra.mxu0 0
        %892 = vmatprep.subr.bf16.mxu0 0
        %893 = vmatpush1.bf16.msra.mxu0 0
        %894 = vmatprep.subr.bf16.mxu0 0
        %895 = vmatpush1.bf16.msra.mxu0 0
        %896 = vmatprep.mubr.bf16.mxu0 0
        %897 = vmatmul.mubr.bf16.gmra.mrb[0].mxu0 %v862
        %v898 = vpop.f32.mrb[0].mxu0
        %v899 = vadd.f32 0.0, %v898
        %v900 = vpop.f32.mrb[0].mxu0
        %v901 = vpop.f32.mrb[0].mxu0
        %v902 = vadd.f32 0.0, %v901
        %v903 = vpop.f32.mrb[0].mxu0
        %904 = vdwg.mxu0
        %v905 = vpack.c.bf16 %v902, %v899
        %v906 = vld [vmem:[#allocation7] sm:$0xf]
        %v907 = vld [vmem:[#allocation7 + $0x4] sm:$0xf]
        %v908 = vld [vmem:[#allocation7 + $0x8] sm:$0xf]
        %v909 = vld [vmem:[#allocation7 + $0xc] sm:$0xf]
        %v910 = vld [vmem:[#allocation7 + $0x10] sm:$0xf]
        %v911 = vld [vmem:[#allocation7 + $0x14] sm:$0xf]
        %v912 = vld [vmem:[#allocation7 + $0x18] sm:$0xf]
        %v913 = vld [vmem:[#allocation7 + $0x1c] sm:$0xf]
        %v914 = vld [vmem:[#allocation7 + $0x20] sm:$0xf]
        %v915 = vld [vmem:[#allocation7 + $0x24] sm:$0xf]
        %v916 = vld [vmem:[#allocation7 + $0x28] sm:$0xf]
        %v917 = vld [vmem:[#allocation7 + $0x2c] sm:$0xf]
        %v918 = vld [vmem:[#allocation7 + $0x30] sm:$0xf]
        %v919 = vld [vmem:[#allocation7 + $0x34] sm:$0xf]
        %v920 = vld [vmem:[#allocation7 + $0x38] sm:$0xf]
        %v921 = vld [vmem:[#allocation7 + $0x3c] sm:$0xf]
        %v922 = vld [vmem:[%s4] sm:$0x1]
        %v924 = vlaneseq
        %v925 = vshrl.u32 %v924, 7
        %v926 = vsub.s32 0, %v925
        %v927 = vrot.slane %v922, %v926
        %v945 = vunpack.c.l.b16 %v906
        %v946 = vunpack.c.l.b16 %v907
        %v947 = vunpack.c.l.b16 %v908
        %v948 = vunpack.c.l.b16 %v909
        %v949 = vunpack.c.l.b16 %v910
        %v950 = vunpack.c.l.b16 %v911
        %v951 = vunpack.c.l.b16 %v912
        %v952 = vunpack.c.l.b16 %v913
        %v953 = vunpack.c.l.b16 %v914
        %v954 = vunpack.c.l.b16 %v915
        %v955 = vunpack.c.l.b16 %v916
        %v956 = vunpack.c.l.b16 %v917
        %v957 = vunpack.c.l.b16 %v918
        %v958 = vunpack.c.l.b16 %v919
        %v959 = vunpack.c.l.b16 %v920
        %v960 = vunpack.c.l.b16 %v921
        %v961 = vpack.c.b16 %v946, %v945
        %v962 = vpack.c.b16 %v948, %v947
        %v963 = vpack.c.b16 %v950, %v949
        %v964 = vpack.c.b16 %v952, %v951
        %v965 = vpack.c.b16 %v954, %v953
        %v966 = vpack.c.b16 %v956, %v955
        %v967 = vpack.c.b16 %v958, %v957
        %v968 = vpack.c.b16 %v960, %v959
        %977 = vmatprep.subr.bf16.mxu0 0
        %978 = vmatpush1.bf16.msra.mxu0 %v961
        %979 = vmatprep.subr.bf16.mxu0 0
        %980 = vmatpush1.bf16.msra.mxu0 %v962
        %981 = vmatprep.subr.bf16.mxu0 0
        %982 = vmatpush1.bf16.msra.mxu0 %v963
        %983 = vmatprep.subr.bf16.mxu0 0
        %984 = vmatpush1.bf16.msra.mxu0 %v964
        %985 = vmatprep.subr.bf16.mxu0 0
        %986 = vmatpush1.bf16.msra.mxu0 %v965
        %987 = vmatprep.subr.bf16.mxu0 0
        %988 = vmatpush1.bf16.msra.mxu0 %v966
        %989 = vmatprep.subr.bf16.mxu0 0
        %990 = vmatpush1.bf16.msra.mxu0 %v967
        %991 = vmatprep.subr.bf16.mxu0 0
        %992 = vmatpush1.bf16.msra.mxu0 %v968
        %993 = vmatprep.subr.bf16.mxu0 0
        %994 = vmatpush1.bf16.msra.mxu0 0
        %995 = vmatprep.subr.bf16.mxu0 0
        %996 = vmatpush1.bf16.msra.mxu0 0
        %997 = vmatprep.subr.bf16.mxu0 0
        %998 = vmatpush1.bf16.msra.mxu0 0
        %999 = vmatprep.subr.bf16.mxu0 0
        %1000 = vmatpush1.bf16.msra.mxu0 0
        %1001 = vmatprep.subr.bf16.mxu0 0
        %1002 = vmatpush1.bf16.msra.mxu0 0
        %1003 = vmatprep.subr.bf16.mxu0 0
        %1004 = vmatpush1.bf16.msra.mxu0 0
        %1005 = vmatprep.subr.bf16.mxu0 0
        %1006 = vmatpush1.bf16.msra.mxu0 0
        %1007 = vmatprep.subr.bf16.mxu0 0
        %1008 = vmatpush1.bf16.msra.mxu0 0
        %1009 = vmatprep.mubr.bf16.mxu0 0
        %1010 = vmatmul.mubr.bf16.gmra.mrb[0].mxu0 %v905
        %v1011 = vpop.f32.mrb[0].mxu0
        %v1012 = vadd.f32 %v927, %v1011
        %v1013 = vpop.f32.mrb[0].mxu0
        %v1014 = vpop.f32.mrb[0].mxu0
        %v1015 = vadd.f32 %v927, %v1014
        %v1016 = vpop.f32.mrb[0].mxu0
        %1017 = vdwg.mxu0
        %v1018 = vadd.f32 %v518, %v1012
        %v1019 = vadd.f32 %v519, %v1015
        %v1020 = vld [vmem:[%s9] sm:$0x1]
        %v1021 = vld [vmem:[%s10] sm:$0x1]
        %1022 = vadd.xlane.f32.xlu0 %v1018
        %v1023 = vpop.xlane.xlu0 %1022
        %1024 = vadd.xlane.f32.xlu0 %v1019
        %v1025 = vpop.xlane.xlu0 %1024
        %v1026 = vrcp.pop 128.0
        %v1027 = vmul.f32 %v1023, %v1026
        %v1028 = vmul.f32 %v1025, %v1026
        %v1029 = vsub.f32 %v1018, %v1027
        %v1030 = vsub.f32 %v1019, %v1028
        %v1031 = vmul.f32 %v1029, %v1029
        %v1032 = vmul.f32 %v1030, %v1030
        %1033 = vadd.xlane.f32.xlu0 %v1031
        %v1034 = vpop.xlane.xlu0 %1033
        %1035 = vadd.xlane.f32.xlu0 %v1032
        %v1036 = vpop.xlane.xlu0 %1035
        %v1037 = vmul.f32 %v1034, %v1026
        %v1038 = vmul.f32 %v1036, %v1026
        %v1039 = vadd.f32 %v1037, 1e-05
        %v1040 = vadd.f32 %v1038, 1e-05
        %v1041 = vrsqrt.pop %v1039
        %v1042 = vrsqrt.pop %v1040
        %v1043 = vmul.f32 %v1029, %v1041
        %v1044 = vmul.f32 %v1030, %v1042
        %v1046 = vlaneseq
        %v1047 = vshrl.u32 %v1046, 7
        %v1048 = vsub.s32 0, %v1047
        %v1049 = vrot.slane %v1020, %v1048
        %v1051 = vmul.f32 %v1043, %v1049
        %v1052 = vmul.f32 %v1044, %v1049
        %v1054 = vlaneseq
        %v1055 = vshrl.u32 %v1054, 7
        %v1056 = vsub.s32 0, %v1055
        %v1057 = vrot.slane %v1021, %v1056
        %v1059 = vadd.f32 %v1051, %v1057
        %v1060 = vadd.f32 %v1052, %v1057
        %v1061 = vpack.c.bf16 %v1060, %v1059
        %v1062 = vld [vmem:[#allocation8] sm:$0xff]
        %v1063 = vld [vmem:[#allocation8 + $0x8] sm:$0xff]
        %v1064 = vld [vmem:[#allocation8 + $0x10] sm:$0xff]
        %v1065 = vld [vmem:[#allocation8 + $0x18] sm:$0xff]
        %v1066 = vld [vmem:[#allocation8 + $0x20] sm:$0xff]
        %v1067 = vld [vmem:[#allocation8 + $0x28] sm:$0xff]
        %v1068 = vld [vmem:[#allocation8 + $0x30] sm:$0xff]
        %v1069 = vld [vmem:[#allocation8 + $0x38] sm:$0xff]
        %v1070 = vld [vmem:[#allocation8 + $0x40] sm:$0xff]
        %v1071 = vld [vmem:[#allocation8 + $0x48] sm:$0xff]
        %v1072 = vld [vmem:[#allocation8 + $0x50] sm:$0xff]
        %v1073 = vld [vmem:[#allocation8 + $0x58] sm:$0xff]
        %v1074 = vld [vmem:[#allocation8 + $0x60] sm:$0xff]
        %v1075 = vld [vmem:[#allocation8 + $0x68] sm:$0xff]
        %v1076 = vld [vmem:[#allocation8 + $0x70] sm:$0xff]
        %v1077 = vld [vmem:[#allocation8 + $0x78] sm:$0xff]
        %v1078 = vld [vmem:[%s6] sm:$0x3]
        %v1080 = vlaneseq
        %v1081 = vshrl.u32 %v1080, 7
        %v1082 = vsub.s32 0, %v1081
        %v1083 = vrot.slane %v1078, %v1082
        %v1084 = vlaneseq
        %v1085 = vshrl.u32 %v1084, 7
        %v1086 = vsub.s32 1, %v1085
        %v1087 = vrot.slane %v1078, %v1086
        %v1106 = vunpack.c.l.b16 %v1062
        %v1107 = vunpack.c.h.b16 %v1062
        %v1108 = vunpack.c.l.b16 %v1063
        %v1109 = vunpack.c.h.b16 %v1063
        %v1110 = vunpack.c.l.b16 %v1064
        %v1111 = vunpack.c.h.b16 %v1064
        %v1112 = vunpack.c.l.b16 %v1065
        %v1113 = vunpack.c.h.b16 %v1065
        %v1114 = vunpack.c.l.b16 %v1066
        %v1115 = vunpack.c.h.b16 %v1066
        %v1116 = vunpack.c.l.b16 %v1067
        %v1117 = vunpack.c.h.b16 %v1067
        %v1118 = vunpack.c.l.b16 %v1068
        %v1119 = vunpack.c.h.b16 %v1068
        %v1120 = vunpack.c.l.b16 %v1069
        %v1121 = vunpack.c.h.b16 %v1069
        %v1122 = vunpack.c.l.b16 %v1070
        %v1123 = vunpack.c.h.b16 %v1070
        %v1124 = vunpack.c.l.b16 %v1071
        %v1125 = vunpack.c.h.b16 %v1071
        %v1126 = vunpack.c.l.b16 %v1072
        %v1127 = vunpack.c.h.b16 %v1072
        %v1128 = vunpack.c.l.b16 %v1073
        %v1129 = vunpack.c.h.b16 %v1073
        %v1130 = vunpack.c.l.b16 %v1074
        %v1131 = vunpack.c.h.b16 %v1074
        %v1132 = vunpack.c.l.b16 %v1075
        %v1133 = vunpack.c.h.b16 %v1075
        %v1134 = vunpack.c.l.b16 %v1076
        %v1135 = vunpack.c.h.b16 %v1076
        %v1136 = vunpack.c.l.b16 %v1077
        %v1137 = vunpack.c.h.b16 %v1077
        %v1138 = vpack.c.b16 %v1108, %v1106
        %v1139 = vpack.c.b16 %v1109, %v1107
        %v1140 = vpack.c.b16 %v1112, %v1110
        %v1141 = vpack.c.b16 %v1113, %v1111
        %v1142 = vpack.c.b16 %v1116, %v1114
        %v1143 = vpack.c.b16 %v1117, %v1115
        %v1144 = vpack.c.b16 %v1120, %v1118
        %v1145 = vpack.c.b16 %v1121, %v1119
        %v1146 = vpack.c.b16 %v1124, %v1122
        %v1147 = vpack.c.b16 %v1125, %v1123
        %v1148 = vpack.c.b16 %v1128, %v1126
        %v1149 = vpack.c.b16 %v1129, %v1127
        %v1150 = vpack.c.b16 %v1132, %v1130
        %v1151 = vpack.c.b16 %v1133, %v1131
        %v1152 = vpack.c.b16 %v1136, %v1134
        %v1153 = vpack.c.b16 %v1137, %v1135
        %1170 = vmatprep.subr.bf16.mxu0 %v1139
        %1171 = vmatpush1.bf16.msra.mxu0 %v1138
        %1172 = vmatprep.subr.bf16.mxu0 %v1141
        %1173 = vmatpush1.bf16.msra.mxu0 %v1140
        %1174 = vmatprep.subr.bf16.mxu0 %v1143
        %1175 = vmatpush1.bf16.msra.mxu0 %v1142
        %1176 = vmatprep.subr.bf16.mxu0 %v1145
        %1177 = vmatpush1.bf16.msra.mxu0 %v1144
        %1178 = vmatprep.subr.bf16.mxu0 %v1147
        %1179 = vmatpush1.bf16.msra.mxu0 %v1146
        %1180 = vmatprep.subr.bf16.mxu0 %v1149
        %1181 = vmatpush1.bf16.msra.mxu0 %v1148
        %1182 = vmatprep.subr.bf16.mxu0 %v1151
        %1183 = vmatpush1.bf16.msra.mxu0 %v1150
        %1184 = vmatprep.subr.bf16.mxu0 %v1153
        %1185 = vmatpush1.bf16.msra.mxu0 %v1152
        %1186 = vmatprep.subr.bf16.mxu0 0
        %1187 = vmatpush1.bf16.msra.mxu0 0
        %1188 = vmatprep.subr.bf16.mxu0 0
        %1189 = vmatpush1.bf16.msra.mxu0 0
        %1190 = vmatprep.subr.bf16.mxu0 0
        %1191 = vmatpush1.bf16.msra.mxu0 0
        %1192 = vmatprep.subr.bf16.mxu0 0
        %1193 = vmatpush1.bf16.msra.mxu0 0
        %1194 = vmatprep.subr.bf16.mxu0 0
        %1195 = vmatpush1.bf16.msra.mxu0 0
        %1196 = vmatprep.subr.bf16.mxu0 0
        %1197 = vmatpush1.bf16.msra.mxu0 0
        %1198 = vmatprep.subr.bf16.mxu0 0
        %1199 = vmatpush1.bf16.msra.mxu0 0
        %1200 = vmatprep.subr.bf16.mxu0 0
        %1201 = vmatpush1.bf16.msra.mxu0 0
        %1202 = vmatprep.mubr.bf16.mxu0 0
        %1203 = vmatmul.mubr.bf16.gmra.mrb[0].mxu0 %v1061
        %v1204 = vpop.f32.mrb[0].mxu0
        %v1205 = vadd.f32 %v1083, %v1204
        %v1206 = vpop.f32.mrb[0].mxu0
        %v1207 = vadd.f32 %v1087, %v1206
        %v1208 = vpop.f32.mrb[0].mxu0
        %v1209 = vadd.f32 %v1083, %v1208
        %v1210 = vpop.f32.mrb[0].mxu0
        %v1211 = vadd.f32 %v1087, %v1210
        %1212 = vdwg.mxu0
        %v1213 = vmax.f32 %v1205, 0.0
        %v1214 = vmax.f32 %v1207, 0.0
        %v1215 = vmax.f32 %v1209, 0.0
        %v1216 = vmax.f32 %v1211, 0.0
        %v1217 = vpack.c.bf16 %v1215, %v1213
        %v1218 = vpack.c.bf16 %v1216, %v1214
        %v1219 = vld [vmem:[#allocation10] sm:$0xf]
        %v1220 = vld [vmem:[#allocation10 + $0x4] sm:$0xf]
        %v1221 = vld [vmem:[#allocation10 + $0x8] sm:$0xf]
        %v1222 = vld [vmem:[#allocation10 + $0xc] sm:$0xf]
        %v1223 = vld [vmem:[#allocation10 + $0x10] sm:$0xf]
        %v1224 = vld [vmem:[#allocation10 + $0x14] sm:$0xf]
        %v1225 = vld [vmem:[#allocation10 + $0x18] sm:$0xf]
        %v1226 = vld [vmem:[#allocation10 + $0x1c] sm:$0xf]
        %v1227 = vld [vmem:[#allocation10 + $0x20] sm:$0xf]
        %v1228 = vld [vmem:[#allocation10 + $0x24] sm:$0xf]
        %v1229 = vld [vmem:[#allocation10 + $0x28] sm:$0xf]
        %v1230 = vld [vmem:[#allocation10 + $0x2c] sm:$0xf]
        %v1231 = vld [vmem:[#allocation10 + $0x30] sm:$0xf]
        %v1232 = vld [vmem:[#allocation10 + $0x34] sm:$0xf]
        %v1233 = vld [vmem:[#allocation10 + $0x38] sm:$0xf]
        %v1234 = vld [vmem:[#allocation10 + $0x3c] sm:$0xf]
        %v1235 = vld [vmem:[#allocation10 + $0x40] sm:$0xf]
        %v1236 = vld [vmem:[#allocation10 + $0x44] sm:$0xf]
        %v1237 = vld [vmem:[#allocation10 + $0x48] sm:$0xf]
        %v1238 = vld [vmem:[#allocation10 + $0x4c] sm:$0xf]
        %v1239 = vld [vmem:[#allocation10 + $0x50] sm:$0xf]
        %v1240 = vld [vmem:[#allocation10 + $0x54] sm:$0xf]
        %v1241 = vld [vmem:[#allocation10 + $0x58] sm:$0xf]
        %v1242 = vld [vmem:[#allocation10 + $0x5c] sm:$0xf]
        %v1243 = vld [vmem:[#allocation10 + $0x60] sm:$0xf]
        %v1244 = vld [vmem:[#allocation10 + $0x64] sm:$0xf]
        %v1245 = vld [vmem:[#allocation10 + $0x68] sm:$0xf]
        %v1246 = vld [vmem:[#allocation10 + $0x6c] sm:$0xf]
        %v1247 = vld [vmem:[#allocation10 + $0x70] sm:$0xf]
        %v1248 = vld [vmem:[#allocation10 + $0x74] sm:$0xf]
        %v1249 = vld [vmem:[#allocation10 + $0x78] sm:$0xf]
        %v1250 = vld [vmem:[#allocation10 + $0x7c] sm:$0xf]
        %v1251 = vld [vmem:[%s8] sm:$0x1]
        %v1253 = vlaneseq
        %v1254 = vshrl.u32 %v1253, 7
        %v1255 = vsub.s32 0, %v1254
        %v1256 = vrot.slane %v1251, %v1255
        %v1290 = vunpack.c.l.b16 %v1219
        %v1291 = vunpack.c.l.b16 %v1220
        %v1292 = vunpack.c.l.b16 %v1221
        %v1293 = vunpack.c.l.b16 %v1222
        %v1294 = vunpack.c.l.b16 %v1223
        %v1295 = vunpack.c.l.b16 %v1224
        %v1296 = vunpack.c.l.b16 %v1225
        %v1297 = vunpack.c.l.b16 %v1226
        %v1298 = vunpack.c.l.b16 %v1227
        %v1299 = vunpack.c.l.b16 %v1228
        %v1300 = vunpack.c.l.b16 %v1229
        %v1301 = vunpack.c.l.b16 %v1230
        %v1302 = vunpack.c.l.b16 %v1231
        %v1303 = vunpack.c.l.b16 %v1232
        %v1304 = vunpack.c.l.b16 %v1233
        %v1305 = vunpack.c.l.b16 %v1234
        %v1306 = vunpack.c.l.b16 %v1235
        %v1307 = vunpack.c.l.b16 %v1236
        %v1308 = vunpack.c.l.b16 %v1237
        %v1309 = vunpack.c.l.b16 %v1238
        %v1310 = vunpack.c.l.b16 %v1239
        %v1311 = vunpack.c.l.b16 %v1240
        %v1312 = vunpack.c.l.b16 %v1241
        %v1313 = vunpack.c.l.b16 %v1242
        %v1314 = vunpack.c.l.b16 %v1243
        %v1315 = vunpack.c.l.b16 %v1244
        %v1316 = vunpack.c.l.b16 %v1245
        %v1317 = vunpack.c.l.b16 %v1246
        %v1318 = vunpack.c.l.b16 %v1247
        %v1319 = vunpack.c.l.b16 %v1248
        %v1320 = vunpack.c.l.b16 %v1249
        %v1321 = vunpack.c.l.b16 %v1250
        %v1322 = vpack.c.b16 %v1291, %v1290
        %v1323 = vpack.c.b16 %v1293, %v1292
        %v1324 = vpack.c.b16 %v1295, %v1294
        %v1325 = vpack.c.b16 %v1297, %v1296
        %v1326 = vpack.c.b16 %v1299, %v1298
        %v1327 = vpack.c.b16 %v1301, %v1300
        %v1328 = vpack.c.b16 %v1303, %v1302
        %v1329 = vpack.c.b16 %v1305, %v1304
        %v1330 = vpack.c.b16 %v1307, %v1306
        %v1331 = vpack.c.b16 %v1309, %v1308
        %v1332 = vpack.c.b16 %v1311, %v1310
        %v1333 = vpack.c.b16 %v1313, %v1312
        %v1334 = vpack.c.b16 %v1315, %v1314
        %v1335 = vpack.c.b16 %v1317, %v1316
        %v1336 = vpack.c.b16 %v1319, %v1318
        %v1337 = vpack.c.b16 %v1321, %v1320
        %1354 = vmatprep.subr.bf16.mxu0 0
        %1355 = vmatpush1.bf16.msra.mxu0 %v1322
        %1356 = vmatprep.subr.bf16.mxu0 0
        %1357 = vmatpush1.bf16.msra.mxu0 %v1323
        %1358 = vmatprep.subr.bf16.mxu0 0
        %1359 = vmatpush1.bf16.msra.mxu0 %v1324
        %1360 = vmatprep.subr.bf16.mxu0 0
        %1361 = vmatpush1.bf16.msra.mxu0 %v1325
        %1362 = vmatprep.subr.bf16.mxu0 0
        %1363 = vmatpush1.bf16.msra.mxu0 %v1326
        %1364 = vmatprep.subr.bf16.mxu0 0
        %1365 = vmatpush1.bf16.msra.mxu0 %v1327
        %1366 = vmatprep.subr.bf16.mxu0 0
        %1367 = vmatpush1.bf16.msra.mxu0 %v1328
        %1368 = vmatprep.subr.bf16.mxu0 0
        %1369 = vmatpush1.bf16.msra.mxu0 %v1329
        %1370 = vmatprep.subr.bf16.mxu0 0
        %1371 = vmatpush1.bf16.msra.mxu0 %v1330
        %1372 = vmatprep.subr.bf16.mxu0 0
        %1373 = vmatpush1.bf16.msra.mxu0 %v1331
        %1374 = vmatprep.subr.bf16.mxu0 0
        %1375 = vmatpush1.bf16.msra.mxu0 %v1332
        %1376 = vmatprep.subr.bf16.mxu0 0
        %1377 = vmatpush1.bf16.msra.mxu0 %v1333
        %1378 = vmatprep.subr.bf16.mxu0 0
        %1379 = vmatpush1.bf16.msra.mxu0 %v1334
        %1380 = vmatprep.subr.bf16.mxu0 0
        %1381 = vmatpush1.bf16.msra.mxu0 %v1335
        %1382 = vmatprep.subr.bf16.mxu0 0
        %1383 = vmatpush1.bf16.msra.mxu0 %v1336
        %1384 = vmatprep.subr.bf16.mxu0 0
        %1385 = vmatpush1.bf16.msra.mxu0 %v1337
        %1386 = vmatprep.mubr.bf16.mxu0 %v1218
        %1387 = vmatmul.mubr.bf16.gmra.mrb[0].mxu0 %v1217
        %v1388 = vpop.f32.mrb[0].mxu0
        %v1389 = vadd.f32 %v1256, %v1388
        %v1390 = vpop.f32.mrb[0].mxu0
        %v1391 = vpop.f32.mrb[0].mxu0
        %v1392 = vadd.f32 %v1256, %v1391
        %v1393 = vpop.f32.mrb[0].mxu0
        %1394 = vdwg.mxu0
        %v1395 = vadd.f32 %v1059, %v1389
        %v1396 = vadd.f32 %v1060, %v1392
        %v1397 = vld [vmem:[%s11] sm:$0x1]
        %v1398 = vld [vmem:[%s12] sm:$0x1]
        %1399 = vadd.xlane.f32.xlu0 %v1395
        %v1400 = vpop.xlane.xlu0 %1399
        %1401 = vadd.xlane.f32.xlu0 %v1396
        %v1402 = vpop.xlane.xlu0 %1401
        %v1403 = vmul.f32 %v1400, %v1026
        %v1404 = vmul.f32 %v1402, %v1026
        %v1405 = vsub.f32 %v1395, %v1403
        %v1406 = vsub.f32 %v1396, %v1404
        %v1407 = vmul.f32 %v1405, %v1405
        %v1408 = vmul.f32 %v1406, %v1406
        %1409 = vadd.xlane.f32.xlu0 %v1407
        %v1410 = vpop.xlane.xlu0 %1409
        %1411 = vadd.xlane.f32.xlu0 %v1408
        %v1412 = vpop.xlane.xlu0 %1411
        %v1413 = vmul.f32 %v1410, %v1026
        %v1414 = vmul.f32 %v1412, %v1026
        %v1415 = vadd.f32 %v1413, 1e-05
        %v1416 = vadd.f32 %v1414, 1e-05
        %v1417 = vrsqrt.pop %v1415
        %v1418 = vrsqrt.pop %v1416
        %v1419 = vmul.f32 %v1405, %v1417
        %v1420 = vmul.f32 %v1406, %v1418
        %v1422 = vlaneseq
        %v1423 = vshrl.u32 %v1422, 7
        %v1424 = vsub.s32 0, %v1423
        %v1425 = vrot.slane %v1397, %v1424
        %v1427 = vmul.f32 %v1419, %v1425
        %v1428 = vmul.f32 %v1420, %v1425
        %v1430 = vlaneseq
        %v1431 = vshrl.u32 %v1430, 7
        %v1432 = vsub.s32 0, %v1431
        %v1433 = vrot.slane %v1398, %v1432
        %v1435 = vadd.f32 %v1427, %v1433
        %v1436 = vadd.f32 %v1428, %v1433
        %v1437 = vpack.c.bf16 %v1436, %v1435
        %v1438 = vld [vmem:[#allocation5] sm:$0xff]
        %v1439 = vld [vmem:[#allocation5 + $0x8] sm:$0xf]
        %v1440 = vld [vmem:[#allocation5 + $0xc] sm:$0xff]
        %v1441 = vld [vmem:[#allocation5 + $0x14] sm:$0xf]
        %v1442 = vld [vmem:[#allocation5 + $0x18] sm:$0xff]
        %v1443 = vld [vmem:[#allocation5 + $0x20] sm:$0xf]
        %v1444 = vld [vmem:[#allocation5 + $0x24] sm:$0xff]
        %v1445 = vld [vmem:[#allocation5 + $0x2c] sm:$0xf]
        %v1446 = vld [vmem:[#allocation5 + $0x30] sm:$0xff]
        %v1447 = vld [vmem:[#allocation5 + $0x38] sm:$0xf]
        %v1448 = vld [vmem:[#allocation5 + $0x3c] sm:$0xff]
        %v1449 = vld [vmem:[#allocation5 + $0x44] sm:$0xf]
        %v1450 = vld [vmem:[#allocation5 + $0x48] sm:$0xff]
        %v1451 = vld [vmem:[#allocation5 + $0x50] sm:$0xf]
        %v1452 = vld [vmem:[#allocation5 + $0x54] sm:$0xff]
        %v1453 = vld [vmem:[#allocation5 + $0x5c] sm:$0xf]
        %v1454 = vld [vmem:[#allocation5 + $0x60] sm:$0xff]
        %v1455 = vld [vmem:[#allocation5 + $0x68] sm:$0xf]
        %v1456 = vld [vmem:[#allocation5 + $0x6c] sm:$0xff]
        %v1457 = vld [vmem:[#allocation5 + $0x74] sm:$0xf]
        %v1458 = vld [vmem:[#allocation5 + $0x78] sm:$0xff]
        %v1459 = vld [vmem:[#allocation5 + $0x80] sm:$0xf]
        %v1460 = vld [vmem:[#allocation5 + $0x84] sm:$0xff]
        %v1461 = vld [vmem:[#allocation5 + $0x8c] sm:$0xf]
        %v1462 = vld [vmem:[#allocation5 + $0x90] sm:$0xff]
        %v1463 = vld [vmem:[#allocation5 + $0x98] sm:$0xf]
        %v1464 = vld [vmem:[#allocation5 + $0x9c] sm:$0xff]
        %v1465 = vld [vmem:[#allocation5 + $0xa4] sm:$0xf]
        %v1466 = vld [vmem:[#allocation5 + $0xa8] sm:$0xff]
        %v1467 = vld [vmem:[#allocation5 + $0xb0] sm:$0xf]
        %v1468 = vld [vmem:[#allocation5 + $0xb4] sm:$0xff]
        %v1469 = vld [vmem:[#allocation5 + $0xbc] sm:$0xf]
        %v1470 = vld [vmem:[%s2] sm:$0x7]
        %v1472 = vlaneseq
        %v1473 = vshrl.u32 %v1472, 7
        %v1474 = vsub.s32 0, %v1473
        %v1475 = vrot.slane %v1470, %v1474
        %v1476 = vlaneseq
        %v1477 = vshrl.u32 %v1476, 7
        %v1478 = vsub.s32 1, %v1477
        %v1479 = vrot.slane %v1470, %v1478
        %v1480 = vlaneseq
        %v1481 = vshrl.u32 %v1480, 7
        %v1482 = vsub.s32 2, %v1481
        %v1483 = vrot.slane %v1470, %v1482
        %v1519 = vunpack.c.l.b16 %v1438
        %v1520 = vunpack.c.h.b16 %v1438
        %v1521 = vunpack.c.l.b16 %v1439
        %v1522 = vunpack.c.l.b16 %v1440
        %v1523 = vunpack.c.h.b16 %v1440
        %v1524 = vunpack.c.l.b16 %v1441
        %v1525 = vunpack.c.l.b16 %v1442
        %v1526 = vunpack.c.h.b16 %v1442
        %v1527 = vunpack.c.l.b16 %v1443
        %v1528 = vunpack.c.l.b16 %v1444
        %v1529 = vunpack.c.h.b16 %v1444
        %v1530 = vunpack.c.l.b16 %v1445
        %v1531 = vunpack.c.l.b16 %v1446
        %v1532 = vunpack.c.h.b16 %v1446
        %v1533 = vunpack.c.l.b16 %v1447
        %v1534 = vunpack.c.l.b16 %v1448
        %v1535 = vunpack.c.h.b16 %v1448
        %v1536 = vunpack.c.l.b16 %v1449
        %v1537 = vunpack.c.l.b16 %v1450
        %v1538 = vunpack.c.h.b16 %v1450
        %v1539 = vunpack.c.l.b16 %v1451
        %v1540 = vunpack.c.l.b16 %v1452
        %v1541 = vunpack.c.h.b16 %v1452
        %v1542 = vunpack.c.l.b16 %v1453
        %v1543 = vunpack.c.l.b16 %v1454
        %v1544 = vunpack.c.h.b16 %v1454
        %v1545 = vunpack.c.l.b16 %v1455
        %v1546 = vunpack.c.l.b16 %v1456
        %v1547 = vunpack.c.h.b16 %v1456
        %v1548 = vunpack.c.l.b16 %v1457
        %v1549 = vunpack.c.l.b16 %v1458
        %v1550 = vunpack.c.h.b16 %v1458
        %v1551 = vunpack.c.l.b16 %v1459
        %v1552 = vunpack.c.l.b16 %v1460
        %v1553 = vunpack.c.h.b16 %v1460
        %v1554 = vunpack.c.l.b16 %v1461
        %v1555 = vunpack.c.l.b16 %v1462
        %v1556 = vunpack.c.h.b16 %v1462
        %v1557 = vunpack.c.l.b16 %v1463
        %v1558 = vunpack.c.l.b16 %v1464
        %v1559 = vunpack.c.h.b16 %v1464
        %v1560 = vunpack.c.l.b16 %v1465
        %v1561 = vunpack.c.l.b16 %v1466
        %v1562 = vunpack.c.h.b16 %v1466
        %v1563 = vunpack.c.l.b16 %v1467
        %v1564 = vunpack.c.l.b16 %v1468
        %v1565 = vunpack.c.h.b16 %v1468
        %v1566 = vunpack.c.l.b16 %v1469
        %v1567 = vpack.c.b16 %v1522, %v1519
        %v1568 = vpack.c.b16 %v1523, %v1520
        %v1569 = vpack.c.b16 %v1524, %v1521
        %v1570 = vpack.c.b16 %v1528, %v1525
        %v1571 = vpack.c.b16 %v1529, %v1526
        %v1572 = vpack.c.b16 %v1530, %v1527
        %v1573 = vpack.c.b16 %v1534, %v1531
        %v1574 = vpack.c.b16 %v1535, %v1532
        %v1575 = vpack.c.b16 %v1536, %v1533
        %v1576 = vpack.c.b16 %v1540, %v1537
        %v1577 = vpack.c.b16 %v1541, %v1538
        %v1578 = vpack.c.b16 %v1542, %v1539
        %v1579 = vpack.c.b16 %v1546, %v1543
        %v1580 = vpack.c.b16 %v1547, %v1544
        %v1581 = vpack.c.b16 %v1548, %v1545
        %v1582 = vpack.c.b16 %v1552, %v1549
        %v1583 = vpack.c.b16 %v1553, %v1550
        %v1584 = vpack.c.b16 %v1554, %v1551
        %v1585 = vpack.c.b16 %v1558, %v1555
        %v1586 = vpack.c.b16 %v1559, %v1556
        %v1587 = vpack.c.b16 %v1560, %v1557
        %v1588 = vpack.c.b16 %v1564, %v1561
        %v1589 = vpack.c.b16 %v1565, %v1562
        %v1590 = vpack.c.b16 %v1566, %v1563
        %1615 = vmatprep.subr.bf16.mxu0 %v1568
        %1616 = vmatpush1.bf16.msra.mxu0 %v1567
        %1617 = vmatprep.subr.bf16.mxu0 %v1571
        %1618 = vmatpush1.bf16.msra.mxu0 %v1570
        %1619 = vmatprep.subr.bf16.mxu0 %v1574
        %1620 = vmatpush1.bf16.msra.mxu0 %v1573
        %1621 = vmatprep.subr.bf16.mxu0 %v1577
        %1622 = vmatpush1.bf16.msra.mxu0 %v1576
        %1623 = vmatprep.subr.bf16.mxu0 %v1580
        %1624 = vmatpush1.bf16.msra.mxu0 %v1579
        %1625 = vmatprep.subr.bf16.mxu0 %v1583
        %1626 = vmatpush1.bf16.msra.mxu0 %v1582
        %1627 = vmatprep.subr.bf16.mxu0 %v1586
        %1628 = vmatpush1.bf16.msra.mxu0 %v1585
        %1629 = vmatprep.subr.bf16.mxu0 %v1589
        %1630 = vmatpush1.bf16.msra.mxu0 %v1588
        %1631 = vmatprep.subr.bf16.mxu0 0
        %1632 = vmatpush1.bf16.msra.mxu0 0
        %1633 = vmatprep.subr.bf16.mxu0 0
        %1634 = vmatpush1.bf16.msra.mxu0 0
        %1635 = vmatprep.subr.bf16.mxu0 0
        %1636 = vmatpush1.bf16.msra.mxu0 0
        %1637 = vmatprep.subr.bf16.mxu0 0
        %1638 = vmatpush1.bf16.msra.mxu0 0
        %1639 = vmatprep.subr.bf16.mxu0 0
        %1640 = vmatpush1.bf16.msra.mxu0 0
        %1641 = vmatprep.subr.bf16.mxu0 0
        %1642 = vmatpush1.bf16.msra.mxu0 0
        %1643 = vmatprep.subr.bf16.mxu0 0
        %1644 = vmatpush1.bf16.msra.mxu0 0
        %1645 = vmatprep.subr.bf16.mxu0 0
        %1646 = vmatpush1.bf16.msra.mxu0 0
        %1647 = vmatprep.mubr.bf16.mxu0 0
        %1648 = vmatmul.mubr.bf16.gmra.mrb[0].mxu0 %v1437
        %v1649 = vpop.f32.mrb[0].mxu0
        %v1650 = vadd.f32 %v1475, %v1649
        %v1651 = vpop.f32.mrb[0].mxu0
        %v1652 = vadd.f32 %v1479, %v1651
        %v1653 = vpop.f32.mrb[0].mxu0
        %v1654 = vadd.f32 %v1475, %v1653
        %v1655 = vpop.f32.mrb[0].mxu0
        %v1656 = vadd.f32 %v1479, %v1655
        %1657 = vdwg.mxu0
        %1658 = vmatprep.subr.bf16.mxu0 0
        %1659 = vmatpush1.bf16.msra.mxu0 %v1569
        %1660 = vmatprep.subr.bf16.mxu0 0
        %1661 = vmatpush1.bf16.msra.mxu0 %v1572
        %1662 = vmatprep.subr.bf16.mxu0 0
        %1663 = vmatpush1.bf16.msra.mxu0 %v1575
        %1664 = vmatprep.subr.bf16.mxu0 0
        %1665 = vmatpush1.bf16.msra.mxu0 %v1578
        %1666 = vmatprep.subr.bf16.mxu0 0
        %1667 = vmatpush1.bf16.msra.mxu0 %v1581
        %1668 = vmatprep.subr.bf16.mxu0 0
        %1669 = vmatpush1.bf16.msra.mxu0 %v1584
        %1670 = vmatprep.subr.bf16.mxu0 0
        %1671 = vmatpush1.bf16.msra.mxu0 %v1587
        %1672 = vmatprep.subr.bf16.mxu0 0
        %1673 = vmatpush1.bf16.msra.mxu0 %v1590
        %1674 = vmatprep.subr.bf16.mxu0 0
        %1675 = vmatpush1.bf16.msra.mxu0 0
        %1676 = vmatprep.subr.bf16.mxu0 0
        %1677 = vmatpush1.bf16.msra.mxu0 0
        %1678 = vmatprep.subr.bf16.mxu0 0
        %1679 = vmatpush1.bf16.msra.mxu0 0
        %1680 = vmatprep.subr.bf16.mxu0 0
        %1681 = vmatpush1.bf16.msra.mxu0 0
        %1682 = vmatprep.subr.bf16.mxu0 0
        %1683 = vmatpush1.bf16.msra.mxu0 0
        %1684 = vmatprep.subr.bf16.mxu0 0
        %1685 = vmatpush1.bf16.msra.mxu0 0
        %1686 = vmatprep.subr.bf16.mxu0 0
        %1687 = vmatpush1.bf16.msra.mxu0 0
        %1688 = vmatprep.subr.bf16.mxu0 0
        %1689 = vmatpush1.bf16.msra.mxu0 0
        %1690 = vmatprep.mubr.bf16.mxu0 0
        %1691 = vmatmul.mubr.bf16.gmra.mrb[0].mxu0 %v1437
        %v1692 = vpop.f32.mrb[0].mxu0
        %v1693 = vadd.f32 %v1483, %v1692
        %v1694 = vpop.f32.mrb[0].mxu0
        %v1695 = vpop.f32.mrb[0].mxu0
        %v1696 = vadd.f32 %v1483, %v1695
        %v1697 = vpop.f32.mrb[0].mxu0
        %1698 = vdwg.mxu0
        %v1699 = vmul.f32 %v1650, 0.088388346
        %v1700 = vmul.f32 %v1654, 0.088388346
        %v1701 = vpack.c.bf16 %v1700, %v1699
        %v1702 = vpack.c.bf16 %v1656, %v1652
        %v1703 = vpack.c.bf16 %v1696, %v1693
        %1704 = vmatprep.subr.bf16.mxu0 0
        %1705 = vmatpush1.bf16.xpose.msra.mxu0 %v1702
        %1706 = vmatprep.subr.bf16.mxu0 0
        %1707 = vmatpush1.bf16.xpose.msra.mxu0 0
        %1708 = vmatprep.subr.bf16.mxu0 0
        %1709 = vmatpush1.bf16.xpose.msra.mxu0 0
        %1710 = vmatprep.subr.bf16.mxu0 0
        %1711 = vmatpush1.bf16.xpose.msra.mxu0 0
        %1712 = vmatprep.subr.bf16.mxu0 0
        %1713 = vmatpush1.bf16.xpose.msra.mxu0 0
        %1714 = vmatprep.subr.bf16.mxu0 0
        %1715 = vmatpush1.bf16.xpose.msra.mxu0 0
        %1716 = vmatprep.subr.bf16.mxu0 0
        %1717 = vmatpush1.bf16.xpose.msra.mxu0 0
        %1718 = vmatprep.subr.bf16.mxu0 0
        %1719 = vmatpush1.bf16.xpose.msra.mxu0 0
        %1720 = vmatprep.subr.bf16.mxu0 0
        %1721 = vmatpush1.bf16.xpose.msra.mxu0 0
        %1722 = vmatprep.subr.bf16.mxu0 0
        %1723 = vmatpush1.bf16.xpose.msra.mxu0 0
        %1724 = vmatprep.subr.bf16.mxu0 0
        %1725 = vmatpush1.bf16.xpose.msra.mxu0 0
        %1726 = vmatprep.subr.bf16.mxu0 0
        %1727 = vmatpush1.bf16.xpose.msra.mxu0 0
        %1728 = vmatprep.subr.bf16.mxu0 0
        %1729 = vmatpush1.bf16.xpose.msra.mxu0 0
        %1730 = vmatprep.subr.bf16.mxu0 0
        %1731 = vmatpush1.bf16.xpose.msra.mxu0 0
        %1732 = vmatprep.subr.bf16.mxu0 0
        %1733 = vmatpush1.bf16.xpose.msra.mxu0 0
        %1734 = vmatprep.subr.bf16.mxu0 0
        %1735 = vmatpush1.bf16.xpose.msra.mxu0 0
        %1736 = vmatprep.mubr.bf16.mxu0 0
        %1737 = vmatmul.mubr.bf16.gmra.mrb[0].mxu0 %v1701
        %v1738 = vpop.f32.mrb[0].mxu0
        %v1739 = vadd.f32 0.0, %v1738
        %v1740 = vpop.f32.mrb[0].mxu0
        %v1741 = vpop.f32.mrb[0].mxu0
        %v1742 = vadd.f32 0.0, %v1741
        %v1743 = vpop.f32.mrb[0].mxu0
        %1744 = vdwg.mxu0
        %v1745 = vsel %vm525, %v1739, -1e+30
        %v1746 = vsel %vm526, %v1742, -1e+30
        %v1747 = vsel %vm837, %v1745, -inf
        %1748 = vmax.xlane.f32.xlu0 %v1747
        %v1749 = vpop.xlane.xlu0 %1748
        %v1750 = vsel %vm837, %v1746, -inf
        %1751 = vmax.xlane.f32.xlu0 %v1750
        %v1752 = vpop.xlane.xlu0 %1751
        %v1753 = vsub.f32 %v1745, %v1749
        %v1754 = vsub.f32 %v1746, %v1752
        %v1755 = vmul.f32 %v1753, 1.442695
        %v1756 = vpow.pop %v1755
        %v1757 = vmul.f32 %v1754, 1.442695
        %v1758 = vpow.pop %v1757
        %v1759 = vsel %vm837, %v1756, 0.0
        %1760 = vadd.xlane.f32.xlu0 %v1759
        %v1761 = vpop.xlane.xlu0 %1760
        %v1762 = vsel %vm837, %v1758, 0.0
        %1763 = vadd.xlane.f32.xlu0 %v1762
        %v1764 = vpop.xlane.xlu0 %1763
        %v1765 = vrcp.pop %v1761
        %v1766 = vmul.f32 %v1756, %v1765
        %v1767 = vrcp.pop %v1764
        %v1768 = vmul.f32 %v1758, %v1767
        %v1769 = vpack.c.bf16 %v1768, %v1766
        %v1771 = vsel %vm837, %v1769, 0
        %1773 = vmatprep.subr.bf16.mxu0 0
        %1774 = vmatpush1.bf16.msra.mxu0 %v1703
        %1775 = vmatprep.subr.bf16.mxu0 0
        %1776 = vmatpush1.bf16.msra.mxu0 0
        %1777 = vmatprep.subr.bf16.mxu0 0
        %1778 = vmatpush1.bf16.msra.mxu0 0
        %1779 = vmatprep.subr.bf16.mxu0 0
        %1780 = vmatpush1.bf16.msra.mxu0 0
        %1781 = vmatprep.subr.bf16.mxu0 0
        %1782 = vmatpush1.bf16.msra.mxu0 0
        %1783 = vmatprep.subr.bf16.mxu0 0
        %1784 = vmatpush1.bf16.msra.mxu0 0
        %1785 = vmatprep.subr.bf16.mxu0 0
        %1786 = vmatpush1.bf16.msra.mxu0 0
        %1787 = vmatprep.subr.bf16.mxu0 0
        %1788 = vmatpush1.bf16.msra.mxu0 0
        %1789 = vmatprep.subr.bf16.mxu0 0
        %1790 = vmatpush1.bf16.msra.mxu0 0
        %1791 = vmatprep.subr.bf16.mxu0 0
        %1792 = vmatpush1.bf16.msra.mxu0 0
        %1793 = vmatprep.subr.bf16.mxu0 0
        %1794 = vmatpush1.bf16.msra.mxu0 0
        %1795 = vmatprep.subr.bf16.mxu0 0
        %1796 = vmatpush1.bf16.msra.mxu0 0
        %1797 = vmatprep.subr.bf16.mxu0 0
        %1798 = vmatpush1.bf16.msra.mxu0 0
        %1799 = vmatprep.subr.bf16.mxu0 0
        %1800 = vmatpush1.bf16.msra.mxu0 0
        %1801 = vmatprep.subr.bf16.mxu0 0
        %1802 = vmatpush1.bf16.msra.mxu0 0
        %1803 = vmatprep.subr.bf16.mxu0 0
        %1804 = vmatpush1.bf16.msra.mxu0 0
        %1805 = vmatprep.mubr.bf16.mxu0 0
        %1806 = vmatmul.mubr.bf16.gmra.mrb[0].mxu0 %v1771
        %v1807 = vpop.f32.mrb[0].mxu0
        %v1808 = vadd.f32 0.0, %v1807
        %v1809 = vpop.f32.mrb[0].mxu0
        %v1810 = vpop.f32.mrb[0].mxu0
        %v1811 = vadd.f32 0.0, %v1810
        %v1812 = vpop.f32.mrb[0].mxu0
        %1813 = vdwg.mxu0
        %v1814 = vpack.c.bf16 %v1811, %v1808
        %v1815 = vld [vmem:[#allocation7] sm:$0xf]
        %v1816 = vld [vmem:[#allocation7 + $0x4] sm:$0xf]
        %v1817 = vld [vmem:[#allocation7 + $0x8] sm:$0xf]
        %v1818 = vld [vmem:[#allocation7 + $0xc] sm:$0xf]
        %v1819 = vld [vmem:[#allocation7 + $0x10] sm:$0xf]
        %v1820 = vld [vmem:[#allocation7 + $0x14] sm:$0xf]
        %v1821 = vld [vmem:[#allocation7 + $0x18] sm:$0xf]
        %v1822 = vld [vmem:[#allocation7 + $0x1c] sm:$0xf]
        %v1823 = vld [vmem:[#allocation7 + $0x20] sm:$0xf]
        %v1824 = vld [vmem:[#allocation7 + $0x24] sm:$0xf]
        %v1825 = vld [vmem:[#allocation7 + $0x28] sm:$0xf]
        %v1826 = vld [vmem:[#allocation7 + $0x2c] sm:$0xf]
        %v1827 = vld [vmem:[#allocation7 + $0x30] sm:$0xf]
        %v1828 = vld [vmem:[#allocation7 + $0x34] sm:$0xf]
        %v1829 = vld [vmem:[#allocation7 + $0x38] sm:$0xf]
        %v1830 = vld [vmem:[#allocation7 + $0x3c] sm:$0xf]
        %v1831 = vld [vmem:[%s4] sm:$0x1]
        %v1833 = vlaneseq
        %v1834 = vshrl.u32 %v1833, 7
        %v1835 = vsub.s32 0, %v1834
        %v1836 = vrot.slane %v1831, %v1835
        %v1854 = vunpack.c.l.b16 %v1815
        %v1855 = vunpack.c.l.b16 %v1816
        %v1856 = vunpack.c.l.b16 %v1817
        %v1857 = vunpack.c.l.b16 %v1818
        %v1858 = vunpack.c.l.b16 %v1819
        %v1859 = vunpack.c.l.b16 %v1820
        %v1860 = vunpack.c.l.b16 %v1821
        %v1861 = vunpack.c.l.b16 %v1822
        %v1862 = vunpack.c.l.b16 %v1823
        %v1863 = vunpack.c.l.b16 %v1824
        %v1864 = vunpack.c.l.b16 %v1825
        %v1865 = vunpack.c.l.b16 %v1826
        %v1866 = vunpack.c.l.b16 %v1827
        %v1867 = vunpack.c.l.b16 %v1828
        %v1868 = vunpack.c.l.b16 %v1829
        %v1869 = vunpack.c.l.b16 %v1830
        %v1870 = vpack.c.b16 %v1855, %v1854
        %v1871 = vpack.c.b16 %v1857, %v1856
        %v1872 = vpack.c.b16 %v1859, %v1858
        %v1873 = vpack.c.b16 %v1861, %v1860
        %v1874 = vpack.c.b16 %v1863, %v1862
        %v1875 = vpack.c.b16 %v1865, %v1864
        %v1876 = vpack.c.b16 %v1867, %v1866
        %v1877 = vpack.c.b16 %v1869, %v1868
        %1886 = vmatprep.subr.bf16.mxu0 0
        %1887 = vmatpush1.bf16.msra.mxu0 %v1870
        %1888 = vmatprep.subr.bf16.mxu0 0
        %1889 = vmatpush1.bf16.msra.mxu0 %v1871
        %1890 = vmatprep.subr.bf16.mxu0 0
        %1891 = vmatpush1.bf16.msra.mxu0 %v1872
        %1892 = vmatprep.subr.bf16.mxu0 0
        %1893 = vmatpush1.bf16.msra.mxu0 %v1873
        %1894 = vmatprep.subr.bf16.mxu0 0
        %1895 = vmatpush1.bf16.msra.mxu0 %v1874
        %1896 = vmatprep.subr.bf16.mxu0 0
        %1897 = vmatpush1.bf16.msra.mxu0 %v1875
        %1898 = vmatprep.subr.bf16.mxu0 0
        %1899 = vmatpush1.bf16.msra.mxu0 %v1876
        %1900 = vmatprep.subr.bf16.mxu0 0
        %1901 = vmatpush1.bf16.msra.mxu0 %v1877
        %1902 = vmatprep.subr.bf16.mxu0 0
        %1903 = vmatpush1.bf16.msra.mxu0 0
        %1904 = vmatprep.subr.bf16.mxu0 0
        %1905 = vmatpush1.bf16.msra.mxu0 0
        %1906 = vmatprep.subr.bf16.mxu0 0
        %1907 = vmatpush1.bf16.msra.mxu0 0
        %1908 = vmatprep.subr.bf16.mxu0 0
        %1909 = vmatpush1.bf16.msra.mxu0 0
        %1910 = vmatprep.subr.bf16.mxu0 0
        %1911 = vmatpush1.bf16.msra.mxu0 0
        %1912 = vmatprep.subr.bf16.mxu0 0
        %1913 = vmatpush1.bf16.msra.mxu0 0
        %1914 = vmatprep.subr.bf16.mxu0 0
        %1915 = vmatpush1.bf16.msra.mxu0 0
        %1916 = vmatprep.subr.bf16.mxu0 0
        %1917 = vmatpush1.bf16.msra.mxu0 0
        %1918 = vmatprep.mubr.bf16.mxu0 0
        %1919 = vmatmul.mubr.bf16.gmra.mrb[0].mxu0 %v1814
        %v1920 = vpop.f32.mrb[0].mxu0
        %v1921 = vadd.f32 %v1836, %v1920
        %v1922 = vpop.f32.mrb[0].mxu0
        %v1923 = vpop.f32.mrb[0].mxu0
        %v1924 = vadd.f32 %v1836, %v1923
        %v1925 = vpop.f32.mrb[0].mxu0
        %1926 = vdwg.mxu0
        %v1927 = vadd.f32 %v1435, %v1921
        %v1928 = vadd.f32 %v1436, %v1924
        %v1929 = vld [vmem:[%s9] sm:$0x1]
        %v1930 = vld [vmem:[%s10] sm:$0x1]
        %1931 = vadd.xlane.f32.xlu0 %v1927
        %v1932 = vpop.xlane.xlu0 %1931
        %1933 = vadd.xlane.f32.xlu0 %v1928
        %v1934 = vpop.xlane.xlu0 %1933
        %v1935 = vmul.f32 %v1932, %v1026
        %v1936 = vmul.f32 %v1934, %v1026
        %v1937 = vsub.f32 %v1927, %v1935
        %v1938 = vsub.f32 %v1928, %v1936
        %v1939 = vmul.f32 %v1937, %v1937
        %v1940 = vmul.f32 %v1938, %v1938
        %1941 = vadd.xlane.f32.xlu0 %v1939
        %v1942 = vpop.xlane.xlu0 %1941
        %1943 = vadd.xlane.f32.xlu0 %v1940
        %v1944 = vpop.xlane.xlu0 %1943
        %v1945 = vmul.f32 %v1942, %v1026
        %v1946 = vmul.f32 %v1944, %v1026
        %v1947 = vadd.f32 %v1945, 1e-05
        %v1948 = vadd.f32 %v1946, 1e-05
        %v1949 = vrsqrt.pop %v1947
        %v1950 = vrsqrt.pop %v1948
        %v1951 = vmul.f32 %v1937, %v1949
        %v1952 = vmul.f32 %v1938, %v1950
        %v1954 = vlaneseq
        %v1955 = vshrl.u32 %v1954, 7
        %v1956 = vsub.s32 0, %v1955
        %v1957 = vrot.slane %v1929, %v1956
        %v1959 = vmul.f32 %v1951, %v1957
        %v1960 = vmul.f32 %v1952, %v1957
        %v1962 = vlaneseq
        %v1963 = vshrl.u32 %v1962, 7
        %v1964 = vsub.s32 0, %v1963
        %v1965 = vrot.slane %v1930, %v1964
        %v1967 = vadd.f32 %v1959, %v1965
        %v1968 = vadd.f32 %v1960, %v1965
        %v1969 = vpack.c.bf16 %v1968, %v1967
        %v1970 = vld [vmem:[#allocation8] sm:$0xff]
        %v1971 = vld [vmem:[#allocation8 + $0x8] sm:$0xff]
        %v1972 = vld [vmem:[#allocation8 + $0x10] sm:$0xff]
        %v1973 = vld [vmem:[#allocation8 + $0x18] sm:$0xff]
        %v1974 = vld [vmem:[#allocation8 + $0x20] sm:$0xff]
        %v1975 = vld [vmem:[#allocation8 + $0x28] sm:$0xff]
        %v1976 = vld [vmem:[#allocation8 + $0x30] sm:$0xff]
        %v1977 = vld [vmem:[#allocation8 + $0x38] sm:$0xff]
        %v1978 = vld [vmem:[#allocation8 + $0x40] sm:$0xff]
        %v1979 = vld [vmem:[#allocation8 + $0x48] sm:$0xff]
        %v1980 = vld [vmem:[#allocation8 + $0x50] sm:$0xff]
        %v1981 = vld [vmem:[#allocation8 + $0x58] sm:$0xff]
        %v1982 = vld [vmem:[#allocation8 + $0x60] sm:$0xff]
        %v1983 = vld [vmem:[#allocation8 + $0x68] sm:$0xff]
        %v1984 = vld [vmem:[#allocation8 + $0x70] sm:$0xff]
        %v1985 = vld [vmem:[#allocation8 + $0x78] sm:$0xff]
        %v1986 = vld [vmem:[%s6] sm:$0x3]
        %v1988 = vlaneseq
        %v1989 = vshrl.u32 %v1988, 7
        %v1990 = vsub.s32 0, %v1989
        %v1991 = vrot.slane %v1986, %v1990
        %v1992 = vlaneseq
        %v1993 = vshrl.u32 %v1992, 7
        %v1994 = vsub.s32 1, %v1993
        %v1995 = vrot.slane %v1986, %v1994
        %v2014 = vunpack.c.l.b16 %v1970
        %v2015 = vunpack.c.h.b16 %v1970
        %v2016 = vunpack.c.l.b16 %v1971
        %v2017 = vunpack.c.h.b16 %v1971
        %v2018 = vunpack.c.l.b16 %v1972
        %v2019 = vunpack.c.h.b16 %v1972
        %v2020 = vunpack.c.l.b16 %v1973
        %v2021 = vunpack.c.h.b16 %v1973
        %v2022 = vunpack.c.l.b16 %v1974
        %v2023 = vunpack.c.h.b16 %v1974
        %v2024 = vunpack.c.l.b16 %v1975
        %v2025 = vunpack.c.h.b16 %v1975
        %v2026 = vunpack.c.l.b16 %v1976
        %v2027 = vunpack.c.h.b16 %v1976
        %v2028 = vunpack.c.l.b16 %v1977
        %v2029 = vunpack.c.h.b16 %v1977
        %v2030 = vunpack.c.l.b16 %v1978
        %v2031 = vunpack.c.h.b16 %v1978
        %v2032 = vunpack.c.l.b16 %v1979
        %v2033 = vunpack.c.h.b16 %v1979
        %v2034 = vunpack.c.l.b16 %v1980
        %v2035 = vunpack.c.h.b16 %v1980
        %v2036 = vunpack.c.l.b16 %v1981
        %v2037 = vunpack.c.h.b16 %v1981
        %v2038 = vunpack.c.l.b16 %v1982
        %v2039 = vunpack.c.h.b16 %v1982
        %v2040 = vunpack.c.l.b16 %v1983
        %v2041 = vunpack.c.h.b16 %v1983
        %v2042 = vunpack.c.l.b16 %v1984
        %v2043 = vunpack.c.h.b16 %v1984
        %v2044 = vunpack.c.l.b16 %v1985
        %v2045 = vunpack.c.h.b16 %v1985
        %v2046 = vpack.c.b16 %v2016, %v2014
        %v2047 = vpack.c.b16 %v2017, %v2015
        %v2048 = vpack.c.b16 %v2020, %v2018
        %v2049 = vpack.c.b16 %v2021, %v2019
        %v2050 = vpack.c.b16 %v2024, %v2022
        %v2051 = vpack.c.b16 %v2025, %v2023
        %v2052 = vpack.c.b16 %v2028, %v2026
        %v2053 = vpack.c.b16 %v2029, %v2027
        %v2054 = vpack.c.b16 %v2032, %v2030
        %v2055 = vpack.c.b16 %v2033, %v2031
        %v2056 = vpack.c.b16 %v2036, %v2034
        %v2057 = vpack.c.b16 %v2037, %v2035
        %v2058 = vpack.c.b16 %v2040, %v2038
        %v2059 = vpack.c.b16 %v2041, %v2039
        %v2060 = vpack.c.b16 %v2044, %v2042
        %v2061 = vpack.c.b16 %v2045, %v2043
        %2078 = vmatprep.subr.bf16.mxu0 %v2047
        %2079 = vmatpush1.bf16.msra.mxu0 %v2046
        %2080 = vmatprep.subr.bf16.mxu0 %v2049
        %2081 = vmatpush1.bf16.msra.mxu0 %v2048
        %2082 = vmatprep.subr.bf16.mxu0 %v2051
        %2083 = vmatpush1.bf16.msra.mxu0 %v2050
        %2084 = vmatprep.subr.bf16.mxu0 %v2053
        %2085 = vmatpush1.bf16.msra.mxu0 %v2052
        %2086 = vmatprep.subr.bf16.mxu0 %v2055
        %2087 = vmatpush1.bf16.msra.mxu0 %v2054
        %2088 = vmatprep.subr.bf16.mxu0 %v2057
        %2089 = vmatpush1.bf16.msra.mxu0 %v2056
        %2090 = vmatprep.subr.bf16.mxu0 %v2059
        %2091 = vmatpush1.bf16.msra.mxu0 %v2058
        %2092 = vmatprep.subr.bf16.mxu0 %v2061
        %2093 = vmatpush1.bf16.msra.mxu0 %v2060
        %2094 = vmatprep.subr.bf16.mxu0 0
        %2095 = vmatpush1.bf16.msra.mxu0 0
        %2096 = vmatprep.subr.bf16.mxu0 0
        %2097 = vmatpush1.bf16.msra.mxu0 0
        %2098 = vmatprep.subr.bf16.mxu0 0
        %2099 = vmatpush1.bf16.msra.mxu0 0
        %2100 = vmatprep.subr.bf16.mxu0 0
        %2101 = vmatpush1.bf16.msra.mxu0 0
        %2102 = vmatprep.subr.bf16.mxu0 0
        %2103 = vmatpush1.bf16.msra.mxu0 0
        %2104 = vmatprep.subr.bf16.mxu0 0
        %2105 = vmatpush1.bf16.msra.mxu0 0
        %2106 = vmatprep.subr.bf16.mxu0 0
        %2107 = vmatpush1.bf16.msra.mxu0 0
        %2108 = vmatprep.subr.bf16.mxu0 0
        %2109 = vmatpush1.bf16.msra.mxu0 0
        %2110 = vmatprep.mubr.bf16.mxu0 0
        %2111 = vmatmul.mubr.bf16.gmra.mrb[0].mxu0 %v1969
        %v2112 = vpop.f32.mrb[0].mxu0
        %v2113 = vadd.f32 %v1991, %v2112
        %v2114 = vpop.f32.mrb[0].mxu0
        %v2115 = vadd.f32 %v1995, %v2114
        %v2116 = vpop.f32.mrb[0].mxu0
        %v2117 = vadd.f32 %v1991, %v2116
        %v2118 = vpop.f32.mrb[0].mxu0
        %v2119 = vadd.f32 %v1995, %v2118
        %2120 = vdwg.mxu0
        %v2121 = vmax.f32 %v2113, 0.0
        %v2122 = vmax.f32 %v2115, 0.0
        %v2123 = vmax.f32 %v2117, 0.0
        %v2124 = vmax.f32 %v2119, 0.0
        %v2125 = vpack.c.bf16 %v2123, %v2121
        %v2126 = vpack.c.bf16 %v2124, %v2122
        %v2127 = vld [vmem:[#allocation10] sm:$0xf]
        %v2128 = vld [vmem:[#allocation10 + $0x4] sm:$0xf]
        %v2129 = vld [vmem:[#allocation10 + $0x8] sm:$0xf]
        %v2130 = vld [vmem:[#allocation10 + $0xc] sm:$0xf]
        %v2131 = vld [vmem:[#allocation10 + $0x10] sm:$0xf]
        %v2132 = vld [vmem:[#allocation10 + $0x14] sm:$0xf]
        %v2133 = vld [vmem:[#allocation10 + $0x18] sm:$0xf]
        %v2134 = vld [vmem:[#allocation10 + $0x1c] sm:$0xf]
        %v2135 = vld [vmem:[#allocation10 + $0x20] sm:$0xf]
        %v2136 = vld [vmem:[#allocation10 + $0x24] sm:$0xf]
        %v2137 = vld [vmem:[#allocation10 + $0x28] sm:$0xf]
        %v2138 = vld [vmem:[#allocation10 + $0x2c] sm:$0xf]
        %v2139 = vld [vmem:[#allocation10 + $0x30] sm:$0xf]
        %v2140 = vld [vmem:[#allocation10 + $0x34] sm:$0xf]
        %v2141 = vld [vmem:[#allocation10 + $0x38] sm:$0xf]
        %v2142 = vld [vmem:[#allocation10 + $0x3c] sm:$0xf]
        %v2143 = vld [vmem:[#allocation10 + $0x40] sm:$0xf]
        %v2144 = vld [vmem:[#allocation10 + $0x44] sm:$0xf]
        %v2145 = vld [vmem:[#allocation10 + $0x48] sm:$0xf]
        %v2146 = vld [vmem:[#allocation10 + $0x4c] sm:$0xf]
        %v2147 = vld [vmem:[#allocation10 + $0x50] sm:$0xf]
        %v2148 = vld [vmem:[#allocation10 + $0x54] sm:$0xf]
        %v2149 = vld [vmem:[#allocation10 + $0x58] sm:$0xf]
        %v2150 = vld [vmem:[#allocation10 + $0x5c] sm:$0xf]
        %v2151 = vld [vmem:[#allocation10 + $0x60] sm:$0xf]
        %v2152 = vld [vmem:[#allocation10 + $0x64] sm:$0xf]
        %v2153 = vld [vmem:[#allocation10 + $0x68] sm:$0xf]
        %v2154 = vld [vmem:[#allocation10 + $0x6c] sm:$0xf]
        %v2155 = vld [vmem:[#allocation10 + $0x70] sm:$0xf]
        %v2156 = vld [vmem:[#allocation10 + $0x74] sm:$0xf]
        %v2157 = vld [vmem:[#allocation10 + $0x78] sm:$0xf]
        %v2158 = vld [vmem:[#allocation10 + $0x7c] sm:$0xf]
        %v2159 = vld [vmem:[%s8] sm:$0x1]
        %v2161 = vlaneseq
        %v2162 = vshrl.u32 %v2161, 7
        %v2163 = vsub.s32 0, %v2162
        %v2164 = vrot.slane %v2159, %v2163
        %v2198 = vunpack.c.l.b16 %v2127
        %v2199 = vunpack.c.l.b16 %v2128
        %v2200 = vunpack.c.l.b16 %v2129
        %v2201 = vunpack.c.l.b16 %v2130
        %v2202 = vunpack.c.l.b16 %v2131
        %v2203 = vunpack.c.l.b16 %v2132
        %v2204 = vunpack.c.l.b16 %v2133
        %v2205 = vunpack.c.l.b16 %v2134
        %v2206 = vunpack.c.l.b16 %v2135
        %v2207 = vunpack.c.l.b16 %v2136
        %v2208 = vunpack.c.l.b16 %v2137
        %v2209 = vunpack.c.l.b16 %v2138
        %v2210 = vunpack.c.l.b16 %v2139
        %v2211 = vunpack.c.l.b16 %v2140
        %v2212 = vunpack.c.l.b16 %v2141
        %v2213 = vunpack.c.l.b16 %v2142
        %v2214 = vunpack.c.l.b16 %v2143
        %v2215 = vunpack.c.l.b16 %v2144
        %v2216 = vunpack.c.l.b16 %v2145
        %v2217 = vunpack.c.l.b16 %v2146
        %v2218 = vunpack.c.l.b16 %v2147
        %v2219 = vunpack.c.l.b16 %v2148
        %v2220 = vunpack.c.l.b16 %v2149
        %v2221 = vunpack.c.l.b16 %v2150
        %v2222 = vunpack.c.l.b16 %v2151
        %v2223 = vunpack.c.l.b16 %v2152
        %v2224 = vunpack.c.l.b16 %v2153
        %v2225 = vunpack.c.l.b16 %v2154
        %v2226 = vunpack.c.l.b16 %v2155
        %v2227 = vunpack.c.l.b16 %v2156
        %v2228 = vunpack.c.l.b16 %v2157
        %v2229 = vunpack.c.l.b16 %v2158
        %v2230 = vpack.c.b16 %v2199, %v2198
        %v2231 = vpack.c.b16 %v2201, %v2200
        %v2232 = vpack.c.b16 %v2203, %v2202
        %v2233 = vpack.c.b16 %v2205, %v2204
        %v2234 = vpack.c.b16 %v2207, %v2206
        %v2235 = vpack.c.b16 %v2209, %v2208
        %v2236 = vpack.c.b16 %v2211, %v2210
        %v2237 = vpack.c.b16 %v2213, %v2212
        %v2238 = vpack.c.b16 %v2215, %v2214
        %v2239 = vpack.c.b16 %v2217, %v2216
        %v2240 = vpack.c.b16 %v2219, %v2218
        %v2241 = vpack.c.b16 %v2221, %v2220
        %v2242 = vpack.c.b16 %v2223, %v2222
        %v2243 = vpack.c.b16 %v2225, %v2224
        %v2244 = vpack.c.b16 %v2227, %v2226
        %v2245 = vpack.c.b16 %v2229, %v2228
        %2262 = vmatprep.subr.bf16.mxu0 0
        %2263 = vmatpush1.bf16.msra.mxu0 %v2230
        %2264 = vmatprep.subr.bf16.mxu0 0
        %2265 = vmatpush1.bf16.msra.mxu0 %v2231
        %2266 = vmatprep.subr.bf16.mxu0 0
        %2267 = vmatpush1.bf16.msra.mxu0 %v2232
        %2268 = vmatprep.subr.bf16.mxu0 0
        %2269 = vmatpush1.bf16.msra.mxu0 %v2233
        %2270 = vmatprep.subr.bf16.mxu0 0
        %2271 = vmatpush1.bf16.msra.mxu0 %v2234
        %2272 = vmatprep.subr.bf16.mxu0 0
        %2273 = vmatpush1.bf16.msra.mxu0 %v2235
        %2274 = vmatprep.subr.bf16.mxu0 0
        %2275 = vmatpush1.bf16.msra.mxu0 %v2236
        %2276 = vmatprep.subr.bf16.mxu0 0
        %2277 = vmatpush1.bf16.msra.mxu0 %v2237
        %2278 = vmatprep.subr.bf16.mxu0 0
        %2279 = vmatpush1.bf16.msra.mxu0 %v2238
        %2280 = vmatprep.subr.bf16.mxu0 0
        %2281 = vmatpush1.bf16.msra.mxu0 %v2239
        %2282 = vmatprep.subr.bf16.mxu0 0
        %2283 = vmatpush1.bf16.msra.mxu0 %v2240
        %2284 = vmatprep.subr.bf16.mxu0 0
        %2285 = vmatpush1.bf16.msra.mxu0 %v2241
        %2286 = vmatprep.subr.bf16.mxu0 0
        %2287 = vmatpush1.bf16.msra.mxu0 %v2242
        %2288 = vmatprep.subr.bf16.mxu0 0
        %2289 = vmatpush1.bf16.msra.mxu0 %v2243
        %2290 = vmatprep.subr.bf16.mxu0 0
        %2291 = vmatpush1.bf16.msra.mxu0 %v2244
        %2292 = vmatprep.subr.bf16.mxu0 0
        %2293 = vmatpush1.bf16.msra.mxu0 %v2245
        %2294 = vmatprep.mubr.bf16.mxu0 %v2126
        %2295 = vmatmul.mubr.bf16.gmra.mrb[0].mxu0 %v2125
        %v2296 = vpop.f32.mrb[0].mxu0
        %v2297 = vadd.f32 %v2164, %v2296
        %v2298 = vpop.f32.mrb[0].mxu0
        %v2299 = vpop.f32.mrb[0].mxu0
        %v2300 = vadd.f32 %v2164, %v2299
        %v2301 = vpop.f32.mrb[0].mxu0
        %2302 = vdwg.mxu0
        %v2303 = vadd.f32 %v1967, %v2297
        %v2304 = vadd.f32 %v1968, %v2300
        %v2305 = vld [vmem:[%s11] sm:$0x1]
        %v2306 = vld [vmem:[%s12] sm:$0x1]
        %2307 = vadd.xlane.f32.xlu0 %v2303
        %v2308 = vpop.xlane.xlu0 %2307
        %2309 = vadd.xlane.f32.xlu0 %v2304
        %v2310 = vpop.xlane.xlu0 %2309
        %v2311 = vmul.f32 %v2308, %v1026
        %v2312 = vmul.f32 %v2310, %v1026
        %v2313 = vsub.f32 %v2303, %v2311
        %v2314 = vsub.f32 %v2304, %v2312
        %v2315 = vmul.f32 %v2313, %v2313
        %v2316 = vmul.f32 %v2314, %v2314
        %2317 = vadd.xlane.f32.xlu0 %v2315
        %v2318 = vpop.xlane.xlu0 %2317
        %2319 = vadd.xlane.f32.xlu0 %v2316
        %v2320 = vpop.xlane.xlu0 %2319
        %v2321 = vmul.f32 %v2318, %v1026
        %v2322 = vmul.f32 %v2320, %v1026
        %v2323 = vadd.f32 %v2321, 1e-05
        %v2324 = vadd.f32 %v2322, 1e-05
        %v2325 = vrsqrt.pop %v2323
        %v2326 = vrsqrt.pop %v2324
        %v2327 = vmul.f32 %v2313, %v2325
        %v2328 = vmul.f32 %v2314, %v2326
        %v2330 = vlaneseq
        %v2331 = vshrl.u32 %v2330, 7
        %v2332 = vsub.s32 0, %v2331
        %v2333 = vrot.slane %v2305, %v2332
        %v2335 = vmul.f32 %v2327, %v2333
        %v2336 = vmul.f32 %v2328, %v2333
        %v2338 = vlaneseq
        %v2339 = vshrl.u32 %v2338, 7
        %v2340 = vsub.s32 0, %v2339
        %v2341 = vrot.slane %v2306, %v2340
        %v2343 = vadd.f32 %v2335, %v2341
        %v2344 = vadd.f32 %v2336, %v2341
        %2345 = vst [vmem:[%s516] sm:$0xff] %v2343
        %2346 = vst [vmem:[%s516 + $0x8] sm:$0xff] %v2344
        %s2347 = sand.u32 %s318, 1
        %s2348 = scalar_lea.sflag [#allocation4], %s2347
        %s2349 = sand.u32 %s318, 1
        %s2350 = smul.addr %s2349, 16
        %s2351 = scalar_lea.vmem [#allocation11], %s2350
        // Predicated region
        $region93: #{tpu_custom_call.1} parent=71 // pred_check
          %p2352 = pneg %p328
        $region94: #{tpu_custom_call.1} parent=71 // pred_check_branch
          %2354 = sbr.rel (%p2352) target = $region96
        $region95: #{tpu_custom_call.1} parent=71 // pred_region
          %s2356 = ssub.s32 256, 256
          %2357 = vsyncadd %s2348, %s2356
          %s2358 = smul.addr %s32, 2
          %s2359 = smul.addr %s2358, 128
          %s2360 = scalar_lea.hbm %s13, %s2359
          %s2361 = sshll.u32 %s2351, 4
          %s2362 = int_to_ptr.vmem [resolvable:$true] %s2361
          %2367 = dma.vmem_to_hbm [thread:$0]  %s2362, 256, %s2360, %s2348, 128, 128, 8
        $region96: #{tpu_custom_call.1} parent=71 // pred_fallthru
          _
      $region72: #{tpu_custom_call.1} parent=5 // pred_fallthru
        _
      %p2368 = scmp.le.s32.totalorder 2, %s27
      // Predicated region
      $region97: #{tpu_custom_call.1} parent=5 // pred_check
        %p2369 = pneg %p2368
      $region98: #{tpu_custom_call.1} parent=5 // pred_check_branch
        %2371 = sbr.rel (%p2369) target = $region100
      $region99: #{tpu_custom_call.1} parent=5 // pred_region
        %s2372 = ssub.s32 %s27, 2
        // Predicated region
        $region101: #{tpu_custom_call.1} parent=99 // pred_check
          %p2373 = pneg %p334
        $region102: #{tpu_custom_call.1} parent=99 // pred_check_branch
          %2375 = sbr.rel (%p2373) target = $region104
        $region103: #{tpu_custom_call.1} parent=99 // pred_region
          %s2376 = sand.u32 %s319, 1
          %s2377 = scalar_lea.sflag [#allocation4], %s2376
          %s2378 = sand.u32 %s319, 1
          %s2379 = smul.addr %s2378, 16
          %s2380 = scalar_lea.vmem [#allocation11], %s2379
          %2381 = dma.done %s2377, 256
        $region104: #{tpu_custom_call.1} parent=99 // pred_fallthru
          _
      $region100: #{tpu_custom_call.1} parent=5 // pred_fallthru
        _
    $region6: #{tpu_custom_call.1} parent=1 // loop_footer
      %s31 = sadd.s32 1, %s27
    $region7: #{tpu_custom_call.1} parent=1 // loop_footer_branch
      %26 = sbr.rel target = $region3
    $region8: #{tpu_custom_call.1} parent=1 // loop_exit
      _
    %2382 = vsyncpa [#allocation3], 1
    %s2383 = scalar_lea.sflag [#allocation3], 1
    %2384 = vsyncpa %s2383, 1
    %2385 = vsyncpa [#allocation6], 1
    %2386 = vsyncpa [#allocation9], 1
    %2387 = vsyncpa [#allocation4], 1
    %s2388 = scalar_lea.sflag [#allocation4], 1
    %2389 = vsyncpa %s2388, 1

// kernel: tpu_custom_call.1
$region0: #{tpu_custom_call.1}
  #allocation0 [shape = 'u32[]', space=smem, size = 0x4, offset = 0x4, fixed_abs, tag = 'smem constant byte address 0x4 - core index']
  #allocation1 [shape = 'u32[144,128]{1,0:T(1,128)}', space=vmem, size = 0x12000, scoped, tag = 'internal scratch']
  %s0 = inlined_call_operand.hbm [shape: f32[2,16,128], index: 0, kind: input, shape index: {}]
  %s1 = inlined_call_operand.hbm [shape: bf16[128,384], index: 1, kind: input, shape index: {}]
  %s2 = inlined_call_operand.vmem [shape: f32[1,384], index: 2, kind: input, shape index: {}]
  %s3 = inlined_call_operand.hbm [shape: bf16[128,128], index: 3, kind: input, shape index: {}]
  %s4 = inlined_call_operand.vmem [shape: f32[1,128], index: 4, kind: input, shape index: {}]
  %s5 = inlined_call_operand.hbm [shape: bf16[128,256], index: 5, kind: input, shape index: {}]
  %s6 = inlined_call_operand.vmem [shape: f32[1,256], index: 6, kind: input, shape index: {}]
  %s7 = inlined_call_operand.hbm [shape: bf16[256,128], index: 7, kind: input, shape index: {}]
  %s8 = inlined_call_operand.vmem [shape: f32[1,128], index: 8, kind: input, shape index: {}]
  %s9 = inlined_call_operand.vmem [shape: f32[1,128], index: 9, kind: input, shape index: {}]
  %s10 = inlined_call_operand.vmem [shape: f32[1,128], index: 10, kind: input, shape index: {}]
  %s11 = inlined_call_operand.vmem [shape: f32[1,128], index: 11, kind: input, shape index: {}]
  %s12 = inlined_call_operand.vmem [shape: f32[1,128], index: 12, kind: input, shape index: {}]
  %s13 = inlined_call_operand.hbm [shape: f32[2,16,128], index: 13, kind: output, shape index: {}]
  %s14 = sld [smem:[#allocation0]]
  $region105: #{tpu_custom_call.1} parent=0
    _
  %s16 = ssub.s32 1, %s14
  %s17 = scalar_select 0, %s16, %s14
  $region1: #{tpu_custom_call.1} parent=0
    #allocation2 [shape = 'u8[16384]{0}', space=vmem, size = 0x4000, scoped, tag = 'input window, operand 0']
    #allocation3 [shape = 's32[2]{0}', space=sflag, size = 0x8, scoped, tag = 'scoped memory for tpu_custom_call.1']
    #allocation4 [shape = 's32[2]{0}', space=sflag, size = 0x8, scoped, tag = 'scoped memory for tpu_custom_call.1']
    #allocation5 [shape = 'u8[98304]{0}', space=vmem, size = 0x18000, scoped, tag = 'input window, operand 1, single buffered']
    #allocation6 [shape = 's32[1]{0}', space=sflag, size = 0x4, scoped, tag = 'scoped memory for tpu_custom_call.1']
    #allocation7 [shape = 'u8[32768]{0}', space=vmem, size = 0x8000, scoped, tag = 'input window, operand 3, single buffered']
    #allocation8 [shape = 'u8[65536]{0}', space=vmem, size = 0x10000, scoped, tag = 'input window, operand 5, single buffered']
    #allocation9 [shape = 's32[1]{0}', space=sflag, size = 0x4, scoped, tag = 'scoped memory for tpu_custom_call.1']
    #allocation10 [shape = 'u8[65536]{0}', space=vmem, size = 0x10000, scoped, tag = 'input window, operand 7, single buffered']
    #allocation11 [shape = 'u8[16384]{0}', space=vmem, size = 0x4000, scoped, tag = 'output window, operand 0']
    %18 = vsyncpa [#allocation3], 0
    %s19 = scalar_lea.sflag [#allocation3], 1
    %20 = vsyncpa %s19, 0
    %21 = vsyncpa [#allocation6], 0
    %22 = vsyncpa [#allocation9], 0
    %23 = vsyncpa [#allocation4], 0
    %s24 = scalar_lea.sflag [#allocation4], 1
    %25 = vsyncpa %s24, 0
    loop: start=0, step=1, limit=4
    $region2: #{tpu_custom_call.1} parent=1 // loop_pre_header
      _
    $region3: #{tpu_custom_call.1} parent=1 // loop_header
      %s27 = sphi 0, %s31
      %p28 = scmp.ge.s32.totalorder %s27, 4
      %s37 = sphi 0, %s39
      %s40 = sphi 0, %s37
      %s41 = sphi 0, %s40
      %s57 = sphi 0, %s41
      %s61 = sphi 0, %s61
      %s63 = sphi 0, %s61
      %s64 = sphi 0, %s63
      %s78 = sphi 0, %s64
      %s82 = sphi 0, %s82
      %s84 = sphi 0, %s82
      %s85 = sphi 0, %s84
      %s99 = sphi 0, %s85
      %s103 = sphi 0, %s103
      %s105 = sphi 0, %s103
      %s106 = sphi 0, %s105
      %s120 = sphi 0, %s106
      %s124 = sphi 0, %s124
      %s126 = sphi 0, %s124
      %s127 = sphi 0, %s126
      %s141 = sphi 0, %s127
      %s145 = sphi 0, %s145
      %s147 = sphi 0, %s145
      %s148 = sphi 0, %s147
      %s162 = sphi 0, %s148
      %s166 = sphi 0, %s166
      %s168 = sphi 0, %s166
      %s169 = sphi 0, %s168
      %s183 = sphi 0, %s169
      %s187 = sphi 0, %s187
      %s189 = sphi 0, %s187
      %s190 = sphi 0, %s189
      %s204 = sphi 0, %s190
      %s208 = sphi 0, %s208
      %s210 = sphi 0, %s208
      %s211 = sphi 0, %s210
      %s225 = sphi 0, %s211
      %s229 = sphi 0, %s229
      %s231 = sphi 0, %s229
      %s232 = sphi 0, %s231
      %s246 = sphi 0, %s232
      %s250 = sphi 0, %s250
      %s252 = sphi 0, %s250
      %s253 = sphi 0, %s252
      %s267 = sphi 0, %s253
      %s271 = sphi 0, %s271
      %s273 = sphi 0, %s271
      %s274 = sphi 0, %s273
      %s288 = sphi 0, %s274
      %s292 = sphi 0, %s292
      %s294 = sphi 0, %s292
      %s295 = sphi 0, %s294
      %s309 = sphi 0, %s295
      %s315 = sphi 0, %s317
      %s318 = sphi 0, %s315
      %s319 = sphi 0, %s318
      %s335 = sphi 0, %s319
    $region4: #{tpu_custom_call.1} parent=1 // loop_header_branch
      %30 = sbr.rel (%p28) target = $region8
    $region5: #{tpu_custom_call.1} parent=1 // loop_body
      %s32 = ssub.s32 %s27, 1
      %s33 = ssub.s32 %s27, 2
      %s34 = sadd.s32 %s27, 1
      %s35 = ssub.s32 %s27, %s34
      %p36 = scmp.eq.s32.totalorder %s35, 0
      %s38 = sadd.s32 %s37, 1
      %s39 = scalar_select %p36, %s37, %s38
      %p42 = pneg %p36
      %p43 = scmp.eq.s32.totalorder %s27, 1
      %p44 = por %p42, %p43
      %p45 = scmp.ne.s32.totalorder %s37, %s40
      %p46 = scmp.eq.s32.totalorder %s27, 0
      %p47 = por %p45, %p46
      %p48 = scmp.ne.s32.totalorder %s37, %s40
      %p49 = scmp.eq.s32.totalorder %s32, 1
      %p50 = por %p48, %p49
      %p51 = scmp.ne.s32.totalorder %s40, %s41
      %p52 = scmp.eq.s32.totalorder %s32, 0
      %p53 = por %p51, %p52
      %p54 = scmp.ne.s32.totalorder %s40, %s41
      %p55 = scmp.eq.s32.totalorder %s33, 1
      %p56 = por %p54, %p55
      %p58 = scmp.ne.s32.totalorder %s41, %s57
      %p59 = scmp.eq.s32.totalorder %s33, 0
      %p60 = por %p58, %p59
      %s62 = sadd.s32 %s61, 1
      %p65 = scmp.eq.s32.totalorder %s27, 1
      %p66 = scmp.ne.s32.totalorder %s61, %s63
      %p67 = scmp.eq.s32.totalorder %s27, 0
      %p68 = por %p66, %p67
      %p69 = scmp.ne.s32.totalorder %s61, %s63
      %p70 = scmp.eq.s32.totalorder %s32, 1
      %p71 = por %p69, %p70
      %p72 = scmp.ne.s32.totalorder %s63, %s64
      %p73 = scmp.eq.s32.totalorder %s32, 0
      %p74 = por %p72, %p73
      %p75 = scmp.ne.s32.totalorder %s63, %s64
      %p76 = scmp.eq.s32.totalorder %s33, 1
      %p77 = por %p75, %p76
      %p79 = scmp.ne.s32.totalorder %s64, %s78
      %p80 = scmp.eq.s32.totalorder %s33, 0
      %p81 = por %p79, %p80
      %s83 = sadd.s32 %s82, 1
      %p86 = scmp.eq.s32.totalorder %s27, 1
      %p87 = scmp.ne.s32.totalorder %s82, %s84
      %p88 = scmp.eq.s32.totalorder %s27, 0
      %p89 = por %p87, %p88
      %p90 = scmp.ne.s32.totalorder %s82, %s84
      %p91 = scmp.eq.s32.totalorder %s32, 1
      %p92 = por %p90, %p91
      %p93 = scmp.ne.s32.totalorder %s84, %s85
      %p94 = scmp.eq.s32.totalorder %s32, 0
      %p95 = por %p93, %p94
      %p96 = scmp.ne.s32.totalorder %s84, %s85
      %p97 = scmp.eq.s32.totalorder %s33, 1
      %p98 = por %p96, %p97
      %p100 = scmp.ne.s32.totalorder %s85, %s99
      %p101 = scmp.eq.s32.totalorder %s33, 0
      %p102 = por %p100, %p101
      %s104 = sadd.s32 %s103, 1
      %p107 = scmp.eq.s32.totalorder %s27, 1
      %p108 = scmp.ne.s32.totalorder %s103, %s105
      %p109 = scmp.eq.s32.totalorder %s27, 0
      %p110 = por %p108, %p109
      %p111 = scmp.ne.s32.totalorder %s103, %s105
      %p112 = scmp.eq.s32.totalorder %s32, 1
      %p113 = por %p111, %p112
      %p114 = scmp.ne.s32.totalorder %s105, %s106
      %p115 = scmp.eq.s32.totalorder %s32, 0
      %p116 = por %p114, %p115
      %p117 = scmp.ne.s32.totalorder %s105, %s106
      %p118 = scmp.eq.s32.totalorder %s33, 1
      %p119 = por %p117, %p118
      %p121 = scmp.ne.s32.totalorder %s106, %s120
      %p122 = scmp.eq.s32.totalorder %s33, 0
      %p123 = por %p121, %p122
      %s125 = sadd.s32 %s124, 1
      %p128 = scmp.eq.s32.totalorder %s27, 1
      %p129 = scmp.ne.s32.totalorder %s124, %s126
      %p130 = scmp.eq.s32.totalorder %s27, 0
      %p131 = por %p129, %p130
      %p132 = scmp.ne.s32.totalorder %s124, %s126
      %p133 = scmp.eq.s32.totalorder %s32, 1
      %p134 = por %p132, %p133
      %p135 = scmp.ne.s32.totalorder %s126, %s127
      %p136 = scmp.eq.s32.totalorder %s32, 0
      %p137 = por %p135, %p136
      %p138 = scmp.ne.s32.totalorder %s126, %s127
      %p139 = scmp.eq.s32.totalorder %s33, 1
      %p140 = por %p138, %p139
      %p142 = scmp.ne.s32.totalorder %s127, %s141
      %p143 = scmp.eq.s32.totalorder %s33, 0
      %p144 = por %p142, %p143
      %s146 = sadd.s32 %s145, 1
      %p149 = scmp.eq.s32.totalorder %s27, 1
      %p150 = scmp.ne.s32.totalorder %s145, %s147
      %p151 = scmp.eq.s32.totalorder %s27, 0
      %p152 = por %p150, %p151
      %p153 = scmp.ne.s32.totalorder %s145, %s147
      %p154 = scmp.eq.s32.totalorder %s32, 1
      %p155 = por %p153, %p154
      %p156 = scmp.ne.s32.totalorder %s147, %s148
      %p157 = scmp.eq.s32.totalorder %s32, 0
      %p158 = por %p156, %p157
      %p159 = scmp.ne.s32.totalorder %s147, %s148
      %p160 = scmp.eq.s32.totalorder %s33, 1
      %p161 = por %p159, %p160
      %p163 = scmp.ne.s32.totalorder %s148, %s162
      %p164 = scmp.eq.s32.totalorder %s33, 0
      %p165 = por %p163, %p164
      %s167 = sadd.s32 %s166, 1
      %p170 = scmp.eq.s32.totalorder %s27, 1
      %p171 = scmp.ne.s32.totalorder %s166, %s168
      %p172 = scmp.eq.s32.totalorder %s27, 0
      %p173 = por %p171, %p172
      %p174 = scmp.ne.s32.totalorder %s166, %s168
      %p175 = scmp.eq.s32.totalorder %s32, 1
      %p176 = por %p174, %p175
      %p177 = scmp.ne.s32.totalorder %s168, %s169
      %p178 = scmp.eq.s32.totalorder %s32, 0
      %p179 = por %p177, %p178
      %p180 = scmp.ne.s32.totalorder %s168, %s169
      %p181 = scmp.eq.s32.totalorder %s33, 1
      %p182 = por %p180, %p181
      %p184 = scmp.ne.s32.totalorder %s169, %s183
      %p185 = scmp.eq.s32.totalorder %s33, 0
      %p186 = por %p184, %p185
      %s188 = sadd.s32 %s187, 1
      %p191 = scmp.eq.s32.totalorder %s27, 1
      %p192 = scmp.ne.s32.totalorder %s187, %s189
      %p193 = scmp.eq.s32.totalorder %s27, 0
      %p194 = por %p192, %p193
      %p195 = scmp.ne.s32.totalorder %s187, %s189
      %p196 = scmp.eq.s32.totalorder %s32, 1
      %p197 = por %p195, %p196
      %p198 = scmp.ne.s32.totalorder %s189, %s190
      %p199 = scmp.eq.s32.totalorder %s32, 0
      %p200 = por %p198, %p199
      %p201 = scmp.ne.s32.totalorder %s189, %s190
      %p202 = scmp.eq.s32.totalorder %s33, 1
      %p203 = por %p201, %p202
      %p205 = scmp.ne.s32.totalorder %s190, %s204
      %p206 = scmp.eq.s32.totalorder %s33, 0
      %p207 = por %p205, %p206
      %s209 = sadd.s32 %s208, 1
      %p212 = scmp.eq.s32.totalorder %s27, 1
      %p213 = scmp.ne.s32.totalorder %s208, %s210
      %p214 = scmp.eq.s32.totalorder %s27, 0
      %p215 = por %p213, %p214
      %p216 = scmp.ne.s32.totalorder %s208, %s210
      %p217 = scmp.eq.s32.totalorder %s32, 1
      %p218 = por %p216, %p217
      %p219 = scmp.ne.s32.totalorder %s210, %s211
      %p220 = scmp.eq.s32.totalorder %s32, 0
      %p221 = por %p219, %p220
      %p222 = scmp.ne.s32.totalorder %s210, %s211
      %p223 = scmp.eq.s32.totalorder %s33, 1
      %p224 = por %p222, %p223
      %p226 = scmp.ne.s32.totalorder %s211, %s225
      %p227 = scmp.eq.s32.totalorder %s33, 0
      %p228 = por %p226, %p227
      %s230 = sadd.s32 %s229, 1
      %p233 = scmp.eq.s32.totalorder %s27, 1
      %p234 = scmp.ne.s32.totalorder %s229, %s231
      %p235 = scmp.eq.s32.totalorder %s27, 0
      %p236 = por %p234, %p235
      %p237 = scmp.ne.s32.totalorder %s229, %s231
      %p238 = scmp.eq.s32.totalorder %s32, 1
      %p239 = por %p237, %p238
      %p240 = scmp.ne.s32.totalorder %s231, %s232
      %p241 = scmp.eq.s32.totalorder %s32, 0
      %p242 = por %p240, %p241
      %p243 = scmp.ne.s32.totalorder %s231, %s232
      %p244 = scmp.eq.s32.totalorder %s33, 1
      %p245 = por %p243, %p244
      %p247 = scmp.ne.s32.totalorder %s232, %s246
      %p248 = scmp.eq.s32.totalorder %s33, 0
      %p249 = por %p247, %p248
      %s251 = sadd.s32 %s250, 1
      %p254 = scmp.eq.s32.totalorder %s27, 1
      %p255 = scmp.ne.s32.totalorder %s250, %s252
      %p256 = scmp.eq.s32.totalorder %s27, 0
      %p257 = por %p255, %p256
      %p258 = scmp.ne.s32.totalorder %s250, %s252
      %p259 = scmp.eq.s32.totalorder %s32, 1
      %p260 = por %p258, %p259
      %p261 = scmp.ne.s32.totalorder %s252, %s253
      %p262 = scmp.eq.s32.totalorder %s32, 0
      %p263 = por %p261, %p262
      %p264 = scmp.ne.s32.totalorder %s252, %s253
      %p265 = scmp.eq.s32.totalorder %s33, 1
      %p266 = por %p264, %p265
      %p268 = scmp.ne.s32.totalorder %s253, %s267
      %p269 = scmp.eq.s32.totalorder %s33, 0
      %p270 = por %p268, %p269
      %s272 = sadd.s32 %s271, 1
      %p275 = scmp.eq.s32.totalorder %s27, 1
      %p276 = scmp.ne.s32.totalorder %s271, %s273
      %p277 = scmp.eq.s32.totalorder %s27, 0
      %p278 = por %p276, %p277
      %p279 = scmp.ne.s32.totalorder %s271, %s273
      %p280 = scmp.eq.s32.totalorder %s32, 1
      %p281 = por %p279, %p280
      %p282 = scmp.ne.s32.totalorder %s273, %s274
      %p283 = scmp.eq.s32.totalorder %s32, 0
      %p284 = por %p282, %p283
      %p285 = scmp.ne.s32.totalorder %s273, %s274
      %p286 = scmp.eq.s32.totalorder %s33, 1
      %p287 = por %p285, %p286
      %p289 = scmp.ne.s32.totalorder %s274, %s288
      %p290 = scmp.eq.s32.totalorder %s33, 0
      %p291 = por %p289, %p290
      %s293 = sadd.s32 %s292, 1
      %p296 = scmp.eq.s32.totalorder %s27, 1
      %p297 = scmp.ne.s32.totalorder %s292, %s294
      %p298 = scmp.eq.s32.totalorder %s27, 0
      %p299 = por %p297, %p298
      %p300 = scmp.ne.s32.totalorder %s292, %s294
      %p301 = scmp.eq.s32.totalorder %s32, 1
      %p302 = por %p300, %p301
      %p303 = scmp.ne.s32.totalorder %s294, %s295
      %p304 = scmp.eq.s32.totalorder %s32, 0
      %p305 = por %p303, %p304
      %p306 = scmp.ne.s32.totalorder %s294, %s295
      %p307 = scmp.eq.s32.totalorder %s33, 1
      %p308 = por %p306, %p307
      %p310 = scmp.ne.s32.totalorder %s295, %s309
      %p311 = scmp.eq.s32.totalorder %s33, 0
      %p312 = por %p310, %p311
      %s313 = ssub.s32 %s27, %s34
      %p314 = scmp.eq.s32.totalorder %s313, 0
      %s316 = sadd.s32 %s315, 1
      %s317 = scalar_select %p314, %s315, %s316
      %p320 = pneg %p314
      %p321 = scmp.eq.s32.totalorder %s27, 1
      %p322 = por %p320, %p321
      %p323 = scmp.ne.s32.totalorder %s315, %s318
      %p324 = scmp.eq.s32.totalorder %s27, 0
      %p325 = por %p323, %p324
      %p326 = scmp.ne.s32.totalorder %s315, %s318
      %p327 = scmp.eq.s32.totalorder %s32, 1
      %p328 = por %p326, %p327
      %p329 = scmp.ne.s32.totalorder %s318, %s319
      %p330 = scmp.eq.s32.totalorder %s32, 0
      %p331 = por %p329, %p330
      %p332 = scmp.ne.s32.totalorder %s318, %s319
      %p333 = scmp.eq.s32.totalorder %s33, 1
      %p334 = por %p332, %p333
      %p336 = scmp.ne.s32.totalorder %s319, %s335
      %p337 = scmp.eq.s32.totalorder %s33, 0
      %p338 = por %p336, %p337
      %p339 = scmp.le.s32.totalorder 1, %s27
      %p340 = scmp.lt.s32.totalorder %s27, 3
      %p341 = pnand %p339, %p340
      %p342 = pneg %p341
      // Predicated region
      $region9: #{tpu_custom_call.1} parent=5 // pred_check
        _
      $region10: #{tpu_custom_call.1} parent=5 // pred_check_branch
        %344 = sbr.rel (%p341) target = $region12
      $region11: #{tpu_custom_call.1} parent=5 // pred_region
        %s345 = ssub.s32 %s27, 1
        // Predicated region
        $region13: #{tpu_custom_call.1} parent=11 // pred_check
          %p346 = pneg %p74
        $region14: #{tpu_custom_call.1} parent=11 // pred_check_branch
          %348 = sbr.rel (%p346) target = $region16
        $region15: #{tpu_custom_call.1} parent=11 // pred_region
          %s350 = ssub.s32 3072, 3072
          %351 = vsyncadd [#allocation6], %s350
          %s352 = sshll.u32 [#allocation5], 4
          %s353 = int_to_ptr.vmem [resolvable:$true] %s352
          %358 = dma.hbm_to_vmem [thread:$0]  %s1, 3072, %s353, [#allocation6], 192, 192, 12
        $region16: #{tpu_custom_call.1} parent=11 // pred_fallthru
          _
        // Predicated region
        $region17: #{tpu_custom_call.1} parent=11 // pred_check
          %p359 = pneg %p95
        $region18: #{tpu_custom_call.1} parent=11 // pred_check_branch
          %361 = sbr.rel (%p359) target = $region20
        $region19: #{tpu_custom_call.1} parent=11 // pred_region
          _
        $region20: #{tpu_custom_call.1} parent=11 // pred_fallthru
          _
        // Predicated region
        $region21: #{tpu_custom_call.1} parent=11 // pred_check
          %p362 = pneg %p116
        $region22: #{tpu_custom_call.1} parent=11 // pred_check_branch
          %364 = sbr.rel (%p362) target = $region24
        $region23: #{tpu_custom_call.1} parent=11 // pred_region
          %s366 = ssub.s32 1024, 1024
          %367 = vsyncadd [#allocation6], %s366
          %s368 = sshll.u32 [#allocation7], 4
          %s369 = int_to_ptr.vmem [resolvable:$true] %s368
          %374 = dma.hbm_to_vmem [thread:$0]  %s3, 1024, %s369, [#allocation6], 64, 64, 4
        $region24: #{tpu_custom_call.1} parent=11 // pred_fallthru
          _
        // Predicated region
        $region25: #{tpu_custom_call.1} parent=11 // pred_check
          %p375 = pneg %p137
        $region26: #{tpu_custom_call.1} parent=11 // pred_check_branch
          %377 = sbr.rel (%p375) target = $region28
        $region27: #{tpu_custom_call.1} parent=11 // pred_region
          _
        $region28: #{tpu_custom_call.1} parent=11 // pred_fallthru
          _
        // Predicated region
        $region29: #{tpu_custom_call.1} parent=11 // pred_check
          %p378 = pneg %p158
        $region30: #{tpu_custom_call.1} parent=11 // pred_check_branch
          %380 = sbr.rel (%p378) target = $region32
        $region31: #{tpu_custom_call.1} parent=11 // pred_region
          %s382 = ssub.s32 2048, 2048
          %383 = vsyncadd [#allocation9], %s382
          %s384 = sshll.u32 [#allocation8], 4
          %s385 = int_to_ptr.vmem [resolvable:$true] %s384
          %390 = dma.hbm_to_vmem [thread:$0]  %s5, 2048, %s385, [#allocation9], 128, 128, 8
        $region32: #{tpu_custom_call.1} parent=11 // pred_fallthru
          _
        // Predicated region
        $region33: #{tpu_custom_call.1} parent=11 // pred_check
          %p391 = pneg %p179
        $region34: #{tpu_custom_call.1} parent=11 // pred_check_branch
          %393 = sbr.rel (%p391) target = $region36
        $region35: #{tpu_custom_call.1} parent=11 // pred_region
          _
        $region36: #{tpu_custom_call.1} parent=11 // pred_fallthru
          _
        // Predicated region
        $region37: #{tpu_custom_call.1} parent=11 // pred_check
          %p394 = pneg %p200
        $region38: #{tpu_custom_call.1} parent=11 // pred_check_branch
          %396 = sbr.rel (%p394) target = $region40
        $region39: #{tpu_custom_call.1} parent=11 // pred_region
          %s398 = ssub.s32 2048, 2048
          %399 = vsyncadd [#allocation9], %s398
          %s400 = sshll.u32 [#allocation10], 4
          %s401 = int_to_ptr.vmem [resolvable:$true] %s400
          %406 = dma.hbm_to_vmem [thread:$0]  %s7, 2048, %s401, [#allocation9], 64, 64, 4
        $region40: #{tpu_custom_call.1} parent=11 // pred_fallthru
          _
        // Predicated region
        $region41: #{tpu_custom_call.1} parent=11 // pred_check
          %p407 = pneg %p221
        $region42: #{tpu_custom_call.1} parent=11 // pred_check_branch
          %409 = sbr.rel (%p407) target = $region44
        $region43: #{tpu_custom_call.1} parent=11 // pred_region
          _
        $region44: #{tpu_custom_call.1} parent=11 // pred_fallthru
          _
        // Predicated region
        $region45: #{tpu_custom_call.1} parent=11 // pred_check
          %p410 = pneg %p242
        $region46: #{tpu_custom_call.1} parent=11 // pred_check_branch
          %412 = sbr.rel (%p410) target = $region48
        $region47: #{tpu_custom_call.1} parent=11 // pred_region
          _
        $region48: #{tpu_custom_call.1} parent=11 // pred_fallthru
          _
        // Predicated region
        $region49: #{tpu_custom_call.1} parent=11 // pred_check
          %p413 = pneg %p263
        $region50: #{tpu_custom_call.1} parent=11 // pred_check_branch
          %415 = sbr.rel (%p413) target = $region52
        $region51: #{tpu_custom_call.1} parent=11 // pred_region
          _
        $region52: #{tpu_custom_call.1} parent=11 // pred_fallthru
          _
        // Predicated region
        $region53: #{tpu_custom_call.1} parent=11 // pred_check
          %p416 = pneg %p284
        $region54: #{tpu_custom_call.1} parent=11 // pred_check_branch
          %418 = sbr.rel (%p416) target = $region56
        $region55: #{tpu_custom_call.1} parent=11 // pred_region
          _
        $region56: #{tpu_custom_call.1} parent=11 // pred_fallthru
          _
        // Predicated region
        $region57: #{tpu_custom_call.1} parent=11 // pred_check
          %p419 = pneg %p305
        $region58: #{tpu_custom_call.1} parent=11 // pred_check_branch
          %421 = sbr.rel (%p419) target = $region60
        $region59: #{tpu_custom_call.1} parent=11 // pred_region
          _
        $region60: #{tpu_custom_call.1} parent=11 // pred_fallthru
          _
      $region12: #{tpu_custom_call.1} parent=5 // pred_fallthru
        _
      %p422 = scmp.lt.s32.totalorder %s27, 2
      // Predicated region
      $region61: #{tpu_custom_call.1} parent=5 // pred_check
        %p423 = pneg %p422
      $region62: #{tpu_custom_call.1} parent=5 // pred_check_branch
        %425 = sbr.rel (%p423) target = $region64
      $region63: #{tpu_custom_call.1} parent=5 // pred_region
        // Predicated region
        $region65: #{tpu_custom_call.1} parent=63 // pred_check
          %p426 = pneg %p47
        $region66: #{tpu_custom_call.1} parent=63 // pred_check_branch
          %428 = sbr.rel (%p426) target = $region68
        $region67: #{tpu_custom_call.1} parent=63 // pred_region
          %s429 = sand.u32 %s37, 1
          %s430 = scalar_lea.sflag [#allocation3], %s429
          %s431 = sand.u32 %s37, 1
          %s432 = smul.addr %s431, 16
          %s433 = scalar_lea.vmem [#allocation2], %s432
          %s435 = ssub.s32 256, 256
          %436 = vsyncadd %s430, %s435
          %s437 = smul.addr %s27, 2
          %s438 = smul.addr %s437, 128
          %s439 = scalar_lea.hbm %s0, %s438
          %s440 = sshll.u32 %s433, 4
          %s441 = int_to_ptr.vmem [resolvable:$true] %s440
          %446 = dma.hbm_to_vmem [thread:$0]  %s439, 256, %s441, %s430, 128, 128, 8
        $region68: #{tpu_custom_call.1} parent=63 // pred_fallthru
          _
      $region64: #{tpu_custom_call.1} parent=5 // pred_fallthru
        _
      %p447 = scmp.le.s32.totalorder 1, %s27
      %p448 = scmp.lt.s32.totalorder %s27, 3
      %p449 = pnand %p447, %p448
      %p450 = pneg %p449
      // Predicated region
      $region69: #{tpu_custom_call.1} parent=5 // pred_check
        _
      $region70: #{tpu_custom_call.1} parent=5 // pred_check_branch
        %452 = sbr.rel (%p449) target = $region72
      $region71: #{tpu_custom_call.1} parent=5 // pred_region
        %s453 = ssub.s32 %s27, 1
        %s454 = sand.u32 %s40, 1
        %s455 = scalar_lea.sflag [#allocation3], %s454
        %s456 = sand.u32 %s40, 1
        %s457 = smul.addr %s456, 16
        %s458 = scalar_lea.vmem [#allocation2], %s457
        // Predicated region
        $region73: #{tpu_custom_call.1} parent=71 // pred_check
          %p459 = pneg %p53
        $region74: #{tpu_custom_call.1} parent=71 // pred_check_branch
          %461 = sbr.rel (%p459) target = $region76
        $region75: #{tpu_custom_call.1} parent=71 // pred_region
          %462 = dma.done %s455, 256
        $region76: #{tpu_custom_call.1} parent=71 // pred_fallthru
          _
        // Predicated region
        $region77: #{tpu_custom_call.1} parent=71 // pred_check
          %p463 = pneg %p74
        $region78: #{tpu_custom_call.1} parent=71 // pred_check_branch
          %465 = sbr.rel (%p463) target = $region80
        $region79: #{tpu_custom_call.1} parent=71 // pred_region
          %466 = dma.done [#allocation6], 3072
        $region80: #{tpu_custom_call.1} parent=71 // pred_fallthru
          _
        // Predicated region
        $region81: #{tpu_custom_call.1} parent=71 // pred_check
          %p467 = pneg %p116
        $region82: #{tpu_custom_call.1} parent=71 // pred_check_branch
          %469 = sbr.rel (%p467) target = $region84
        $region83: #{tpu_custom_call.1} parent=71 // pred_region
          %470 = dma.done [#allocation6], 1024
        $region84: #{tpu_custom_call.1} parent=71 // pred_fallthru
          _
        // Predicated region
        $region85: #{tpu_custom_call.1} parent=71 // pred_check
          %p471 = pneg %p158
        $region86: #{tpu_custom_call.1} parent=71 // pred_check_branch
          %473 = sbr.rel (%p471) target = $region88
        $region87: #{tpu_custom_call.1} parent=71 // pred_region
          %474 = dma.done [#allocation9], 2048
        $region88: #{tpu_custom_call.1} parent=71 // pred_fallthru
          _
        // Predicated region
        $region89: #{tpu_custom_call.1} parent=71 // pred_check
          %p475 = pneg %p200
        $region90: #{tpu_custom_call.1} parent=71 // pred_check_branch
          %477 = sbr.rel (%p475) target = $region92
        $region91: #{tpu_custom_call.1} parent=71 // pred_region
          %478 = dma.done [#allocation9], 2048
        $region92: #{tpu_custom_call.1} parent=71 // pred_fallthru
          _
        %s479 = sand.u32 %s40, 1
        %s480 = scalar_lea.sflag [#allocation3], %s479
        %s481 = sand.u32 %s40, 1
        %s482 = smul.addr %s481, 16
        %s483 = scalar_lea.vmem [#allocation2], %s482
        %p484 = pneg %p53
        %p485 = pneg %p50
        %p486 = pneg %p74
        %p487 = pneg %p71
        %p488 = pneg %p95
        %p489 = pneg %p92
        %p490 = pneg %p116
        %p491 = pneg %p113
        %p492 = pneg %p137
        %p493 = pneg %p134
        %p494 = pneg %p158
        %p495 = pneg %p155
        %p496 = pneg %p179
        %p497 = pneg %p176
        %p498 = pneg %p200
        %p499 = pneg %p197
        %p500 = pneg %p221
        %p501 = pneg %p218
        %p502 = pneg %p242
        %p503 = pneg %p239
        %p504 = pneg %p263
        %p505 = pneg %p260
        %p506 = pneg %p284
        %p507 = pneg %p281
        %p508 = pneg %p305
        %p509 = pneg %p302
        %p510 = pneg %p331
        %p511 = pneg %p328
        %s512 = sand.u32 %s318, 1
        %s513 = scalar_lea.sflag [#allocation4], %s512
        %s514 = sand.u32 %s318, 1
        %s515 = smul.addr %s514, 16
        %s516 = scalar_lea.vmem [#allocation11], %s515
        %v518 = vld [vmem:[%s458] sm:$0xff]
        %v519 = vld [vmem:[%s458 + $0x8] sm:$0xff]
        %v520 = vlaneseq
        %v521 = vshrl.u32 %v520, 7
        %v522 = vadd.s32 %v521, 8
        %v523 = vlaneseq
        %v524 = vand.u32 %v523, 127
        %vm525 = vcmp.le.s32.totalorder %v524, %v521
        %vm526 = vcmp.le.s32.totalorder %v524, %v522
        %v527 = vpack.c.bf16 %v519, %v518
        %v528 = vld [vmem:[#allocation5] sm:$0xff]
        %v529 = vld [vmem:[#allocation5 + $0x8] sm:$0xf]
        %v530 = vld [vmem:[#allocation5 + $0xc] sm:$0xff]
        %v531 = vld [vmem:[#allocation5 + $0x14] sm:$0xf]
        %v532 = vld [vmem:[#allocation5 + $0x18] sm:$0xff]
        %v533 = vld [vmem:[#allocation5 + $0x20] sm:$0xf]
        %v534 = vld [vmem:[#allocation5 + $0x24] sm:$0xff]
        %v535 = vld [vmem:[#allocation5 + $0x2c] sm:$0xf]
        %v536 = vld [vmem:[#allocation5 + $0x30] sm:$0xff]
        %v537 = vld [vmem:[#allocation5 + $0x38] sm:$0xf]
        %v538 = vld [vmem:[#allocation5 + $0x3c] sm:$0xff]
        %v539 = vld [vmem:[#allocation5 + $0x44] sm:$0xf]
        %v540 = vld [vmem:[#allocation5 + $0x48] sm:$0xff]
        %v541 = vld [vmem:[#allocation5 + $0x50] sm:$0xf]
        %v542 = vld [vmem:[#allocation5 + $0x54] sm:$0xff]
        %v543 = vld [vmem:[#allocation5 + $0x5c] sm:$0xf]
        %v544 = vld [vmem:[#allocation5 + $0x60] sm:$0xff]
        %v545 = vld [vmem:[#allocation5 + $0x68] sm:$0xf]
        %v546 = vld [vmem:[#allocation5 + $0x6c] sm:$0xff]
        %v547 = vld [vmem:[#allocation5 + $0x74] sm:$0xf]
        %v548 = vld [vmem:[#allocation5 + $0x78] sm:$0xff]
        %v549 = vld [vmem:[#allocation5 + $0x80] sm:$0xf]
        %v550 = vld [vmem:[#allocation5 + $0x84] sm:$0xff]
        %v551 = vld [vmem:[#allocation5 + $0x8c] sm:$0xf]
        %v552 = vld [vmem:[#allocation5 + $0x90] sm:$0xff]
        %v553 = vld [vmem:[#allocation5 + $0x98] sm:$0xf]
        %v554 = vld [vmem:[#allocation5 + $0x9c] sm:$0xff]
        %v555 = vld [vmem:[#allocation5 + $0xa4] sm:$0xf]
        %v556 = vld [vmem:[#allocation5 + $0xa8] sm:$0xff]
        %v557 = vld [vmem:[#allocation5 + $0xb0] sm:$0xf]
        %v558 = vld [vmem:[#allocation5 + $0xb4] sm:$0xff]
        %v559 = vld [vmem:[#allocation5 + $0xbc] sm:$0xf]
        %v560 = vld [vmem:[%s2] sm:$0x7]
        %v562 = vlaneseq
        %v563 = vshrl.u32 %v562, 7
        %v564 = vsub.s32 0, %v563
        %v565 = vrot.slane %v560, %v564
        %v566 = vlaneseq
        %v567 = vshrl.u32 %v566, 7
        %v568 = vsub.s32 1, %v567
        %v569 = vrot.slane %v560, %v568
        %v570 = vlaneseq
        %v571 = vshrl.u32 %v570, 7
        %v572 = vsub.s32 2, %v571
        %v573 = vrot.slane %v560, %v572
        %v609 = vunpack.c.l.b16 %v528
        %v610 = vunpack.c.h.b16 %v528
        %v611 = vunpack.c.l.b16 %v529
        %v612 = vunpack.c.l.b16 %v530
        %v613 = vunpack.c.h.b16 %v530
        %v614 = vunpack.c.l.b16 %v531
        %v615 = vunpack.c.l.b16 %v532
        %v616 = vunpack.c.h.b16 %v532
        %v617 = vunpack.c.l.b16 %v533
        %v618 = vunpack.c.l.b16 %v534
        %v619 = vunpack.c.h.b16 %v534
        %v620 = vunpack.c.l.b16 %v535
        %v621 = vunpack.c.l.b16 %v536
        %v622 = vunpack.c.h.b16 %v536
        %v623 = vunpack.c.l.b16 %v537
        %v624 = vunpack.c.l.b16 %v538
        %v625 = vunpack.c.h.b16 %v538
        %v626 = vunpack.c.l.b16 %v539
        %v627 = vunpack.c.l.b16 %v540
        %v628 = vunpack.c.h.b16 %v540
        %v629 = vunpack.c.l.b16 %v541
        %v630 = vunpack.c.l.b16 %v542
        %v631 = vunpack.c.h.b16 %v542
        %v632 = vunpack.c.l.b16 %v543
        %v633 = vunpack.c.l.b16 %v544
        %v634 = vunpack.c.h.b16 %v544
        %v635 = vunpack.c.l.b16 %v545
        %v636 = vunpack.c.l.b16 %v546
        %v637 = vunpack.c.h.b16 %v546
        %v638 = vunpack.c.l.b16 %v547
        %v639 = vunpack.c.l.b16 %v548
        %v640 = vunpack.c.h.b16 %v548
        %v641 = vunpack.c.l.b16 %v549
        %v642 = vunpack.c.l.b16 %v550
        %v643 = vunpack.c.h.b16 %v550
        %v644 = vunpack.c.l.b16 %v551
        %v645 = vunpack.c.l.b16 %v552
        %v646 = vunpack.c.h.b16 %v552
        %v647 = vunpack.c.l.b16 %v553
        %v648 = vunpack.c.l.b16 %v554
        %v649 = vunpack.c.h.b16 %v554
        %v650 = vunpack.c.l.b16 %v555
        %v651 = vunpack.c.l.b16 %v556
        %v652 = vunpack.c.h.b16 %v556
        %v653 = vunpack.c.l.b16 %v557
        %v654 = vunpack.c.l.b16 %v558
        %v655 = vunpack.c.h.b16 %v558
        %v656 = vunpack.c.l.b16 %v559
        %v657 = vpack.c.b16 %v612, %v609
        %v658 = vpack.c.b16 %v613, %v610
        %v659 = vpack.c.b16 %v614, %v611
        %v660 = vpack.c.b16 %v618, %v615
        %v661 = vpack.c.b16 %v619, %v616
        %v662 = vpack.c.b16 %v620, %v617
        %v663 = vpack.c.b16 %v624, %v621
        %v664 = vpack.c.b16 %v625, %v622
        %v665 = vpack.c.b16 %v626, %v623
        %v666 = vpack.c.b16 %v630, %v627
        %v667 = vpack.c.b16 %v631, %v628
        %v668 = vpack.c.b16 %v632, %v629
        %v669 = vpack.c.b16 %v636, %v633
        %v670 = vpack.c.b16 %v637, %v634
        %v671 = vpack.c.b16 %v638, %v635
        %v672 = vpack.c.b16 %v642, %v639
        %v673 = vpack.c.b16 %v643, %v640
        %v674 = vpack.c.b16 %v644, %v641
        %v675 = vpack.c.b16 %v648, %v645
        %v676 = vpack.c.b16 %v649, %v646
        %v677 = vpack.c.b16 %v650, %v647
        %v678 = vpack.c.b16 %v654, %v651
        %v679 = vpack.c.b16 %v655, %v652
        %v680 = vpack.c.b16 %v656, %v653
        %705 = vmatprep.subr.bf16.mxu0 %v658
        %706 = vmatpush1.bf16.msra.mxu0 %v657
        %707 = vmatprep.subr.bf16.mxu0 %v661
        %708 = vmatpush1.bf16.msra.mxu0 %v660
        %709 = vmatprep.subr.bf16.mxu0 %v664
        %710 = vmatpush1.bf16.msra.mxu0 %v663
        %711 = vmatprep.subr.bf16.mxu0 %v667
        %712 = vmatpush1.bf16.msra.mxu0 %v666
        %713 = vmatprep.subr.bf16.mxu0 %v670
        %714 = vmatpush1.bf16.msra.mxu0 %v669
        %715 = vmatprep.subr.bf16.mxu0 %v673
        %716 = vmatpush1.bf16.msra.mxu0 %v672
        %717 = vmatprep.subr.bf16.mxu0 %v676
        %718 = vmatpush1.bf16.msra.mxu0 %v675
        %719 = vmatprep.subr.bf16.mxu0 %v679
        %720 = vmatpush1.bf16.msra.mxu0 %v678
        %721 = vmatprep.subr.bf16.mxu0 0
        %722 = vmatpush1.bf16.msra.mxu0 0
        %723 = vmatprep.subr.bf16.mxu0 0
        %724 = vmatpush1.bf16.msra.mxu0 0
        %725 = vmatprep.subr.bf16.mxu0 0
        %726 = vmatpush1.bf16.msra.mxu0 0
        %727 = vmatprep.subr.bf16.mxu0 0
        %728 = vmatpush1.bf16.msra.mxu0 0
        %729 = vmatprep.subr.bf16.mxu0 0
        %730 = vmatpush1.bf16.msra.mxu0 0
        %731 = vmatprep.subr.bf16.mxu0 0
        %732 = vmatpush1.bf16.msra.mxu0 0
        %733 = vmatprep.subr.bf16.mxu0 0
        %734 = vmatpush1.bf16.msra.mxu0 0
        %735 = vmatprep.subr.bf16.mxu0 0
        %736 = vmatpush1.bf16.msra.mxu0 0
        %737 = vmatprep.mubr.bf16.mxu0 0
        %738 = vmatmul.mubr.bf16.gmra.mrb[0].mxu0 %v527
        %v739 = vpop.f32.mrb[0].mxu0
        %v740 = vadd.f32 %v565, %v739
        %v741 = vpop.f32.mrb[0].mxu0
        %v742 = vadd.f32 %v569, %v741
        %v743 = vpop.f32.mrb[0].mxu0
        %v744 = vadd.f32 %v565, %v743
        %v745 = vpop.f32.mrb[0].mxu0
        %v746 = vadd.f32 %v569, %v745
        %747 = vdwg.mxu0
        %748 = vmatprep.subr.bf16.mxu0 0
        %749 = vmatpush1.bf16.msra.mxu0 %v659
        %750 = vmatprep.subr.bf16.mxu0 0
        %751 = vmatpush1.bf16.msra.mxu0 %v662
        %752 = vmatprep.subr.bf16.mxu0 0
        %753 = vmatpush1.bf16.msra.mxu0 %v665
        %754 = vmatprep.subr.bf16.mxu0 0
        %755 = vmatpush1.bf16.msra.mxu0 %v668
        %756 = vmatprep.subr.bf16.mxu0 0
        %757 = vmatpush1.bf16.msra.mxu0 %v671
        %758 = vmatprep.subr.bf16.mxu0 0
        %759 = vmatpush1.bf16.msra.mxu0 %v674
        %760 = vmatprep.subr.bf16.mxu0 0
        %761 = vmatpush1.bf16.msra.mxu0 %v677
        %762 = vmatprep.subr.bf16.mxu0 0
        %763 = vmatpush1.bf16.msra.mxu0 %v680
        %764 = vmatprep.subr.bf16.mxu0 0
        %765 = vmatpush1.bf16.msra.mxu0 0
        %766 = vmatprep.subr.bf16.mxu0 0
        %767 = vmatpush1.bf16.msra.mxu0 0
        %768 = vmatprep.subr.bf16.mxu0 0
        %769 = vmatpush1.bf16.msra.mxu0 0
        %770 = vmatprep.subr.bf16.mxu0 0
        %771 = vmatpush1.bf16.msra.mxu0 0
        %772 = vmatprep.subr.bf16.mxu0 0
        %773 = vmatpush1.bf16.msra.mxu0 0
        %774 = vmatprep.subr.bf16.mxu0 0
        %775 = vmatpush1.bf16.msra.mxu0 0
        %776 = vmatprep.subr.bf16.mxu0 0
        %777 = vmatpush1.bf16.msra.mxu0 0
        %778 = vmatprep.subr.bf16.mxu0 0
        %779 = vmatpush1.bf16.msra.mxu0 0
        %780 = vmatprep.mubr.bf16.mxu0 0
        %781 = vmatmul.mubr.bf16.gmra.mrb[0].mxu0 %v527
        %v782 = vpop.f32.mrb[0].mxu0
        %v783 = vadd.f32 %v573, %v782
        %v784 = vpop.f32.mrb[0].mxu0
        %v785 = vpop.f32.mrb[0].mxu0
        %v786 = vadd.f32 %v573, %v785
        %v787 = vpop.f32.mrb[0].mxu0
        %788 = vdwg.mxu0
        %v789 = vmul.f32 %v740, 0.088388346
        %v790 = vmul.f32 %v744, 0.088388346
        %v791 = vpack.c.bf16 %v790, %v789
        %v792 = vpack.c.bf16 %v746, %v742
        %v793 = vpack.c.bf16 %v786, %v783
        %794 = vmatprep.subr.bf16.mxu0 0
        %795 = vmatpush1.bf16.xpose.msra.mxu0 %v792
        %796 = vmatprep.subr.bf16.mxu0 0
        %797 = vmatpush1.bf16.xpose.msra.mxu0 0
        %798 = vmatprep.subr.bf16.mxu0 0
        %799 = vmatpush1.bf16.xpose.msra.mxu0 0
        %800 = vmatprep.subr.bf16.mxu0 0
        %801 = vmatpush1.bf16.xpose.msra.mxu0 0
        %802 = vmatprep.subr.bf16.mxu0 0
        %803 = vmatpush1.bf16.xpose.msra.mxu0 0
        %804 = vmatprep.subr.bf16.mxu0 0
        %805 = vmatpush1.bf16.xpose.msra.mxu0 0
        %806 = vmatprep.subr.bf16.mxu0 0
        %807 = vmatpush1.bf16.xpose.msra.mxu0 0
        %808 = vmatprep.subr.bf16.mxu0 0
        %809 = vmatpush1.bf16.xpose.msra.mxu0 0
        %810 = vmatprep.subr.bf16.mxu0 0
        %811 = vmatpush1.bf16.xpose.msra.mxu0 0
        %812 = vmatprep.subr.bf16.mxu0 0
        %813 = vmatpush1.bf16.xpose.msra.mxu0 0
        %814 = vmatprep.subr.bf16.mxu0 0
        %815 = vmatpush1.bf16.xpose.msra.mxu0 0
        %816 = vmatprep.subr.bf16.mxu0 0
        %817 = vmatpush1.bf16.xpose.msra.mxu0 0
        %818 = vmatprep.subr.bf16.mxu0 0
        %819 = vmatpush1.bf16.xpose.msra.mxu0 0
        %820 = vmatprep.subr.bf16.mxu0 0
        %821 = vmatpush1.bf16.xpose.msra.mxu0 0
        %822 = vmatprep.subr.bf16.mxu0 0
        %823 = vmatpush1.bf16.xpose.msra.mxu0 0
        %824 = vmatprep.subr.bf16.mxu0 0
        %825 = vmatpush1.bf16.xpose.msra.mxu0 0
        %826 = vmatprep.mubr.bf16.mxu0 0
        %827 = vmatmul.mubr.bf16.gmra.mrb[0].mxu0 %v791
        %v828 = vpop.f32.mrb[0].mxu0
        %v829 = vadd.f32 0.0, %v828
        %v830 = vpop.f32.mrb[0].mxu0
        %v831 = vpop.f32.mrb[0].mxu0
        %v832 = vadd.f32 0.0, %v831
        %v833 = vpop.f32.mrb[0].mxu0
        %834 = vdwg.mxu0
        %v835 = vsel %vm525, %v829, -1e+30
        %v836 = vsel %vm526, %v832, -1e+30
        %vm837 = vcmask 130048
        %v838 = vsel %vm837, %v835, -inf
        %839 = vmax.xlane.f32.xlu0 %v838
        %v840 = vpop.xlane.xlu0 %839
        %v841 = vsel %vm837, %v836, -inf
        %842 = vmax.xlane.f32.xlu0 %v841
        %v843 = vpop.xlane.xlu0 %842
        %v844 = vsub.f32 %v835, %v840
        %v845 = vsub.f32 %v836, %v843
        %v846 = vmul.f32 %v844, 1.442695
        %v847 = vpow.pop %v846
        %v848 = vmul.f32 %v845, 1.442695
        %v849 = vpow.pop %v848
        %v850 = vsel %vm837, %v847, 0.0
        %851 = vadd.xlane.f32.xlu0 %v850
        %v852 = vpop.xlane.xlu0 %851
        %v853 = vsel %vm837, %v849, 0.0
        %854 = vadd.xlane.f32.xlu0 %v853
        %v855 = vpop.xlane.xlu0 %854
        %v856 = vrcp.pop %v852
        %v857 = vmul.f32 %v847, %v856
        %v858 = vrcp.pop %v855
        %v859 = vmul.f32 %v849, %v858
        %v860 = vpack.c.bf16 %v859, %v857
        %v862 = vsel %vm837, %v860, 0
        %864 = vmatprep.subr.bf16.mxu0 0
        %865 = vmatpush1.bf16.msra.mxu0 %v793
        %866 = vmatprep.subr.bf16.mxu0 0
        %867 = vmatpush1.bf16.msra.mxu0 0
        %868 = vmatprep.subr.bf16.mxu0 0
        %869 = vmatpush1.bf16.msra.mxu0 0
        %870 = vmatprep.subr.bf16.mxu0 0
        %871 = vmatpush1.bf16.msra.mxu0 0
        %872 = vmatprep.subr.bf16.mxu0 0
        %873 = vmatpush1.bf16.msra.mxu0 0
        %874 = vmatprep.subr.bf16.mxu0 0
        %875 = vmatpush1.bf16.msra.mxu0 0
        %876 = vmatprep.subr.bf16.mxu0 0
        %877 = vmatpush1.bf16.msra.mxu0 0
        %878 = vmatprep.subr.bf16.mxu0 0
        %879 = vmatpush1.bf16.msra.mxu0 0
        %880 = vmatprep.subr.bf16.mxu0 0
        %881 = vmatpush1.bf16.msra.mxu0 0
        %882 = vmatprep.subr.bf16.mxu0 0
        %883 = vmatpush1.bf16.msra.mxu0 0
        %884 = vmatprep.subr.bf16.mxu0 0
        %885 = vmatpush1.bf16.msra.mxu0 0
        %886 = vmatprep.subr.bf16.mxu0 0
        %887 = vmatpush1.bf16.msra.mxu0 0
        %888 = vmatprep.subr.bf16.mxu0 0
        %889 = vmatpush1.bf16.msra.mxu0 0
        %890 = vmatprep.subr.bf16.mxu0 0
        %891 = vmatpush1.bf16.msra.mxu0 0
        %892 = vmatprep.subr.bf16.mxu0 0
        %893 = vmatpush1.bf16.msra.mxu0 0
        %894 = vmatprep.subr.bf16.mxu0 0
        %895 = vmatpush1.bf16.msra.mxu0 0
        %896 = vmatprep.mubr.bf16.mxu0 0
        %897 = vmatmul.mubr.bf16.gmra.mrb[0].mxu0 %v862
        %v898 = vpop.f32.mrb[0].mxu0
        %v899 = vadd.f32 0.0, %v898
        %v900 = vpop.f32.mrb[0].mxu0
        %v901 = vpop.f32.mrb[0].mxu0
        %v902 = vadd.f32 0.0, %v901
        %v903 = vpop.f32.mrb[0].mxu0
        %904 = vdwg.mxu0
        %v905 = vpack.c.bf16 %v902, %v899
        %v906 = vld [vmem:[#allocation7] sm:$0xf]
        %v907 = vld [vmem:[#allocation7 + $0x4] sm:$0xf]
        %v908 = vld [vmem:[#allocation7 + $0x8] sm:$0xf]
        %v909 = vld [vmem:[#allocation7 + $0xc] sm:$0xf]
        %v910 = vld [vmem:[#allocation7 + $0x10] sm:$0xf]
        %v911 = vld [vmem:[#allocation7 + $0x14] sm:$0xf]
        %v912 = vld [vmem:[#allocation7 + $0x18] sm:$0xf]
        %v913 = vld [vmem:[#allocation7 + $0x1c] sm:$0xf]
        %v914 = vld [vmem:[#allocation7 + $0x20] sm:$0xf]
        %v915 = vld [vmem:[#allocation7 + $0x24] sm:$0xf]
        %v916 = vld [vmem:[#allocation7 + $0x28] sm:$0xf]
        %v917 = vld [vmem:[#allocation7 + $0x2c] sm:$0xf]
        %v918 = vld [vmem:[#allocation7 + $0x30] sm:$0xf]
        %v919 = vld [vmem:[#allocation7 + $0x34] sm:$0xf]
        %v920 = vld [vmem:[#allocation7 + $0x38] sm:$0xf]
        %v921 = vld [vmem:[#allocation7 + $0x3c] sm:$0xf]
        %v922 = vld [vmem:[%s4] sm:$0x1]
        %v924 = vlaneseq
        %v925 = vshrl.u32 %v924, 7
        %v926 = vsub.s32 0, %v925
        %v927 = vrot.slane %v922, %v926
        %v945 = vunpack.c.l.b16 %v906
        %v946 = vunpack.c.l.b16 %v907
        %v947 = vunpack.c.l.b16 %v908
        %v948 = vunpack.c.l.b16 %v909
        %v949 = vunpack.c.l.b16 %v910
        %v950 = vunpack.c.l.b16 %v911
        %v951 = vunpack.c.l.b16 %v912
        %v952 = vunpack.c.l.b16 %v913
        %v953 = vunpack.c.l.b16 %v914
        %v954 = vunpack.c.l.b16 %v915
        %v955 = vunpack.c.l.b16 %v916
        %v956 = vunpack.c.l.b16 %v917
        %v957 = vunpack.c.l.b16 %v918
        %v958 = vunpack.c.l.b16 %v919
        %v959 = vunpack.c.l.b16 %v920
        %v960 = vunpack.c.l.b16 %v921
        %v961 = vpack.c.b16 %v946, %v945
        %v962 = vpack.c.b16 %v948, %v947
        %v963 = vpack.c.b16 %v950, %v949
        %v964 = vpack.c.b16 %v952, %v951
        %v965 = vpack.c.b16 %v954, %v953
        %v966 = vpack.c.b16 %v956, %v955
        %v967 = vpack.c.b16 %v958, %v957
        %v968 = vpack.c.b16 %v960, %v959
        %977 = vmatprep.subr.bf16.mxu0 0
        %978 = vmatpush1.bf16.msra.mxu0 %v961
        %979 = vmatprep.subr.bf16.mxu0 0
        %980 = vmatpush1.bf16.msra.mxu0 %v962
        %981 = vmatprep.subr.bf16.mxu0 0
        %982 = vmatpush1.bf16.msra.mxu0 %v963
        %983 = vmatprep.subr.bf16.mxu0 0
        %984 = vmatpush1.bf16.msra.mxu0 %v964
        %985 = vmatprep.subr.bf16.mxu0 0
        %986 = vmatpush1.bf16.msra.mxu0 %v965
        %987 = vmatprep.subr.bf16.mxu0 0
        %988 = vmatpush1.bf16.msra.mxu0 %v966
        %989 = vmatprep.subr.bf16.mxu0 0
        %990 = vmatpush1.bf16.msra.mxu0 %v967
        %991 = vmatprep.subr.bf16.mxu0 0
        %992 = vmatpush1.bf16.msra.mxu0 %v968
        %993 = vmatprep.subr.bf16.mxu0 0
        %994 = vmatpush1.bf16.msra.mxu0 0
        %995 = vmatprep.subr.bf16.mxu0 0
        %996 = vmatpush1.bf16.msra.mxu0 0
        %997 = vmatprep.subr.bf16.mxu0 0
        %998 = vmatpush1.bf16.msra.mxu0 0
        %999 = vmatprep.subr.bf16.mxu0 0
        %1000 = vmatpush1.bf16.msra.mxu0 0
        %1001 = vmatprep.subr.bf16.mxu0 0
        %1002 = vmatpush1.bf16.msra.mxu0 0
        %1003 = vmatprep.subr.bf16.mxu0 0
        %1004 = vmatpush1.bf16.msra.mxu0 0
        %1005 = vmatprep.subr.bf16.mxu0 0
        %1006 = vmatpush1.bf16.msra.mxu0 0
        %1007 = vmatprep.subr.bf16.mxu0 0
        %1008 = vmatpush1.bf16.msra.mxu0 0
        %1009 = vmatprep.mubr.bf16.mxu0 0
        %1010 = vmatmul.mubr.bf16.gmra.mrb[0].mxu0 %v905
        %v1011 = vpop.f32.mrb[0].mxu0
        %v1012 = vadd.f32 %v927, %v1011
        %v1013 = vpop.f32.mrb[0].mxu0
        %v1014 = vpop.f32.mrb[0].mxu0
        %v1015 = vadd.f32 %v927, %v1014
        %v1016 = vpop.f32.mrb[0].mxu0
        %1017 = vdwg.mxu0
        %v1018 = vadd.f32 %v518, %v1012
        %v1019 = vadd.f32 %v519, %v1015
        %v1020 = vld [vmem:[%s9] sm:$0x1]
        %v1021 = vld [vmem:[%s10] sm:$0x1]
        %1022 = vadd.xlane.f32.xlu0 %v1018
        %v1023 = vpop.xlane.xlu0 %1022
        %1024 = vadd.xlane.f32.xlu0 %v1019
        %v1025 = vpop.xlane.xlu0 %1024
        %v1026 = vrcp.pop 128.0
        %v1027 = vmul.f32 %v1023, %v1026
        %v1028 = vmul.f32 %v1025, %v1026
        %v1029 = vsub.f32 %v1018, %v1027
        %v1030 = vsub.f32 %v1019, %v1028
        %v1031 = vmul.f32 %v1029, %v1029
        %v1032 = vmul.f32 %v1030, %v1030
        %1033 = vadd.xlane.f32.xlu0 %v1031
        %v1034 = vpop.xlane.xlu0 %1033
        %1035 = vadd.xlane.f32.xlu0 %v1032
        %v1036 = vpop.xlane.xlu0 %1035
        %v1037 = vmul.f32 %v1034, %v1026
        %v1038 = vmul.f32 %v1036, %v1026
        %v1039 = vadd.f32 %v1037, 1e-05
        %v1040 = vadd.f32 %v1038, 1e-05
        %v1041 = vrsqrt.pop %v1039
        %v1042 = vrsqrt.pop %v1040
        %v1043 = vmul.f32 %v1029, %v1041
        %v1044 = vmul.f32 %v1030, %v1042
        %v1046 = vlaneseq
        %v1047 = vshrl.u32 %v1046, 7
        %v1048 = vsub.s32 0, %v1047
        %v1049 = vrot.slane %v1020, %v1048
        %v1051 = vmul.f32 %v1043, %v1049
        %v1052 = vmul.f32 %v1044, %v1049
        %v1054 = vlaneseq
        %v1055 = vshrl.u32 %v1054, 7
        %v1056 = vsub.s32 0, %v1055
        %v1057 = vrot.slane %v1021, %v1056
        %v1059 = vadd.f32 %v1051, %v1057
        %v1060 = vadd.f32 %v1052, %v1057
        %v1061 = vpack.c.bf16 %v1060, %v1059
        %v1062 = vld [vmem:[#allocation8] sm:$0xff]
        %v1063 = vld [vmem:[#allocation8 + $0x8] sm:$0xff]
        %v1064 = vld [vmem:[#allocation8 + $0x10] sm:$0xff]
        %v1065 = vld [vmem:[#allocation8 + $0x18] sm:$0xff]
        %v1066 = vld [vmem:[#allocation8 + $0x20] sm:$0xff]
        %v1067 = vld [vmem:[#allocation8 + $0x28] sm:$0xff]
        %v1068 = vld [vmem:[#allocation8 + $0x30] sm:$0xff]
        %v1069 = vld [vmem:[#allocation8 + $0x38] sm:$0xff]
        %v1070 = vld [vmem:[#allocation8 + $0x40] sm:$0xff]
        %v1071 = vld [vmem:[#allocation8 + $0x48] sm:$0xff]
        %v1072 = vld [vmem:[#allocation8 + $0x50] sm:$0xff]
        %v1073 = vld [vmem:[#allocation8 + $0x58] sm:$0xff]
        %v1074 = vld [vmem:[#allocation8 + $0x60] sm:$0xff]
        %v1075 = vld [vmem:[#allocation8 + $0x68] sm:$0xff]
        %v1076 = vld [vmem:[#allocation8 + $0x70] sm:$0xff]
        %v1077 = vld [vmem:[#allocation8 + $0x78] sm:$0xff]
        %v1078 = vld [vmem:[%s6] sm:$0x3]
        %v1080 = vlaneseq
        %v1081 = vshrl.u32 %v1080, 7
        %v1082 = vsub.s32 0, %v1081
        %v1083 = vrot.slane %v1078, %v1082
        %v1084 = vlaneseq
        %v1085 = vshrl.u32 %v1084, 7
        %v1086 = vsub.s32 1, %v1085
        %v1087 = vrot.slane %v1078, %v1086
        %v1106 = vunpack.c.l.b16 %v1062
        %v1107 = vunpack.c.h.b16 %v1062
        %v1108 = vunpack.c.l.b16 %v1063
        %v1109 = vunpack.c.h.b16 %v1063
        %v1110 = vunpack.c.l.b16 %v1064
        %v1111 = vunpack.c.h.b16 %v1064
        %v1112 = vunpack.c.l.b16 %v1065
        %v1113 = vunpack.c.h.b16 %v1065
        %v1114 = vunpack.c.l.b16 %v1066
        %v1115 = vunpack.c.h.b16 %v1066
        %v1116 = vunpack.c.l.b16 %v1067
        %v1117 = vunpack.c.h.b16 %v1067
        %v1118 = vunpack.c.l.b16 %v1068
        %v1119 = vunpack.c.h.b16 %v1068
        %v1120 = vunpack.c.l.b16 %v1069
        %v1121 = vunpack.c.h.b16 %v1069
        %v1122 = vunpack.c.l.b16 %v1070
        %v1123 = vunpack.c.h.b16 %v1070
        %v1124 = vunpack.c.l.b16 %v1071
        %v1125 = vunpack.c.h.b16 %v1071
        %v1126 = vunpack.c.l.b16 %v1072
        %v1127 = vunpack.c.h.b16 %v1072
        %v1128 = vunpack.c.l.b16 %v1073
        %v1129 = vunpack.c.h.b16 %v1073
        %v1130 = vunpack.c.l.b16 %v1074
        %v1131 = vunpack.c.h.b16 %v1074
        %v1132 = vunpack.c.l.b16 %v1075
        %v1133 = vunpack.c.h.b16 %v1075
        %v1134 = vunpack.c.l.b16 %v1076
        %v1135 = vunpack.c.h.b16 %v1076
        %v1136 = vunpack.c.l.b16 %v1077
        %v1137 = vunpack.c.h.b16 %v1077
        %v1138 = vpack.c.b16 %v1108, %v1106
        %v1139 = vpack.c.b16 %v1109, %v1107
        %v1140 = vpack.c.b16 %v1112, %v1110
        %v1141 = vpack.c.b16 %v1113, %v1111
        %v1142 = vpack.c.b16 %v1116, %v1114
        %v1143 = vpack.c.b16 %v1117, %v1115
        %v1144 = vpack.c.b16 %v1120, %v1118
        %v1145 = vpack.c.b16 %v1121, %v1119
        %v1146 = vpack.c.b16 %v1124, %v1122
        %v1147 = vpack.c.b16 %v1125, %v1123
        %v1148 = vpack.c.b16 %v1128, %v1126
        %v1149 = vpack.c.b16 %v1129, %v1127
        %v1150 = vpack.c.b16 %v1132, %v1130
        %v1151 = vpack.c.b16 %v1133, %v1131
        %v1152 = vpack.c.b16 %v1136, %v1134
        %v1153 = vpack.c.b16 %v1137, %v1135
        %1170 = vmatprep.subr.bf16.mxu0 %v1139
        %1171 = vmatpush1.bf16.msra.mxu0 %v1138
        %1172 = vmatprep.subr.bf16.mxu0 %v1141
        %1173 = vmatpush1.bf16.msra.mxu0 %v1140
        %1174 = vmatprep.subr.bf16.mxu0 %v1143
        %1175 = vmatpush1.bf16.msra.mxu0 %v1142
        %1176 = vmatprep.subr.bf16.mxu0 %v1145
        %1177 = vmatpush1.bf16.msra.mxu0 %v1144
        %1178 = vmatprep.subr.bf16.mxu0 %v1147
        %1179 = vmatpush1.bf16.msra.mxu0 %v1146
        %1180 = vmatprep.subr.bf16.mxu0 %v1149
        %1181 = vmatpush1.bf16.msra.mxu0 %v1148
        %1182 = vmatprep.subr.bf16.mxu0 %v1151
        %1183 = vmatpush1.bf16.msra.mxu0 %v1150
        %1184 = vmatprep.subr.bf16.mxu0 %v1153
        %1185 = vmatpush1.bf16.msra.mxu0 %v1152
        %1186 = vmatprep.subr.bf16.mxu0 0
        %1187 = vmatpush1.bf16.msra.mxu0 0
        %1188 = vmatprep.subr.bf16.mxu0 0
        %1189 = vmatpush1.bf16.msra.mxu0 0
        %1190 = vmatprep.subr.bf16.mxu0 0
        %1191 = vmatpush1.bf16.msra.mxu0 0
        %1192 = vmatprep.subr.bf16.mxu0 0
        %1193 = vmatpush1.bf16.msra.mxu0 0
        %1194 = vmatprep.subr.bf16.mxu0 0
        %1195 = vmatpush1.bf16.msra.mxu0 0
        %1196 = vmatprep.subr.bf16.mxu0 0
        %1197 = vmatpush1.bf16.msra.mxu0 0
        %1198 = vmatprep.subr.bf16.mxu0 0
        %1199 = vmatpush1.bf16.msra.mxu0 0
        %1200 = vmatprep.subr.bf16.mxu0 0
        %1201 = vmatpush1.bf16.msra.mxu0 0
        %1202 = vmatprep.mubr.bf16.mxu0 0
        %1203 = vmatmul.mubr.bf16.gmra.mrb[0].mxu0 %v1061
        %v1204 = vpop.f32.mrb[0].mxu0
        %v1205 = vadd.f32 %v1083, %v1204
        %v1206 = vpop.f32.mrb[0].mxu0
        %v1207 = vadd.f32 %v1087, %v1206
        %v1208 = vpop.f32.mrb[0].mxu0
        %v1209 = vadd.f32 %v1083, %v1208
        %v1210 = vpop.f32.mrb[0].mxu0
        %v1211 = vadd.f32 %v1087, %v1210
        %1212 = vdwg.mxu0
        %v1213 = vmax.f32 %v1205, 0.0
        %v1214 = vmax.f32 %v1207, 0.0
        %v1215 = vmax.f32 %v1209, 0.0
        %v1216 = vmax.f32 %v1211, 0.0
        %v1217 = vpack.c.bf16 %v1215, %v1213
        %v1218 = vpack.c.bf16 %v1216, %v1214
        %v1219 = vld [vmem:[#allocation10] sm:$0xf]
        %v1220 = vld [vmem:[#allocation10 + $0x4] sm:$0xf]
        %v1221 = vld [vmem:[#allocation10 + $0x8] sm:$0xf]
        %v1222 = vld [vmem:[#allocation10 + $0xc] sm:$0xf]
        %v1223 = vld [vmem:[#allocation10 + $0x10] sm:$0xf]
        %v1224 = vld [vmem:[#allocation10 + $0x14] sm:$0xf]
        %v1225 = vld [vmem:[#allocation10 + $0x18] sm:$0xf]
        %v1226 = vld [vmem:[#allocation10 + $0x1c] sm:$0xf]
        %v1227 = vld [vmem:[#allocation10 + $0x20] sm:$0xf]
        %v1228 = vld [vmem:[#allocation10 + $0x24] sm:$0xf]
        %v1229 = vld [vmem:[#allocation10 + $0x28] sm:$0xf]
        %v1230 = vld [vmem:[#allocation10 + $0x2c] sm:$0xf]
        %v1231 = vld [vmem:[#allocation10 + $0x30] sm:$0xf]
        %v1232 = vld [vmem:[#allocation10 + $0x34] sm:$0xf]
        %v1233 = vld [vmem:[#allocation10 + $0x38] sm:$0xf]
        %v1234 = vld [vmem:[#allocation10 + $0x3c] sm:$0xf]
        %v1235 = vld [vmem:[#allocation10 + $0x40] sm:$0xf]
        %v1236 = vld [vmem:[#allocation10 + $0x44] sm:$0xf]
        %v1237 = vld [vmem:[#allocation10 + $0x48] sm:$0xf]
        %v1238 = vld [vmem:[#allocation10 + $0x4c] sm:$0xf]
        %v1239 = vld [vmem:[#allocation10 + $0x50] sm:$0xf]
        %v1240 = vld [vmem:[#allocation10 + $0x54] sm:$0xf]
        %v1241 = vld [vmem:[#allocation10 + $0x58] sm:$0xf]
        %v1242 = vld [vmem:[#allocation10 + $0x5c] sm:$0xf]
        %v1243 = vld [vmem:[#allocation10 + $0x60] sm:$0xf]
        %v1244 = vld [vmem:[#allocation10 + $0x64] sm:$0xf]
        %v1245 = vld [vmem:[#allocation10 + $0x68] sm:$0xf]
        %v1246 = vld [vmem:[#allocation10 + $0x6c] sm:$0xf]
        %v1247 = vld [vmem:[#allocation10 + $0x70] sm:$0xf]
        %v1248 = vld [vmem:[#allocation10 + $0x74] sm:$0xf]
        %v1249 = vld [vmem:[#allocation10 + $0x78] sm:$0xf]
        %v1250 = vld [vmem:[#allocation10 + $0x7c] sm:$0xf]
        %v1251 = vld [vmem:[%s8] sm:$0x1]
        %v1253 = vlaneseq
        %v1254 = vshrl.u32 %v1253, 7
        %v1255 = vsub.s32 0, %v1254
        %v1256 = vrot.slane %v1251, %v1255
        %v1290 = vunpack.c.l.b16 %v1219
        %v1291 = vunpack.c.l.b16 %v1220
        %v1292 = vunpack.c.l.b16 %v1221
        %v1293 = vunpack.c.l.b16 %v1222
        %v1294 = vunpack.c.l.b16 %v1223
        %v1295 = vunpack.c.l.b16 %v1224
        %v1296 = vunpack.c.l.b16 %v1225
        %v1297 = vunpack.c.l.b16 %v1226
        %v1298 = vunpack.c.l.b16 %v1227
        %v1299 = vunpack.c.l.b16 %v1228
        %v1300 = vunpack.c.l.b16 %v1229
        %v1301 = vunpack.c.l.b16 %v1230
        %v1302 = vunpack.c.l.b16 %v1231
        %v1303 = vunpack.c.l.b16 %v1232
        %v1304 = vunpack.c.l.b16 %v1233
        %v1305 = vunpack.c.l.b16 %v1234
        %v1306 = vunpack.c.l.b16 %v1235
        %v1307 = vunpack.c.l.b16 %v1236
        %v1308 = vunpack.c.l.b16 %v1237
        %v1309 = vunpack.c.l.b16 %v1238
        %v1310 = vunpack.c.l.b16 %v1239
        %v1311 = vunpack.c.l.b16 %v1240
        %v1312 = vunpack.c.l.b16 %v1241
        %v1313 = vunpack.c.l.b16 %v1242
        %v1314 = vunpack.c.l.b16 %v1243
        %v1315 = vunpack.c.l.b16 %v1244
        %v1316 = vunpack.c.l.b16 %v1245
        %v1317 = vunpack.c.l.b16 %v1246
        %v1318 = vunpack.c.l.b16 %v1247
        %v1319 = vunpack.c.l.b16 %v1248
        %v1320 = vunpack.c.l.b16 %v1249
        %v1321 = vunpack.c.l.b16 %v1250
        %v1322 = vpack.c.b16 %v1291, %v1290
        %v1323 = vpack.c.b16 %v1293, %v1292
        %v1324 = vpack.c.b16 %v1295, %v1294
        %v1325 = vpack.c.b16 %v1297, %v1296
        %v1326 = vpack.c.b16 %v1299, %v1298
        %v1327 = vpack.c.b16 %v1301, %v1300
        %v1328 = vpack.c.b16 %v1303, %v1302
        %v1329 = vpack.c.b16 %v1305, %v1304
        %v1330 = vpack.c.b16 %v1307, %v1306
        %v1331 = vpack.c.b16 %v1309, %v1308
        %v1332 = vpack.c.b16 %v1311, %v1310
        %v1333 = vpack.c.b16 %v1313, %v1312
        %v1334 = vpack.c.b16 %v1315, %v1314
        %v1335 = vpack.c.b16 %v1317, %v1316
        %v1336 = vpack.c.b16 %v1319, %v1318
        %v1337 = vpack.c.b16 %v1321, %v1320
        %1354 = vmatprep.subr.bf16.mxu0 0
        %1355 = vmatpush1.bf16.msra.mxu0 %v1322
        %1356 = vmatprep.subr.bf16.mxu0 0
        %1357 = vmatpush1.bf16.msra.mxu0 %v1323
        %1358 = vmatprep.subr.bf16.mxu0 0
        %1359 = vmatpush1.bf16.msra.mxu0 %v1324
        %1360 = vmatprep.subr.bf16.mxu0 0
        %1361 = vmatpush1.bf16.msra.mxu0 %v1325
        %1362 = vmatprep.subr.bf16.mxu0 0
        %1363 = vmatpush1.bf16.msra.mxu0 %v1326
        %1364 = vmatprep.subr.bf16.mxu0 0
        %1365 = vmatpush1.bf16.msra.mxu0 %v1327
        %1366 = vmatprep.subr.bf16.mxu0 0
        %1367 = vmatpush1.bf16.msra.mxu0 %v1328
        %1368 = vmatprep.subr.bf16.mxu0 0
        %1369 = vmatpush1.bf16.msra.mxu0 %v1329
        %1370 = vmatprep.subr.bf16.mxu0 0
        %1371 = vmatpush1.bf16.msra.mxu0 %v1330
        %1372 = vmatprep.subr.bf16.mxu0 0
        %1373 = vmatpush1.bf16.msra.mxu0 %v1331
        %1374 = vmatprep.subr.bf16.mxu0 0
        %1375 = vmatpush1.bf16.msra.mxu0 %v1332
        %1376 = vmatprep.subr.bf16.mxu0 0
        %1377 = vmatpush1.bf16.msra.mxu0 %v1333
        %1378 = vmatprep.subr.bf16.mxu0 0
        %1379 = vmatpush1.bf16.msra.mxu0 %v1334
        %1380 = vmatprep.subr.bf16.mxu0 0
        %1381 = vmatpush1.bf16.msra.mxu0 %v1335
        %1382 = vmatprep.subr.bf16.mxu0 0
        %1383 = vmatpush1.bf16.msra.mxu0 %v1336
        %1384 = vmatprep.subr.bf16.mxu0 0
        %1385 = vmatpush1.bf16.msra.mxu0 %v1337
        %1386 = vmatprep.mubr.bf16.mxu0 %v1218
        %1387 = vmatmul.mubr.bf16.gmra.mrb[0].mxu0 %v1217
        %v1388 = vpop.f32.mrb[0].mxu0
        %v1389 = vadd.f32 %v1256, %v1388
        %v1390 = vpop.f32.mrb[0].mxu0
        %v1391 = vpop.f32.mrb[0].mxu0
        %v1392 = vadd.f32 %v1256, %v1391
        %v1393 = vpop.f32.mrb[0].mxu0
        %1394 = vdwg.mxu0
        %v1395 = vadd.f32 %v1059, %v1389
        %v1396 = vadd.f32 %v1060, %v1392
        %v1397 = vld [vmem:[%s11] sm:$0x1]
        %v1398 = vld [vmem:[%s12] sm:$0x1]
        %1399 = vadd.xlane.f32.xlu0 %v1395
        %v1400 = vpop.xlane.xlu0 %1399
        %1401 = vadd.xlane.f32.xlu0 %v1396
        %v1402 = vpop.xlane.xlu0 %1401
        %v1403 = vmul.f32 %v1400, %v1026
        %v1404 = vmul.f32 %v1402, %v1026
        %v1405 = vsub.f32 %v1395, %v1403
        %v1406 = vsub.f32 %v1396, %v1404
        %v1407 = vmul.f32 %v1405, %v1405
        %v1408 = vmul.f32 %v1406, %v1406
        %1409 = vadd.xlane.f32.xlu0 %v1407
        %v1410 = vpop.xlane.xlu0 %1409
        %1411 = vadd.xlane.f32.xlu0 %v1408
        %v1412 = vpop.xlane.xlu0 %1411
        %v1413 = vmul.f32 %v1410, %v1026
        %v1414 = vmul.f32 %v1412, %v1026
        %v1415 = vadd.f32 %v1413, 1e-05
        %v1416 = vadd.f32 %v1414, 1e-05
        %v1417 = vrsqrt.pop %v1415
        %v1418 = vrsqrt.pop %v1416
        %v1419 = vmul.f32 %v1405, %v1417
        %v1420 = vmul.f32 %v1406, %v1418
        %v1422 = vlaneseq
        %v1423 = vshrl.u32 %v1422, 7
        %v1424 = vsub.s32 0, %v1423
        %v1425 = vrot.slane %v1397, %v1424
        %v1427 = vmul.f32 %v1419, %v1425
        %v1428 = vmul.f32 %v1420, %v1425
        %v1430 = vlaneseq
        %v1431 = vshrl.u32 %v1430, 7
        %v1432 = vsub.s32 0, %v1431
        %v1433 = vrot.slane %v1398, %v1432
        %v1435 = vadd.f32 %v1427, %v1433
        %v1436 = vadd.f32 %v1428, %v1433
        %v1437 = vpack.c.bf16 %v1436, %v1435
        %v1438 = vld [vmem:[#allocation5] sm:$0xff]
        %v1439 = vld [vmem:[#allocation5 + $0x8] sm:$0xf]
        %v1440 = vld [vmem:[#allocation5 + $0xc] sm:$0xff]
        %v1441 = vld [vmem:[#allocation5 + $0x14] sm:$0xf]
        %v1442 = vld [vmem:[#allocation5 + $0x18] sm:$0xff]
        %v1443 = vld [vmem:[#allocation5 + $0x20] sm:$0xf]
        %v1444 = vld [vmem:[#allocation5 + $0x24] sm:$0xff]
        %v1445 = vld [vmem:[#allocation5 + $0x2c] sm:$0xf]
        %v1446 = vld [vmem:[#allocation5 + $0x30] sm:$0xff]
        %v1447 = vld [vmem:[#allocation5 + $0x38] sm:$0xf]
        %v1448 = vld [vmem:[#allocation5 + $0x3c] sm:$0xff]
        %v1449 = vld [vmem:[#allocation5 + $0x44] sm:$0xf]
        %v1450 = vld [vmem:[#allocation5 + $0x48] sm:$0xff]
        %v1451 = vld [vmem:[#allocation5 + $0x50] sm:$0xf]
        %v1452 = vld [vmem:[#allocation5 + $0x54] sm:$0xff]
        %v1453 = vld [vmem:[#allocation5 + $0x5c] sm:$0xf]
        %v1454 = vld [vmem:[#allocation5 + $0x60] sm:$0xff]
        %v1455 = vld [vmem:[#allocation5 + $0x68] sm:$0xf]
        %v1456 = vld [vmem:[#allocation5 + $0x6c] sm:$0xff]
        %v1457 = vld [vmem:[#allocation5 + $0x74] sm:$0xf]
        %v1458 = vld [vmem:[#allocation5 + $0x78] sm:$0xff]
        %v1459 = vld [vmem:[#allocation5 + $0x80] sm:$0xf]
        %v1460 = vld [vmem:[#allocation5 + $0x84] sm:$0xff]
        %v1461 = vld [vmem:[#allocation5 + $0x8c] sm:$0xf]
        %v1462 = vld [vmem:[#allocation5 + $0x90] sm:$0xff]
        %v1463 = vld [vmem:[#allocation5 + $0x98] sm:$0xf]
        %v1464 = vld [vmem:[#allocation5 + $0x9c] sm:$0xff]
        %v1465 = vld [vmem:[#allocation5 + $0xa4] sm:$0xf]
        %v1466 = vld [vmem:[#allocation5 + $0xa8] sm:$0xff]
        %v1467 = vld [vmem:[#allocation5 + $0xb0] sm:$0xf]
        %v1468 = vld [vmem:[#allocation5 + $0xb4] sm:$0xff]
        %v1469 = vld [vmem:[#allocation5 + $0xbc] sm:$0xf]
        %v1470 = vld [vmem:[%s2] sm:$0x7]
        %v1472 = vlaneseq
        %v1473 = vshrl.u32 %v1472, 7
        %v1474 = vsub.s32 0, %v1473
        %v1475 = vrot.slane %v1470, %v1474
        %v1476 = vlaneseq
        %v1477 = vshrl.u32 %v1476, 7
        %v1478 = vsub.s32 1, %v1477
        %v1479 = vrot.slane %v1470, %v1478
        %v1480 = vlaneseq
        %v1481 = vshrl.u32 %v1480, 7
        %v1482 = vsub.s32 2, %v1481
        %v1483 = vrot.slane %v1470, %v1482
        %v1519 = vunpack.c.l.b16 %v1438
        %v1520 = vunpack.c.h.b16 %v1438
        %v1521 = vunpack.c.l.b16 %v1439
        %v1522 = vunpack.c.l.b16 %v1440
        %v1523 = vunpack.c.h.b16 %v1440
        %v1524 = vunpack.c.l.b16 %v1441
        %v1525 = vunpack.c.l.b16 %v1442
        %v1526 = vunpack.c.h.b16 %v1442
        %v1527 = vunpack.c.l.b16 %v1443
        %v1528 = vunpack.c.l.b16 %v1444
        %v1529 = vunpack.c.h.b16 %v1444
        %v1530 = vunpack.c.l.b16 %v1445
        %v1531 = vunpack.c.l.b16 %v1446
        %v1532 = vunpack.c.h.b16 %v1446
        %v1533 = vunpack.c.l.b16 %v1447
        %v1534 = vunpack.c.l.b16 %v1448
        %v1535 = vunpack.c.h.b16 %v1448
        %v1536 = vunpack.c.l.b16 %v1449
        %v1537 = vunpack.c.l.b16 %v1450
        %v1538 = vunpack.c.h.b16 %v1450
        %v1539 = vunpack.c.l.b16 %v1451
        %v1540 = vunpack.c.l.b16 %v1452
        %v1541 = vunpack.c.h.b16 %v1452
        %v1542 = vunpack.c.l.b16 %v1453
        %v1543 = vunpack.c.l.b16 %v1454
        %v1544 = vunpack.c.h.b16 %v1454
        %v1545 = vunpack.c.l.b16 %v1455
        %v1546 = vunpack.c.l.b16 %v1456
        %v1547 = vunpack.c.h.b16 %v1456
        %v1548 = vunpack.c.l.b16 %v1457
        %v1549 = vunpack.c.l.b16 %v1458
        %v1550 = vunpack.c.h.b16 %v1458
        %v1551 = vunpack.c.l.b16 %v1459
        %v1552 = vunpack.c.l.b16 %v1460
        %v1553 = vunpack.c.h.b16 %v1460
        %v1554 = vunpack.c.l.b16 %v1461
        %v1555 = vunpack.c.l.b16 %v1462
        %v1556 = vunpack.c.h.b16 %v1462
        %v1557 = vunpack.c.l.b16 %v1463
        %v1558 = vunpack.c.l.b16 %v1464
        %v1559 = vunpack.c.h.b16 %v1464
        %v1560 = vunpack.c.l.b16 %v1465
        %v1561 = vunpack.c.l.b16 %v1466
        %v1562 = vunpack.c.h.b16 %v1466
        %v1563 = vunpack.c.l.b16 %v1467
        %v1564 = vunpack.c.l.b16 %v1468
        %v1565 = vunpack.c.h.b16 %v1468
        %v1566 = vunpack.c.l.b16 %v1469
        %v1567 = vpack.c.b16 %v1522, %v1519
        %v1568 = vpack.c.b16 %v1523, %v1520
        %v1569 = vpack.c.b16 %v1524, %v1521
        %v1570 = vpack.c.b16 %v1528, %v1525
        %v1571 = vpack.c.b16 %v1529, %v1526
        %v1572 = vpack.c.b16 %v1530, %v1527
        %v1573 = vpack.c.b16 %v1534, %v1531
        %v1574 = vpack.c.b16 %v1535, %v1532
        %v1575 = vpack.c.b16 %v1536, %v1533
        %v1576 = vpack.c.b16 %v1540, %v1537
        %v1577 = vpack.c.b16 %v1541, %v1538
        %v1578 = vpack.c.b16 %v1542, %v1539
        %v1579 = vpack.c.b16 %v1546, %v1543
        %v1580 = vpack.c.b16 %v1547, %v1544
        %v1581 = vpack.c.b16 %v1548, %v1545
        %v1582 = vpack.c.b16 %v1552, %v1549
        %v1583 = vpack.c.b16 %v1553, %v1550
        %v1584 = vpack.c.b16 %v1554, %v1551
        %v1585 = vpack.c.b16 %v1558, %v1555
        %v1586 = vpack.c.b16 %v1559, %v1556
        %v1587 = vpack.c.b16 %v1560, %v1557
        %v1588 = vpack.c.b16 %v1564, %v1561
        %v1589 = vpack.c.b16 %v1565, %v1562
        %v1590 = vpack.c.b16 %v1566, %v1563
        %1615 = vmatprep.subr.bf16.mxu0 %v1568
        %1616 = vmatpush1.bf16.msra.mxu0 %v1567
        %1617 = vmatprep.subr.bf16.mxu0 %v1571
        %1618 = vmatpush1.bf16.msra.mxu0 %v1570
        %1619 = vmatprep.subr.bf16.mxu0 %v1574
        %1620 = vmatpush1.bf16.msra.mxu0 %v1573
        %1621 = vmatprep.subr.bf16.mxu0 %v1577
        %1622 = vmatpush1.bf16.msra.mxu0 %v1576
        %1623 = vmatprep.subr.bf16.mxu0 %v1580
        %1624 = vmatpush1.bf16.msra.mxu0 %v1579
        %1625 = vmatprep.subr.bf16.mxu0 %v1583
        %1626 = vmatpush1.bf16.msra.mxu0 %v1582
        %1627 = vmatprep.subr.bf16.mxu0 %v1586
        %1628 = vmatpush1.bf16.msra.mxu0 %v1585
        %1629 = vmatprep.subr.bf16.mxu0 %v1589
        %1630 = vmatpush1.bf16.msra.mxu0 %v1588
        %1631 = vmatprep.subr.bf16.mxu0 0
        %1632 = vmatpush1.bf16.msra.mxu0 0
        %1633 = vmatprep.subr.bf16.mxu0 0
        %1634 = vmatpush1.bf16.msra.mxu0 0
        %1635 = vmatprep.subr.bf16.mxu0 0
        %1636 = vmatpush1.bf16.msra.mxu0 0
        %1637 = vmatprep.subr.bf16.mxu0 0
        %1638 = vmatpush1.bf16.msra.mxu0 0
        %1639 = vmatprep.subr.bf16.mxu0 0
        %1640 = vmatpush1.bf16.msra.mxu0 0
        %1641 = vmatprep.subr.bf16.mxu0 0
        %1642 = vmatpush1.bf16.msra.mxu0 0
        %1643 = vmatprep.subr.bf16.mxu0 0
        %1644 = vmatpush1.bf16.msra.mxu0 0
        %1645 = vmatprep.subr.bf16.mxu0 0
        %1646 = vmatpush1.bf16.msra.mxu0 0
        %1647 = vmatprep.mubr.bf16.mxu0 0
        %1648 = vmatmul.mubr.bf16.gmra.mrb[0].mxu0 %v1437
        %v1649 = vpop.f32.mrb[0].mxu0
        %v1650 = vadd.f32 %v1475, %v1649
        %v1651 = vpop.f32.mrb[0].mxu0
        %v1652 = vadd.f32 %v1479, %v1651
        %v1653 = vpop.f32.mrb[0].mxu0
        %v1654 = vadd.f32 %v1475, %v1653
        %v1655 = vpop.f32.mrb[0].mxu0
        %v1656 = vadd.f32 %v1479, %v1655
        %1657 = vdwg.mxu0
        %1658 = vmatprep.subr.bf16.mxu0 0
        %1659 = vmatpush1.bf16.msra.mxu0 %v1569
        %1660 = vmatprep.subr.bf16.mxu0 0
        %1661 = vmatpush1.bf16.msra.mxu0 %v1572
        %1662 = vmatprep.subr.bf16.mxu0 0
        %1663 = vmatpush1.bf16.msra.mxu0 %v1575
        %1664 = vmatprep.subr.bf16.mxu0 0
        %1665 = vmatpush1.bf16.msra.mxu0 %v1578
        %1666 = vmatprep.subr.bf16.mxu0 0
        %1667 = vmatpush1.bf16.msra.mxu0 %v1581
        %1668 = vmatprep.subr.bf16.mxu0 0
        %1669 = vmatpush1.bf16.msra.mxu0 %v1584
        %1670 = vmatprep.subr.bf16.mxu0 0
        %1671 = vmatpush1.bf16.msra.mxu0 %v1587
        %1672 = vmatprep.subr.bf16.mxu0 0
        %1673 = vmatpush1.bf16.msra.mxu0 %v1590
        %1674 = vmatprep.subr.bf16.mxu0 0
        %1675 = vmatpush1.bf16.msra.mxu0 0
        %1676 = vmatprep.subr.bf16.mxu0 0
        %1677 = vmatpush1.bf16.msra.mxu0 0
        %1678 = vmatprep.subr.bf16.mxu0 0
        %1679 = vmatpush1.bf16.msra.mxu0 0
        %1680 = vmatprep.subr.bf16.mxu0 0
        %1681 = vmatpush1.bf16.msra.mxu0 0
        %1682 = vmatprep.subr.bf16.mxu0 0
        %1683 = vmatpush1.bf16.msra.mxu0 0
        %1684 = vmatprep.subr.bf16.mxu0 0
        %1685 = vmatpush1.bf16.msra.mxu0 0
        %1686 = vmatprep.subr.bf16.mxu0 0
        %1687 = vmatpush1.bf16.msra.mxu0 0
        %1688 = vmatprep.subr.bf16.mxu0 0
        %1689 = vmatpush1.bf16.msra.mxu0 0
        %1690 = vmatprep.mubr.bf16.mxu0 0
        %1691 = vmatmul.mubr.bf16.gmra.mrb[0].mxu0 %v1437
        %v1692 = vpop.f32.mrb[0].mxu0
        %v1693 = vadd.f32 %v1483, %v1692
        %v1694 = vpop.f32.mrb[0].mxu0
        %v1695 = vpop.f32.mrb[0].mxu0
        %v1696 = vadd.f32 %v1483, %v1695
        %v1697 = vpop.f32.mrb[0].mxu0
        %1698 = vdwg.mxu0
        %v1699 = vmul.f32 %v1650, 0.088388346
        %v1700 = vmul.f32 %v1654, 0.088388346
        %v1701 = vpack.c.bf16 %v1700, %v1699
        %v1702 = vpack.c.bf16 %v1656, %v1652
        %v1703 = vpack.c.bf16 %v1696, %v1693
        %1704 = vmatprep.subr.bf16.mxu0 0
        %1705 = vmatpush1.bf16.xpose.msra.mxu0 %v1702
        %1706 = vmatprep.subr.bf16.mxu0 0
        %1707 = vmatpush1.bf16.xpose.msra.mxu0 0
        %1708 = vmatprep.subr.bf16.mxu0 0
        %1709 = vmatpush1.bf16.xpose.msra.mxu0 0
        %1710 = vmatprep.subr.bf16.mxu0 0
        %1711 = vmatpush1.bf16.xpose.msra.mxu0 0
        %1712 = vmatprep.subr.bf16.mxu0 0
        %1713 = vmatpush1.bf16.xpose.msra.mxu0 0
        %1714 = vmatprep.subr.bf16.mxu0 0
        %1715 = vmatpush1.bf16.xpose.msra.mxu0 0
        %1716 = vmatprep.subr.bf16.mxu0 0
        %1717 = vmatpush1.bf16.xpose.msra.mxu0 0
        %1718 = vmatprep.subr.bf16.mxu0 0
        %1719 = vmatpush1.bf16.xpose.msra.mxu0 0
        %1720 = vmatprep.subr.bf16.mxu0 0
        %1721 = vmatpush1.bf16.xpose.msra.mxu0 0
        %1722 = vmatprep.subr.bf16.mxu0 0
        %1723 = vmatpush1.bf16.xpose.msra.mxu0 0
        %1724 = vmatprep.subr.bf16.mxu0 0
        %1725 = vmatpush1.bf16.xpose.msra.mxu0 0
        %1726 = vmatprep.subr.bf16.mxu0 0
        %1727 = vmatpush1.bf16.xpose.msra.mxu0 0
        %1728 = vmatprep.subr.bf16.mxu0 0
        %1729 = vmatpush1.bf16.xpose.msra.mxu0 0
        %1730 = vmatprep.subr.bf16.mxu0 0
        %1731 = vmatpush1.bf16.xpose.msra.mxu0 0
        %1732 = vmatprep.subr.bf16.mxu0 0
        %1733 = vmatpush1.bf16.xpose.msra.mxu0 0
        %1734 = vmatprep.subr.bf16.mxu0 0
        %1735 = vmatpush1.bf16.xpose.msra.mxu0 0
        %1736 = vmatprep.mubr.bf16.mxu0 0
        %1737 = vmatmul.mubr.bf16.gmra.mrb[0].mxu0 %v1701
        %v1738 = vpop.f32.mrb[0].mxu0
        %v1739 = vadd.f32 0.0, %v1738
        %v1740 = vpop.f32.mrb[0].mxu0
        %v1741 = vpop.f32.mrb[0].mxu0
        %v1742 = vadd.f32 0.0, %v1741
        %v1743 = vpop.f32.mrb[0].mxu0
        %1744 = vdwg.mxu0
        %v1745 = vsel %vm525, %v1739, -1e+30
        %v1746 = vsel %vm526, %v1742, -1e+30
        %v1747 = vsel %vm837, %v1745, -inf
        %1748 = vmax.xlane.f32.xlu0 %v1747
        %v1749 = vpop.xlane.xlu0 %1748
        %v1750 = vsel %vm837, %v1746, -inf
        %1751 = vmax.xlane.f32.xlu0 %v1750
        %v1752 = vpop.xlane.xlu0 %1751
        %v1753 = vsub.f32 %v1745, %v1749
        %v1754 = vsub.f32 %v1746, %v1752
        %v1755 = vmul.f32 %v1753, 1.442695
        %v1756 = vpow.pop %v1755
        %v1757 = vmul.f32 %v1754, 1.442695
        %v1758 = vpow.pop %v1757
        %v1759 = vsel %vm837, %v1756, 0.0
        %1760 = vadd.xlane.f32.xlu0 %v1759
        %v1761 = vpop.xlane.xlu0 %1760
        %v1762 = vsel %vm837, %v1758, 0.0
        %1763 = vadd.xlane.f32.xlu0 %v1762
        %v1764 = vpop.xlane.xlu0 %1763
        %v1765 = vrcp.pop %v1761
        %v1766 = vmul.f32 %v1756, %v1765
        %v1767 = vrcp.pop %v1764
        %v1768 = vmul.f32 %v1758, %v1767
        %v1769 = vpack.c.bf16 %v1768, %v1766
        %v1771 = vsel %vm837, %v1769, 0
        %1773 = vmatprep.subr.bf16.mxu0 0
        %1774 = vmatpush1.bf16.msra.mxu0 %v1703
        %1775 = vmatprep.subr.bf16.mxu0 0
        %1776 = vmatpush1.bf16.msra.mxu0 0
        %1777 = vmatprep.subr.bf16.mxu0 0
        %1778 = vmatpush1.bf16.msra.mxu0 0
        %1779 = vmatprep.subr.bf16.mxu0 0
        %1780 = vmatpush1.bf16.msra.mxu0 0
        %1781 = vmatprep.subr.bf16.mxu0 0
        %1782 = vmatpush1.bf16.msra.mxu0 0
        %1783 = vmatprep.subr.bf16.mxu0 0
        %1784 = vmatpush1.bf16.msra.mxu0 0
        %1785 = vmatprep.subr.bf16.mxu0 0
        %1786 = vmatpush1.bf16.msra.mxu0 0
        %1787 = vmatprep.subr.bf16.mxu0 0
        %1788 = vmatpush1.bf16.msra.mxu0 0
        %1789 = vmatprep.subr.bf16.mxu0 0
        %1790 = vmatpush1.bf16.msra.mxu0 0
        %1791 = vmatprep.subr.bf16.mxu0 0
        %1792 = vmatpush1.bf16.msra.mxu0 0
        %1793 = vmatprep.subr.bf16.mxu0 0
        %1794 = vmatpush1.bf16.msra.mxu0 0
        %1795 = vmatprep.subr.bf16.mxu0 0
        %1796 = vmatpush1.bf16.msra.mxu0 0
        %1797 = vmatprep.subr.bf16.mxu0 0
        %1798 = vmatpush1.bf16.msra.mxu0 0
        %1799 = vmatprep.subr.bf16.mxu0 0
        %1800 = vmatpush1.bf16.msra.mxu0 0
        %1801 = vmatprep.subr.bf16.mxu0 0
        %1802 = vmatpush1.bf16.msra.mxu0 0
        %1803 = vmatprep.subr.bf16.mxu0 0
        %1804 = vmatpush1.bf16.msra.mxu0 0
        %1805 = vmatprep.mubr.bf16.mxu0 0
        %1806 = vmatmul.mubr.bf16.gmra.mrb[0].mxu0 %v1771
        %v1807 = vpop.f32.mrb[0].mxu0
        %v1808 = vadd.f32 0.0, %v1807
        %v1809 = vpop.f32.mrb[0].mxu0
        %v1810 = vpop.f32.mrb[0].mxu0
        %v1811 = vadd.f32 0.0, %v1810
        %v1812 = vpop.f32.mrb[0].mxu0
        %1813 = vdwg.mxu0
        %v1814 = vpack.c.bf16 %v1811, %v1808
        %v1815 = vld [vmem:[#allocation7] sm:$0xf]
        %v1816 = vld [vmem:[#allocation7 + $0x4] sm:$0xf]
        %v1817 = vld [vmem:[#allocation7 + $0x8] sm:$0xf]
        %v1818 = vld [vmem:[#allocation7 + $0xc] sm:$0xf]
        %v1819 = vld [vmem:[#allocation7 + $0x10] sm:$0xf]
        %v1820 = vld [vmem:[#allocation7 + $0x14] sm:$0xf]
        %v1821 = vld [vmem:[#allocation7 + $0x18] sm:$0xf]
        %v1822 = vld [vmem:[#allocation7 + $0x1c] sm:$0xf]
        %v1823 = vld [vmem:[#allocation7 + $0x20] sm:$0xf]
        %v1824 = vld [vmem:[#allocation7 + $0x24] sm:$0xf]
        %v1825 = vld [vmem:[#allocation7 + $0x28] sm:$0xf]
        %v1826 = vld [vmem:[#allocation7 + $0x2c] sm:$0xf]
        %v1827 = vld [vmem:[#allocation7 + $0x30] sm:$0xf]
        %v1828 = vld [vmem:[#allocation7 + $0x34] sm:$0xf]
        %v1829 = vld [vmem:[#allocation7 + $0x38] sm:$0xf]
        %v1830 = vld [vmem:[#allocation7 + $0x3c] sm:$0xf]
        %v1831 = vld [vmem:[%s4] sm:$0x1]
        %v1833 = vlaneseq
        %v1834 = vshrl.u32 %v1833, 7
        %v1835 = vsub.s32 0, %v1834
        %v1836 = vrot.slane %v1831, %v1835
        %v1854 = vunpack.c.l.b16 %v1815
        %v1855 = vunpack.c.l.b16 %v1816
        %v1856 = vunpack.c.l.b16 %v1817
        %v1857 = vunpack.c.l.b16 %v1818
        %v1858 = vunpack.c.l.b16 %v1819
        %v1859 = vunpack.c.l.b16 %v1820
        %v1860 = vunpack.c.l.b16 %v1821
        %v1861 = vunpack.c.l.b16 %v1822
        %v1862 = vunpack.c.l.b16 %v1823
        %v1863 = vunpack.c.l.b16 %v1824
        %v1864 = vunpack.c.l.b16 %v1825
        %v1865 = vunpack.c.l.b16 %v1826
        %v1866 = vunpack.c.l.b16 %v1827
        %v1867 = vunpack.c.l.b16 %v1828
        %v1868 = vunpack.c.l.b16 %v1829
        %v1869 = vunpack.c.l.b16 %v1830
        %v1870 = vpack.c.b16 %v1855, %v1854
        %v1871 = vpack.c.b16 %v1857, %v1856
        %v1872 = vpack.c.b16 %v1859, %v1858
        %v1873 = vpack.c.b16 %v1861, %v1860
        %v1874 = vpack.c.b16 %v1863, %v1862
        %v1875 = vpack.c.b16 %v1865, %v1864
        %v1876 = vpack.c.b16 %v1867, %v1866
        %v1877 = vpack.c.b16 %v1869, %v1868
        %1886 = vmatprep.subr.bf16.mxu0 0
        %1887 = vmatpush1.bf16.msra.mxu0 %v1870
        %1888 = vmatprep.subr.bf16.mxu0 0
        %1889 = vmatpush1.bf16.msra.mxu0 %v1871
        %1890 = vmatprep.subr.bf16.mxu0 0
        %1891 = vmatpush1.bf16.msra.mxu0 %v1872
        %1892 = vmatprep.subr.bf16.mxu0 0
        %1893 = vmatpush1.bf16.msra.mxu0 %v1873
        %1894 = vmatprep.subr.bf16.mxu0 0
        %1895 = vmatpush1.bf16.msra.mxu0 %v1874
        %1896 = vmatprep.subr.bf16.mxu0 0
        %1897 = vmatpush1.bf16.msra.mxu0 %v1875
        %1898 = vmatprep.subr.bf16.mxu0 0
        %1899 = vmatpush1.bf16.msra.mxu0 %v1876
        %1900 = vmatprep.subr.bf16.mxu0 0
        %1901 = vmatpush1.bf16.msra.mxu0 %v1877
        %1902 = vmatprep.subr.bf16.mxu0 0
        %1903 = vmatpush1.bf16.msra.mxu0 0
        %1904 = vmatprep.subr.bf16.mxu0 0
        %1905 = vmatpush1.bf16.msra.mxu0 0
        %1906 = vmatprep.subr.bf16.mxu0 0
        %1907 = vmatpush1.bf16.msra.mxu0 0
        %1908 = vmatprep.subr.bf16.mxu0 0
        %1909 = vmatpush1.bf16.msra.mxu0 0
        %1910 = vmatprep.subr.bf16.mxu0 0
        %1911 = vmatpush1.bf16.msra.mxu0 0
        %1912 = vmatprep.subr.bf16.mxu0 0
        %1913 = vmatpush1.bf16.msra.mxu0 0
        %1914 = vmatprep.subr.bf16.mxu0 0
        %1915 = vmatpush1.bf16.msra.mxu0 0
        %1916 = vmatprep.subr.bf16.mxu0 0
        %1917 = vmatpush1.bf16.msra.mxu0 0
        %1918 = vmatprep.mubr.bf16.mxu0 0
        %1919 = vmatmul.mubr.bf16.gmra.mrb[0].mxu0 %v1814
        %v1920 = vpop.f32.mrb[0].mxu0
        %v1921 = vadd.f32 %v1836, %v1920
        %v1922 = vpop.f32.mrb[0].mxu0
        %v1923 = vpop.f32.mrb[0].mxu0
        %v1924 = vadd.f32 %v1836, %v1923
        %v1925 = vpop.f32.mrb[0].mxu0
        %1926 = vdwg.mxu0
        %v1927 = vadd.f32 %v1435, %v1921
        %v1928 = vadd.f32 %v1436, %v1924
        %v1929 = vld [vmem:[%s9] sm:$0x1]
        %v1930 = vld [vmem:[%s10] sm:$0x1]
        %1931 = vadd.xlane.f32.xlu0 %v1927
        %v1932 = vpop.xlane.xlu0 %1931
        %1933 = vadd.xlane.f32.xlu0 %v1928
        %v1934 = vpop.xlane.xlu0 %1933
        %v1935 = vmul.f32 %v1932, %v1026
        %v1936 = vmul.f32 %v1934, %v1026
        %v1937 = vsub.f32 %v1927, %v1935
        %v1938 = vsub.f32 %v1928, %v1936
        %v1939 = vmul.f32 %v1937, %v1937
        %v1940 = vmul.f32 %v1938, %v1938
        %1941 = vadd.xlane.f32.xlu0 %v1939
        %v1942 = vpop.xlane.xlu0 %1941
        %1943 = vadd.xlane.f32.xlu0 %v1940
        %v1944 = vpop.xlane.xlu0 %1943
        %v1945 = vmul.f32 %v1942, %v1026
        %v1946 = vmul.f32 %v1944, %v1026
        %v1947 = vadd.f32 %v1945, 1e-05
        %v1948 = vadd.f32 %v1946, 1e-05
        %v1949 = vrsqrt.pop %v1947
        %v1950 = vrsqrt.pop %v1948
        %v1951 = vmul.f32 %v1937, %v1949
        %v1952 = vmul.f32 %v1938, %v1950
        %v1954 = vlaneseq
        %v1955 = vshrl.u32 %v1954, 7
        %v1956 = vsub.s32 0, %v1955
        %v1957 = vrot.slane %v1929, %v1956
        %v1959 = vmul.f32 %v1951, %v1957
        %v1960 = vmul.f32 %v1952, %v1957
        %v1962 = vlaneseq
        %v1963 = vshrl.u32 %v1962, 7
        %v1964 = vsub.s32 0, %v1963
        %v1965 = vrot.slane %v1930, %v1964
        %v1967 = vadd.f32 %v1959, %v1965
        %v1968 = vadd.f32 %v1960, %v1965
        %v1969 = vpack.c.bf16 %v1968, %v1967
        %v1970 = vld [vmem:[#allocation8] sm:$0xff]
        %v1971 = vld [vmem:[#allocation8 + $0x8] sm:$0xff]
        %v1972 = vld [vmem:[#allocation8 + $0x10] sm:$0xff]
        %v1973 = vld [vmem:[#allocation8 + $0x18] sm:$0xff]
        %v1974 = vld [vmem:[#allocation8 + $0x20] sm:$0xff]
        %v1975 = vld [vmem:[#allocation8 + $0x28] sm:$0xff]
        %v1976 = vld [vmem:[#allocation8 + $0x30] sm:$0xff]
        %v1977 = vld [vmem:[#allocation8 + $0x38] sm:$0xff]
        %v1978 = vld [vmem:[#allocation8 + $0x40] sm:$0xff]
        %v1979 = vld [vmem:[#allocation8 + $0x48] sm:$0xff]
        %v1980 = vld [vmem:[#allocation8 + $0x50] sm:$0xff]
        %v1981 = vld [vmem:[#allocation8 + $0x58] sm:$0xff]
        %v1982 = vld [vmem:[#allocation8 + $0x60] sm:$0xff]
        %v1983 = vld [vmem:[#allocation8 + $0x68] sm:$0xff]
        %v1984 = vld [vmem:[#allocation8 + $0x70] sm:$0xff]
        %v1985 = vld [vmem:[#allocation8 + $0x78] sm:$0xff]
        %v1986 = vld [vmem:[%s6] sm:$0x3]
        %v1988 = vlaneseq
        %v1989 = vshrl.u32 %v1988, 7
        %v1990 = vsub.s32 0, %v1989
        %v1991 = vrot.slane %v1986, %v1990
        %v1992 = vlaneseq
        %v1993 = vshrl.u32 %v1992, 7
        %v1994 = vsub.s32 1, %v1993
        %v1995 = vrot.slane %v1986, %v1994
        %v2014 = vunpack.c.l.b16 %v1970
        %v2015 = vunpack.c.h.b16 %v1970
        %v2016 = vunpack.c.l.b16 %v1971
        %v2017 = vunpack.c.h.b16 %v1971
        %v2018 = vunpack.c.l.b16 %v1972
        %v2019 = vunpack.c.h.b16 %v1972
        %v2020 = vunpack.c.l.b16 %v1973
        %v2021 = vunpack.c.h.b16 %v1973
        %v2022 = vunpack.c.l.b16 %v1974
        %v2023 = vunpack.c.h.b16 %v1974
        %v2024 = vunpack.c.l.b16 %v1975
        %v2025 = vunpack.c.h.b16 %v1975
        %v2026 = vunpack.c.l.b16 %v1976
        %v2027 = vunpack.c.h.b16 %v1976
        %v2028 = vunpack.c.l.b16 %v1977
        %v2029 = vunpack.c.h.b16 %v1977
        %v2030 = vunpack.c.l.b16 %v1978
        %v2031 = vunpack.c.h.b16 %v1978
        %v2032 = vunpack.c.l.b16 %v1979
        %v2033 = vunpack.c.h.b16 %v1979
        %v2034 = vunpack.c.l.b16 %v1980
        %v2035 = vunpack.c.h.b16 %v1980
        %v2036 = vunpack.c.l.b16 %v1981
        %v2037 = vunpack.c.h.b16 %v1981
        %v2038 = vunpack.c.l.b16 %v1982
        %v2039 = vunpack.c.h.b16 %v1982
        %v2040 = vunpack.c.l.b16 %v1983
        %v2041 = vunpack.c.h.b16 %v1983
        %v2042 = vunpack.c.l.b16 %v1984
        %v2043 = vunpack.c.h.b16 %v1984
        %v2044 = vunpack.c.l.b16 %v1985
        %v2045 = vunpack.c.h.b16 %v1985
        %v2046 = vpack.c.b16 %v2016, %v2014
        %v2047 = vpack.c.b16 %v2017, %v2015
        %v2048 = vpack.c.b16 %v2020, %v2018
        %v2049 = vpack.c.b16 %v2021, %v2019
        %v2050 = vpack.c.b16 %v2024, %v2022
        %v2051 = vpack.c.b16 %v2025, %v2023
        %v2052 = vpack.c.b16 %v2028, %v2026
        %v2053 = vpack.c.b16 %v2029, %v2027
        %v2054 = vpack.c.b16 %v2032, %v2030
        %v2055 = vpack.c.b16 %v2033, %v2031
        %v2056 = vpack.c.b16 %v2036, %v2034
        %v2057 = vpack.c.b16 %v2037, %v2035
        %v2058 = vpack.c.b16 %v2040, %v2038
        %v2059 = vpack.c.b16 %v2041, %v2039
        %v2060 = vpack.c.b16 %v2044, %v2042
        %v2061 = vpack.c.b16 %v2045, %v2043
        %2078 = vmatprep.subr.bf16.mxu0 %v2047
        %2079 = vmatpush1.bf16.msra.mxu0 %v2046
        %2080 = vmatprep.subr.bf16.mxu0 %v2049
        %2081 = vmatpush1.bf16.msra.mxu0 %v2048
        %2082 = vmatprep.subr.bf16.mxu0 %v2051
        %2083 = vmatpush1.bf16.msra.mxu0 %v2050
        %2084 = vmatprep.subr.bf16.mxu0 %v2053
        %2085 = vmatpush1.bf16.msra.mxu0 %v2052
        %2086 = vmatprep.subr.bf16.mxu0 %v2055
        %2087 = vmatpush1.bf16.msra.mxu0 %v2054
        %2088 = vmatprep.subr.bf16.mxu0 %v2057
        %2089 = vmatpush1.bf16.msra.mxu0 %v2056
        %2090 = vmatprep.subr.bf16.mxu0 %v2059
        %2091 = vmatpush1.bf16.msra.mxu0 %v2058
        %2092 = vmatprep.subr.bf16.mxu0 %v2061
        %2093 = vmatpush1.bf16.msra.mxu0 %v2060
        %2094 = vmatprep.subr.bf16.mxu0 0
        %2095 = vmatpush1.bf16.msra.mxu0 0
        %2096 = vmatprep.subr.bf16.mxu0 0
        %2097 = vmatpush1.bf16.msra.mxu0 0
        %2098 = vmatprep.subr.bf16.mxu0 0
        %2099 = vmatpush1.bf16.msra.mxu0 0
        %2100 = vmatprep.subr.bf16.mxu0 0
        %2101 = vmatpush1.bf16.msra.mxu0 0
        %2102 = vmatprep.subr.bf16.mxu0 0
        %2103 = vmatpush1.bf16.msra.mxu0 0
        %2104 = vmatprep.subr.bf16.mxu0 0
        %2105 = vmatpush1.bf16.msra.mxu0 0
        %2106 = vmatprep.subr.bf16.mxu0 0
        %2107 = vmatpush1.bf16.msra.mxu0 0
        %2108 = vmatprep.subr.bf16.mxu0 0
        %2109 = vmatpush1.bf16.msra.mxu0 0
        %2110 = vmatprep.mubr.bf16.mxu0 0
        %2111 = vmatmul.mubr.bf16.gmra.mrb[0].mxu0 %v1969
        %v2112 = vpop.f32.mrb[0].mxu0
        %v2113 = vadd.f32 %v1991, %v2112
        %v2114 = vpop.f32.mrb[0].mxu0
        %v2115 = vadd.f32 %v1995, %v2114
        %v2116 = vpop.f32.mrb[0].mxu0
        %v2117 = vadd.f32 %v1991, %v2116
        %v2118 = vpop.f32.mrb[0].mxu0
        %v2119 = vadd.f32 %v1995, %v2118
        %2120 = vdwg.mxu0
        %v2121 = vmax.f32 %v2113, 0.0
        %v2122 = vmax.f32 %v2115, 0.0
        %v2123 = vmax.f32 %v2117, 0.0
        %v2124 = vmax.f32 %v2119, 0.0
        %v2125 = vpack.c.bf16 %v2123, %v2121
        %v2126 = vpack.c.bf16 %v2124, %v2122
        %v2127 = vld [vmem:[#allocation10] sm:$0xf]
        %v2128 = vld [vmem:[#allocation10 + $0x4] sm:$0xf]
        %v2129 = vld [vmem:[#allocation10 + $0x8] sm:$0xf]
        %v2130 = vld [vmem:[#allocation10 + $0xc] sm:$0xf]
        %v2131 = vld [vmem:[#allocation10 + $0x10] sm:$0xf]
        %v2132 = vld [vmem:[#allocation10 + $0x14] sm:$0xf]
        %v2133 = vld [vmem:[#allocation10 + $0x18] sm:$0xf]
        %v2134 = vld [vmem:[#allocation10 + $0x1c] sm:$0xf]
        %v2135 = vld [vmem:[#allocation10 + $0x20] sm:$0xf]
        %v2136 = vld [vmem:[#allocation10 + $0x24] sm:$0xf]
        %v2137 = vld [vmem:[#allocation10 + $0x28] sm:$0xf]
        %v2138 = vld [vmem:[#allocation10 + $0x2c] sm:$0xf]
        %v2139 = vld [vmem:[#allocation10 + $0x30] sm:$0xf]
        %v2140 = vld [vmem:[#allocation10 + $0x34] sm:$0xf]
        %v2141 = vld [vmem:[#allocation10 + $0x38] sm:$0xf]
        %v2142 = vld [vmem:[#allocation10 + $0x3c] sm:$0xf]
        %v2143 = vld [vmem:[#allocation10 + $0x40] sm:$0xf]
        %v2144 = vld [vmem:[#allocation10 + $0x44] sm:$0xf]
        %v2145 = vld [vmem:[#allocation10 + $0x48] sm:$0xf]
        %v2146 = vld [vmem:[#allocation10 + $0x4c] sm:$0xf]
        %v2147 = vld [vmem:[#allocation10 + $0x50] sm:$0xf]
        %v2148 = vld [vmem:[#allocation10 + $0x54] sm:$0xf]
        %v2149 = vld [vmem:[#allocation10 + $0x58] sm:$0xf]
        %v2150 = vld [vmem:[#allocation10 + $0x5c] sm:$0xf]
        %v2151 = vld [vmem:[#allocation10 + $0x60] sm:$0xf]
        %v2152 = vld [vmem:[#allocation10 + $0x64] sm:$0xf]
        %v2153 = vld [vmem:[#allocation10 + $0x68] sm:$0xf]
        %v2154 = vld [vmem:[#allocation10 + $0x6c] sm:$0xf]
        %v2155 = vld [vmem:[#allocation10 + $0x70] sm:$0xf]
        %v2156 = vld [vmem:[#allocation10 + $0x74] sm:$0xf]
        %v2157 = vld [vmem:[#allocation10 + $0x78] sm:$0xf]
        %v2158 = vld [vmem:[#allocation10 + $0x7c] sm:$0xf]
        %v2159 = vld [vmem:[%s8] sm:$0x1]
        %v2161 = vlaneseq
        %v2162 = vshrl.u32 %v2161, 7
        %v2163 = vsub.s32 0, %v2162
        %v2164 = vrot.slane %v2159, %v2163
        %v2198 = vunpack.c.l.b16 %v2127
        %v2199 = vunpack.c.l.b16 %v2128
        %v2200 = vunpack.c.l.b16 %v2129
        %v2201 = vunpack.c.l.b16 %v2130
        %v2202 = vunpack.c.l.b16 %v2131
        %v2203 = vunpack.c.l.b16 %v2132
        %v2204 = vunpack.c.l.b16 %v2133
        %v2205 = vunpack.c.l.b16 %v2134
        %v2206 = vunpack.c.l.b16 %v2135
        %v2207 = vunpack.c.l.b16 %v2136
        %v2208 = vunpack.c.l.b16 %v2137
        %v2209 = vunpack.c.l.b16 %v2138
        %v2210 = vunpack.c.l.b16 %v2139
        %v2211 = vunpack.c.l.b16 %v2140
        %v2212 = vunpack.c.l.b16 %v2141
        %v2213 = vunpack.c.l.b16 %v2142
        %v2214 = vunpack.c.l.b16 %v2143
        %v2215 = vunpack.c.l.b16 %v2144
        %v2216 = vunpack.c.l.b16 %v2145
        %v2217 = vunpack.c.l.b16 %v2146
        %v2218 = vunpack.c.l.b16 %v2147
        %v2219 = vunpack.c.l.b16 %v2148
        %v2220 = vunpack.c.l.b16 %v2149
        %v2221 = vunpack.c.l.b16 %v2150
        %v2222 = vunpack.c.l.b16 %v2151
        %v2223 = vunpack.c.l.b16 %v2152
        %v2224 = vunpack.c.l.b16 %v2153
        %v2225 = vunpack.c.l.b16 %v2154
        %v2226 = vunpack.c.l.b16 %v2155
        %v2227 = vunpack.c.l.b16 %v2156
        %v2228 = vunpack.c.l.b16 %v2157
        %v2229 = vunpack.c.l.b16 %v2158
        %v2230 = vpack.c.b16 %v2199, %v2198
        %v2231 = vpack.c.b16 %v2201, %v2200
        %v2232 = vpack.c.b16 %v2203, %v2202
        %v2233 = vpack.c.b16 %v2205, %v2204
        %v2234 = vpack.c.b16 %v2207, %v2206
        %v2235 = vpack.c.b16 %v2209, %v2208
        %v2236 = vpack.c.b16 %v2211, %v2210
        %v2237 = vpack.c.b16 %v2213, %v2212
        %v2238 = vpack.c.b16 %v2215, %v2214
        %v2239 = vpack.c.b16 %v2217, %v2216
        %v2240 = vpack.c.b16 %v2219, %v2218
        %v2241 = vpack.c.b16 %v2221, %v2220
        %v2242 = vpack.c.b16 %v2223, %v2222
        %v2243 = vpack.c.b16 %v2225, %v2224
        %v2244 = vpack.c.b16 %v2227, %v2226
        %v2245 = vpack.c.b16 %v2229, %v2228
        %2262 = vmatprep.subr.bf16.mxu0 0
        %2263 = vmatpush1.bf16.msra.mxu0 %v2230
        %2264 = vmatprep.subr.bf16.mxu0 0
        %2265 = vmatpush1.bf16.msra.mxu0 %v2231
        %2266 = vmatprep.subr.bf16.mxu0 0
        %2267 = vmatpush1.bf16.msra.mxu0 %v2232
        %2268 = vmatprep.subr.bf16.mxu0 0
        %2269 = vmatpush1.bf16.msra.mxu0 %v2233
        %2270 = vmatprep.subr.bf16.mxu0 0
        %2271 = vmatpush1.bf16.msra.mxu0 %v2234
        %2272 = vmatprep.subr.bf16.mxu0 0
        %2273 = vmatpush1.bf16.msra.mxu0 %v2235
        %2274 = vmatprep.subr.bf16.mxu0 0
        %2275 = vmatpush1.bf16.msra.mxu0 %v2236
        %2276 = vmatprep.subr.bf16.mxu0 0
        %2277 = vmatpush1.bf16.msra.mxu0 %v2237
        %2278 = vmatprep.subr.bf16.mxu0 0
        %2279 = vmatpush1.bf16.msra.mxu0 %v2238
        %2280 = vmatprep.subr.bf16.mxu0 0
        %2281 = vmatpush1.bf16.msra.mxu0 %v2239
        %2282 = vmatprep.subr.bf16.mxu0 0
        %2283 = vmatpush1.bf16.msra.mxu0 %v2240
        %2284 = vmatprep.subr.bf16.mxu0 0
        %2285 = vmatpush1.bf16.msra.mxu0 %v2241
        %2286 = vmatprep.subr.bf16.mxu0 0
        %2287 = vmatpush1.bf16.msra.mxu0 %v2242
        %2288 = vmatprep.subr.bf16.mxu0 0
        %2289 = vmatpush1.bf16.msra.mxu0 %v2243
        %2290 = vmatprep.subr.bf16.mxu0 0
        %2291 = vmatpush1.bf16.msra.mxu0 %v2244
        %2292 = vmatprep.subr.bf16.mxu0 0
        %2293 = vmatpush1.bf16.msra.mxu0 %v2245
        %2294 = vmatprep.mubr.bf16.mxu0 %v2126
        %2295 = vmatmul.mubr.bf16.gmra.mrb[0].mxu0 %v2125
        %v2296 = vpop.f32.mrb[0].mxu0
        %v2297 = vadd.f32 %v2164, %v2296
        %v2298 = vpop.f32.mrb[0].mxu0
        %v2299 = vpop.f32.mrb[0].mxu0
        %v2300 = vadd.f32 %v2164, %v2299
        %v2301 = vpop.f32.mrb[0].mxu0
        %2302 = vdwg.mxu0
        %v2303 = vadd.f32 %v1967, %v2297
        %v2304 = vadd.f32 %v1968, %v2300
        %v2305 = vld [vmem:[%s11] sm:$0x1]
        %v2306 = vld [vmem:[%s12] sm:$0x1]
        %2307 = vadd.xlane.f32.xlu0 %v2303
        %v2308 = vpop.xlane.xlu0 %2307
        %2309 = vadd.xlane.f32.xlu0 %v2304
        %v2310 = vpop.xlane.xlu0 %2309
        %v2311 = vmul.f32 %v2308, %v1026
        %v2312 = vmul.f32 %v2310, %v1026
        %v2313 = vsub.f32 %v2303, %v2311
        %v2314 = vsub.f32 %v2304, %v2312
        %v2315 = vmul.f32 %v2313, %v2313
        %v2316 = vmul.f32 %v2314, %v2314
        %2317 = vadd.xlane.f32.xlu0 %v2315
        %v2318 = vpop.xlane.xlu0 %2317
        %2319 = vadd.xlane.f32.xlu0 %v2316
        %v2320 = vpop.xlane.xlu0 %2319
        %v2321 = vmul.f32 %v2318, %v1026
        %v2322 = vmul.f32 %v2320, %v1026
        %v2323 = vadd.f32 %v2321, 1e-05
        %v2324 = vadd.f32 %v2322, 1e-05
        %v2325 = vrsqrt.pop %v2323
        %v2326 = vrsqrt.pop %v2324
        %v2327 = vmul.f32 %v2313, %v2325
        %v2328 = vmul.f32 %v2314, %v2326
        %v2330 = vlaneseq
        %v2331 = vshrl.u32 %v2330, 7
        %v2332 = vsub.s32 0, %v2331
        %v2333 = vrot.slane %v2305, %v2332
        %v2335 = vmul.f32 %v2327, %v2333
        %v2336 = vmul.f32 %v2328, %v2333
        %v2338 = vlaneseq
        %v2339 = vshrl.u32 %v2338, 7
        %v2340 = vsub.s32 0, %v2339
        %v2341 = vrot.slane %v2306, %v2340
        %v2343 = vadd.f32 %v2335, %v2341
        %v2344 = vadd.f32 %v2336, %v2341
        %2345 = vst [vmem:[%s516] sm:$0xff] %v2343
        %2346 = vst [vmem:[%s516 + $0x8] sm:$0xff] %v2344
        %s2347 = sand.u32 %s318, 1
        %s2348 = scalar_lea.sflag [#allocation4], %s2347
        %s2349 = sand.u32 %s318, 1
        %s2350 = smul.addr %s2349, 16
        %s2351 = scalar_lea.vmem [#allocation11], %s2350
        // Predicated region
        $region93: #{tpu_custom_call.1} parent=71 // pred_check
          %p2352 = pneg %p328
        $region94: #{tpu_custom_call.1} parent=71 // pred_check_branch
          %2354 = sbr.rel (%p2352) target = $region96
        $region95: #{tpu_custom_call.1} parent=71 // pred_region
          %s2356 = ssub.s32 256, 256
          %2357 = vsyncadd %s2348, %s2356
          %s2358 = smul.addr %s32, 2
          %s2359 = smul.addr %s2358, 128
          %s2360 = scalar_lea.hbm %s13, %s2359
          %s2361 = sshll.u32 %s2351, 4
          %s2362 = int_to_ptr.vmem [resolvable:$true] %s2361
          %2367 = dma.vmem_to_hbm [thread:$0]  %s2362, 256, %s2360, %s2348, 128, 128, 8
        $region96: #{tpu_custom_call.1} parent=71 // pred_fallthru
          _
      $region72: #{tpu_custom_call.1} parent=5 // pred_fallthru
        _
      %p2368 = scmp.le.s32.totalorder 2, %s27
      // Predicated region
      $region97: #{tpu_custom_call.1} parent=5 // pred_check
        %p2369 = pneg %p2368
      $region98: #{tpu_custom_call.1} parent=5 // pred_check_branch
        %2371 = sbr.rel (%p2369) target = $region100
      $region99: #{tpu_custom_call.1} parent=5 // pred_region
        %s2372 = ssub.s32 %s27, 2
        // Predicated region
        $region101: #{tpu_custom_call.1} parent=99 // pred_check
          %p2373 = pneg %p334
        $region102: #{tpu_custom_call.1} parent=99 // pred_check_branch
          %2375 = sbr.rel (%p2373) target = $region104
        $region103: #{tpu_custom_call.1} parent=99 // pred_region
          %s2376 = sand.u32 %s319, 1
          %s2377 = scalar_lea.sflag [#allocation4], %s2376
          %s2378 = sand.u32 %s319, 1
          %s2379 = smul.addr %s2378, 16
          %s2380 = scalar_lea.vmem [#allocation11], %s2379
          %2381 = dma.done %s2377, 256
        $region104: #{tpu_custom_call.1} parent=99 // pred_fallthru
          _
      $region100: #{tpu_custom_call.1} parent=5 // pred_fallthru
        _
    $region6: #{tpu_custom_call.1} parent=1 // loop_footer
      %s31 = sadd.s32 1, %s27
    $region7: #{tpu_custom_call.1} parent=1 // loop_footer_branch
      %26 = sbr.rel target = $region3
    $region8: #{tpu_custom_call.1} parent=1 // loop_exit
      _
    %2382 = vsyncpa [#allocation3], 1
    %s2383 = scalar_lea.sflag [#allocation3], 1
    %2384 = vsyncpa %s2383, 1
    %2385 = vsyncpa [#allocation6], 1
    %2386 = vsyncpa [#allocation9], 1
    %2387 = vsyncpa [#allocation4], 1
    %s2388 = scalar_lea.sflag [#allocation4], 1
    %2389 = vsyncpa %s2388, 1

</llo_original>
